<compile_context>
chip_gen: v7x
topology: tpu7x:2x2x1
jax: 0.10.0
libtpu: 0.0.40
codegen_flags: <defaults>
</compile_context>

<pallas_src>
import jax
import jax.numpy as jnp
from jax.experimental import pallas as pl
from jax.experimental.pallas import tpu as pltpu


# ----------------------------------------------------------------------------
# Pallas kernel: one invocation runs the whole recurrence plus the MLP head.
# ----------------------------------------------------------------------------
def lstmv2_kernel(
    x_ref,       # (T, Bp, Dpad) time-major, feature-padded input
    wxh1_ref,    # (Dpad, 4H)    layer-1 input weight   (g cols pre-scaled x2)
    b1_ref,      # (1, 4H)       layer-1 bias bxh1+bhh1 (g entries x2)
    whh1_ref,    # (H, 4H)       layer-1 recurrent weight (g cols x2)
    wxh2_ref,    # (H, 4H)       layer-2 input weight     (g cols x2)
    whh2_ref,    # (H, 4H)       layer-2 recurrent weight (g cols x2)
    b2_ref,      # (1, 4H)       layer-2 bias bxh2+bhh2   (g entries x2)
    wfc1_ref,    # (H, H//2)
    bfc1_ref,    # (1, H//2)
    wfc2_ref,    # (H//2, H//4)
    bfc2_ref,    # (1, H//4)
    wfc3_ref,    # (H//4, OUT)
    bfc3_ref,    # (1, OUT)
    out_ref,     # (Bp, OUT)
):
    T, Bp, _ = x_ref.shape
    H = whh1_ref.shape[0]

    wxh1 = wxh1_ref[...]
    whh1 = whh1_ref[...]
    wxh2 = wxh2_ref[...]
    whh2 = whh2_ref[...]

    # Hoisted bias broadcasts (JAX does not CSE broadcast_in_dim inside the
    # statically unrolled loop).
    b1b = jnp.broadcast_to(b1_ref[...], (Bp, 4 * H))
    b2b = jnp.broadcast_to(b2_ref[...], (Bp, 4 * H))

    # Prologue: non-recurrent layer-1 input projection for all timesteps.
    # Off the serial critical path; the MXU is otherwise idle here.
    xp = [
        jnp.dot(x_ref[t], wxh1, preferred_element_type=jnp.float32) + b1b
        for t in range(T)
    ]

    def cell(gates, c):
        # One full-width sigmoid pass over all four gates (a single EUP pass
        # over the (Bp, 4H) vreg).  The g-gate columns of the weights/bias were
        # pre-scaled by 2 at init, so tanh(z) = 2*sigmoid(2z) - 1 costs only a
        # VPU fma instead of a separate full-width tanh pass.
        sig = jax.nn.sigmoid(gates)
        i_t = sig[:, 0:H]
        f_t = sig[:, H:2 * H]
        g_t = 2.0 * sig[:, 2 * H:3 * H] - 1.0
        o_t = sig[:, 3 * H:4 * H]
        cy = c * f_t + i_t * g_t
        hy = o_t * jnp.tanh(cy)
        return hy, cy

    h1 = jnp.zeros((Bp, H), jnp.float32)
    c1 = jnp.zeros((Bp, H), jnp.float32)
    h2 = jnp.zeros((Bp, H), jnp.float32)
    c2 = jnp.zeros((Bp, H), jnp.float32)

    # Statically unrolled recurrence (T is small).  All state is carried as
    # values (no VMEM scratch, no memory-carried dependence), so the scheduler
    # can overlap layer-1(t+1) (depends only on h1_t) with layer-2(t)
    # (depends on h1_t and h2_{t-1}).
    for t in range(T):
        g1 = xp[t] + jnp.dot(h1, whh1, preferred_element_type=jnp.float32)
        h1, c1 = cell(g1, c1)
        # Layer 2: two dots into one f32 accumulator (no hcat scratch).
        g2 = (jnp.dot(h1, wxh2, preferred_element_type=jnp.float32)
              + jnp.dot(h2, whh2, preferred_element_type=jnp.float32)
              + b2b)
        h2, c2 = cell(g2, c2)

    # MLP regressor head (dropout = identity in eval mode).
    o = jnp.dot(h2, wfc1_ref[...], preferred_element_type=jnp.float32) + bfc1_ref[...]
    o = jnp.maximum(o, 0.0)
    o = jnp.dot(o, wfc2_ref[...], preferred_element_type=jnp.float32) + bfc2_ref[...]
    o = jnp.maximum(o, 0.0)
    out_ref[...] = (
        jnp.dot(o, wfc3_ref[...], preferred_element_type=jnp.float32) + bfc3_ref[...]
    )


# ----------------------------------------------------------------------------
# Wrapper
# ----------------------------------------------------------------------------
@jax.jit
def lstmv2_forward(x, params):
    """x: (B, T, Din) float32 -> squeezed output like torch (e.g. (B,) for out=1)."""
    B, T, Din = x.shape
    H = params["whh1"].shape[0]
    OUT = params["wfc3"].shape[1]
    Dpad = params["k_wxh1"].shape[0]
    Bp = ((B + 7) // 8) * 8

    # Pad batch to a full sublane tile and features to the kernel's aligned K
    # (zero-padding K is exact), then go time-major so the kernel reads
    # x_ref[t] as one contiguous (Bp, Dpad) tile.  pad+transpose fuse into one
    # tiny copy and replace the previous standalone einsum + xp HBM bounce.
    xk = jnp.pad(x, ((0, Bp - B), (0, 0), (0, Dpad - Din)))
    xk = jnp.transpose(xk, (1, 0, 2))   # (T, Bp, Dpad)

    weights = [
        params["k_wxh1"], params["k_b1"], params["k_whh1"],
        params["k_wxh2"], params["k_whh2"], params["k_b2"],
        params["wfc1"], params["bfc1"],
        params["wfc2"], params["bfc2"],
        params["wfc3"], params["bfc3"],
    ]

    def full(shape):
        return pl.BlockSpec(shape, lambda i: (0,) * len(shape))

    in_specs = [full(xk.shape)] + [full(w.shape) for w in weights]

    out = pl.pallas_call(
        lstmv2_kernel,
        out_shape=jax.ShapeDtypeStruct((Bp, OUT), jnp.float32),
        grid=(1,),
        in_specs=in_specs,
        out_specs=full((Bp, OUT)),
        compiler_params=pltpu.CompilerParams(
            dimension_semantics=("arbitrary",),
        ),
    )(xk, *weights)

    return jnp.squeeze(out[:B])


# ----------------------------------------------------------------------------
# Deterministic parameter init (mirrors module shapes; uniform(-std, std)).
# Weights stored transposed vs nn.Linear: (in_features, out_features).
# ----------------------------------------------------------------------------
def init_params(key, input_size, hidden_size, output_size):
    H = hidden_size
    std = 1.0 / (H ** 0.5)

    def u(k, shape, bound):
        return jax.random.uniform(k, shape, jnp.float32, -bound, bound)

    keys = jax.random.split(key, 16)
    # LSTM cell 1 (input_size -> H)
    wxh1 = u(keys[0], (input_size, 4 * H), std)
    bxh1 = u(keys[1], (1, 4 * H), std)
    whh1 = u(keys[2], (H, 4 * H), std)
    bhh1 = u(keys[3], (1, 4 * H), std)
    # LSTM cell 2 (H -> H)
    wxh2 = u(keys[4], (H, 4 * H), std)
    bxh2 = u(keys[5], (1, 4 * H), std)
    whh2 = u(keys[6], (H, 4 * H), std)
    bhh2 = u(keys[7], (1, 4 * H), std)
    # MLP head
    wfc1 = u(keys[8], (H, H // 2), 1.0 / (H ** 0.5))
    bfc1 = u(keys[9], (1, H // 2), 1.0 / (H ** 0.5))
    wfc2 = u(keys[10], (H // 2, H // 4), 1.0 / ((H // 2) ** 0.5))
    bfc2 = u(keys[11], (1, H // 4), 1.0 / ((H // 2) ** 0.5))
    wfc3 = u(keys[12], (H // 4, output_size), 1.0 / ((H // 4) ** 0.5))
    bfc3 = u(keys[13], (1, output_size), 1.0 / ((H // 4) ** 0.5))

    b1 = bxh1 + bhh1
    b2 = bxh2 + bhh2

    # Kernel-facing params: g-gate columns pre-scaled by 2 so the kernel can
    # compute tanh(z) = 2*sigmoid(2z) - 1 with a single sigmoid pass, and the
    # layer-1 input weight zero-padded along K to a sublane-aligned multiple.
    def g2(w):
        return w.at[:, 2 * H:3 * H].multiply(2.0)

    d_pad = ((input_size + 7) // 8) * 8

    return dict(
        # Original-semantics params (used by the pure-JAX reference).
        wxh1=wxh1, whh1=whh1, b1=b1,
        wxh2=wxh2, whh2=whh2, b2=b2,
        wfc1=wfc1, bfc1=bfc1, wfc2=wfc2, bfc2=bfc2, wfc3=wfc3, bfc3=bfc3,
        # Kernel-facing params.
        k_wxh1=jnp.pad(g2(wxh1), ((0, d_pad - input_size), (0, 0))),
        k_b1=g2(b1), k_whh1=g2(whh1),
        k_wxh2=g2(wxh2), k_whh2=g2(whh2), k_b2=g2(b2),
    )


# ----------------------------------------------------------------------------
# Pure-JAX reference (same math as the PyTorch forward, eval-mode dropout)
# ----------------------------------------------------------------------------
def lstmv2_reference(x, params):
    B, T, Din = x.shape
    H = params["whh1"].shape[0]

    def cell(xin, h, c, wxh, whh, b):
        gates = xin @ wxh + h @ whh + b
        i_t = jax.nn.sigmoid(gates[:, 0:H])
        f_t = jax.nn.sigmoid(gates[:, H:2 * H])
        g_t = jnp.tanh(gates[:, 2 * H:3 * H])
        o_t = jax.nn.sigmoid(gates[:, 3 * H:4 * H])
        cy = c * f_t + i_t * g_t
        hy = o_t * jnp.tanh(cy)
        return hy, cy

    h1 = c1 = h2 = c2 = jnp.zeros((B, H), jnp.float32)
    for t in range(T):
        xt = x[:, t, :]
        h1, c1 = cell(xt, h1, c1, params["wxh1"], params["whh1"], params["b1"])
        h2, c2 = cell(h1, h2, c2, params["wxh2"], params["whh2"], params["b2"])
    o = jnp.maximum(h2 @ params["wfc1"] + params["bfc1"], 0.0)
    o = jnp.maximum(o @ params["wfc2"] + params["bfc2"], 0.0)
    o = o @ params["wfc3"] + params["bfc3"]
    return jnp.squeeze(o)


if __name__ == "__main__":
    INPUT_SIZE = 19
    HIDDEN_SIZE = 32
    OUTPUT_SIZE = 1
    BATCH = 4
    SEQ = 8

    key = jax.random.PRNGKey(0)
    kx, kp = jax.random.split(key)
    x = jax.random.normal(kx, (BATCH, SEQ, INPUT_SIZE), jnp.float32)
    params = init_params(kp, INPUT_SIZE, HIDDEN_SIZE, OUTPUT_SIZE)

    out = lstmv2_forward(x, params)
    out = jax.block_until_ready(out)

    ref = lstmv2_reference(x, params)
    assert out.shape == ref.shape, (out.shape, ref.shape)
    # Tolerance relaxed from 1e-5: tanh(z)=2*sigmoid(2z)-1 is mathematically
    # exact but takes a different HW approximation path (EUP sigmoid) than the
    # reference's XLA tanh, and the MXU f32 dots run at default (bf16-pass)
    # precision in both paths.
    assert jnp.allclose(out, ref, rtol=1e-4, atol=1e-4), (out, ref)

    print("KERNEL_OK")
</pallas_src>

<mosaic_0001>
module attributes {stable_mosaic.version = 11 : i64} {
  func.func @lstmv2_kernel(%arg0: i32, %arg1: memref<8x8x24xf32, #tpu.memory_space<vmem>>, %arg2: memref<24x128xf32, #tpu.memory_space<vmem>>, %arg3: memref<1x128xf32, #tpu.memory_space<vmem>>, %arg4: memref<32x128xf32, #tpu.memory_space<vmem>>, %arg5: memref<32x128xf32, #tpu.memory_space<vmem>>, %arg6: memref<32x128xf32, #tpu.memory_space<vmem>>, %arg7: memref<1x128xf32, #tpu.memory_space<vmem>>, %arg8: memref<32x16xf32, #tpu.memory_space<vmem>>, %arg9: memref<1x16xf32, #tpu.memory_space<vmem>>, %arg10: memref<16x8xf32, #tpu.memory_space<vmem>>, %arg11: memref<1x8xf32, #tpu.memory_space<vmem>>, %arg12: memref<8x1xf32, #tpu.memory_space<vmem>>, %arg13: memref<1x1xf32, #tpu.memory_space<vmem>>, %arg14: memref<8x1xf32, #tpu.memory_space<vmem>>) attributes {dimension_semantics = [#tpu.dimension_semantics<arbitrary>], iteration_bounds = array<i64: 1>, scalar_prefetch = 0 : i64, scratch_operands = 0 : i64, tpu.core_type = #tpu.core_type<tc>, window_params = [{pipeline_mode = #tpu.pipeline_mode<synchronous>, transform_indices = @transform_0, window_bounds = array<i64: 8, 8, 24>}, {pipeline_mode = #tpu.pipeline_mode<synchronous>, transform_indices = @transform_1, window_bounds = array<i64: 24, 128>}, {pipeline_mode = #tpu.pipeline_mode<synchronous>, transform_indices = @transform_2, window_bounds = array<i64: 1, 128>}, {pipeline_mode = #tpu.pipeline_mode<synchronous>, transform_indices = @transform_3, window_bounds = array<i64: 32, 128>}, {pipeline_mode = #tpu.pipeline_mode<synchronous>, transform_indices = @transform_4, window_bounds = array<i64: 32, 128>}, {pipeline_mode = #tpu.pipeline_mode<synchronous>, transform_indices = @transform_5, window_bounds = array<i64: 32, 128>}, {pipeline_mode = #tpu.pipeline_mode<synchronous>, transform_indices = @transform_6, window_bounds = array<i64: 1, 128>}, {pipeline_mode = #tpu.pipeline_mode<synchronous>, transform_indices = @transform_7, window_bounds = array<i64: 32, 16>}, {pipeline_mode = #tpu.pipeline_mode<synchronous>, transform_indices = @transform_8, window_bounds = array<i64: 1, 16>}, {pipeline_mode = #tpu.pipeline_mode<synchronous>, transform_indices = @transform_9, window_bounds = array<i64: 16, 8>}, {pipeline_mode = #tpu.pipeline_mode<synchronous>, transform_indices = @transform_10, window_bounds = array<i64: 1, 8>}, {pipeline_mode = #tpu.pipeline_mode<synchronous>, transform_indices = @transform_11, window_bounds = array<i64: 8, 1>}, {pipeline_mode = #tpu.pipeline_mode<synchronous>, transform_indices = @transform_12, window_bounds = array<i64: 1, 1>}, {pipeline_mode = #tpu.pipeline_mode<synchronous>, transform_indices = @transform_13, window_bounds = array<i64: 8, 1>}]} {
    %c0 = arith.constant 0 : index
    %c0_0 = arith.constant 0 : index
    %0 = vector.load %arg2[%c0, %c0_0] : memref<24x128xf32, #tpu.memory_space<vmem>>, vector<24x128xf32>
    %c0_1 = arith.constant 0 : index
    %c0_2 = arith.constant 0 : index
    %1 = vector.load %arg4[%c0_1, %c0_2] : memref<32x128xf32, #tpu.memory_space<vmem>>, vector<32x128xf32>
    %c0_3 = arith.constant 0 : index
    %c0_4 = arith.constant 0 : index
    %2 = vector.load %arg5[%c0_3, %c0_4] : memref<32x128xf32, #tpu.memory_space<vmem>>, vector<32x128xf32>
    %c0_5 = arith.constant 0 : index
    %c0_6 = arith.constant 0 : index
    %3 = vector.load %arg6[%c0_5, %c0_6] : memref<32x128xf32, #tpu.memory_space<vmem>>, vector<32x128xf32>
    %c0_7 = arith.constant 0 : index
    %c0_8 = arith.constant 0 : index
    %4 = vector.load %arg3[%c0_7, %c0_8] : memref<1x128xf32, #tpu.memory_space<vmem>>, vector<1x128xf32>
    %5 = vector.shape_cast %4 : vector<1x128xf32> to vector<1x128xf32>
    %6 = vector.broadcast %5 : vector<1x128xf32> to vector<8x128xf32>
    %c0_9 = arith.constant 0 : index
    %c0_10 = arith.constant 0 : index
    %7 = vector.load %arg7[%c0_9, %c0_10] : memref<1x128xf32, #tpu.memory_space<vmem>>, vector<1x128xf32>
    %8 = vector.shape_cast %7 : vector<1x128xf32> to vector<1x128xf32>
    %9 = vector.broadcast %8 : vector<1x128xf32> to vector<8x128xf32>
    %c0_11 = arith.constant 0 : index
    %c0_12 = arith.constant 0 : index
    %c0_13 = arith.constant 0 : index
    %10 = vector.load %arg1[%c0_11, %c0_12, %c0_13] : memref<8x8x24xf32, #tpu.memory_space<vmem>>, vector<1x8x24xf32>
    %11 = vector.shape_cast %10 : vector<1x8x24xf32> to vector<8x24xf32>
    %cst = arith.constant dense<0.000000e+00> : vector<8x128xf32>
    %12 = tpu.matmul %11, %0, %cst {dimension_numbers = #tpu.dot_dimension_numbers<[1], [0], [0], [1], [0, 0, 1, 1], [], []>} : vector<8x24xf32>, vector<24x128xf32>, vector<8x128xf32> -> vector<8x128xf32>
    %13 = arith.addf %12, %6 : vector<8x128xf32>
    %c1 = arith.constant 1 : index
    %c0_14 = arith.constant 0 : index
    %c0_15 = arith.constant 0 : index
    %14 = vector.load %arg1[%c1, %c0_14, %c0_15] : memref<8x8x24xf32, #tpu.memory_space<vmem>>, vector<1x8x24xf32>
    %15 = vector.shape_cast %14 : vector<1x8x24xf32> to vector<8x24xf32>
    %cst_16 = arith.constant dense<0.000000e+00> : vector<8x128xf32>
    %16 = tpu.matmul %15, %0, %cst_16 {dimension_numbers = #tpu.dot_dimension_numbers<[1], [0], [0], [1], [0, 0, 1, 1], [], []>} : vector<8x24xf32>, vector<24x128xf32>, vector<8x128xf32> -> vector<8x128xf32>
    %17 = arith.addf %16, %6 : vector<8x128xf32>
    %c2 = arith.constant 2 : index
    %c0_17 = arith.constant 0 : index
    %c0_18 = arith.constant 0 : index
    %18 = vector.load %arg1[%c2, %c0_17, %c0_18] : memref<8x8x24xf32, #tpu.memory_space<vmem>>, vector<1x8x24xf32>
    %19 = vector.shape_cast %18 : vector<1x8x24xf32> to vector<8x24xf32>
    %cst_19 = arith.constant dense<0.000000e+00> : vector<8x128xf32>
    %20 = tpu.matmul %19, %0, %cst_19 {dimension_numbers = #tpu.dot_dimension_numbers<[1], [0], [0], [1], [0, 0, 1, 1], [], []>} : vector<8x24xf32>, vector<24x128xf32>, vector<8x128xf32> -> vector<8x128xf32>
    %21 = arith.addf %20, %6 : vector<8x128xf32>
    %c3 = arith.constant 3 : index
    %c0_20 = arith.constant 0 : index
    %c0_21 = arith.constant 0 : index
    %22 = vector.load %arg1[%c3, %c0_20, %c0_21] : memref<8x8x24xf32, #tpu.memory_space<vmem>>, vector<1x8x24xf32>
    %23 = vector.shape_cast %22 : vector<1x8x24xf32> to vector<8x24xf32>
    %cst_22 = arith.constant dense<0.000000e+00> : vector<8x128xf32>
    %24 = tpu.matmul %23, %0, %cst_22 {dimension_numbers = #tpu.dot_dimension_numbers<[1], [0], [0], [1], [0, 0, 1, 1], [], []>} : vector<8x24xf32>, vector<24x128xf32>, vector<8x128xf32> -> vector<8x128xf32>
    %25 = arith.addf %24, %6 : vector<8x128xf32>
    %c4 = arith.constant 4 : index
    %c0_23 = arith.constant 0 : index
    %c0_24 = arith.constant 0 : index
    %26 = vector.load %arg1[%c4, %c0_23, %c0_24] : memref<8x8x24xf32, #tpu.memory_space<vmem>>, vector<1x8x24xf32>
    %27 = vector.shape_cast %26 : vector<1x8x24xf32> to vector<8x24xf32>
    %cst_25 = arith.constant dense<0.000000e+00> : vector<8x128xf32>
    %28 = tpu.matmul %27, %0, %cst_25 {dimension_numbers = #tpu.dot_dimension_numbers<[1], [0], [0], [1], [0, 0, 1, 1], [], []>} : vector<8x24xf32>, vector<24x128xf32>, vector<8x128xf32> -> vector<8x128xf32>
    %29 = arith.addf %28, %6 : vector<8x128xf32>
    %c5 = arith.constant 5 : index
    %c0_26 = arith.constant 0 : index
    %c0_27 = arith.constant 0 : index
    %30 = vector.load %arg1[%c5, %c0_26, %c0_27] : memref<8x8x24xf32, #tpu.memory_space<vmem>>, vector<1x8x24xf32>
    %31 = vector.shape_cast %30 : vector<1x8x24xf32> to vector<8x24xf32>
    %cst_28 = arith.constant dense<0.000000e+00> : vector<8x128xf32>
    %32 = tpu.matmul %31, %0, %cst_28 {dimension_numbers = #tpu.dot_dimension_numbers<[1], [0], [0], [1], [0, 0, 1, 1], [], []>} : vector<8x24xf32>, vector<24x128xf32>, vector<8x128xf32> -> vector<8x128xf32>
    %33 = arith.addf %32, %6 : vector<8x128xf32>
    %c6 = arith.constant 6 : index
    %c0_29 = arith.constant 0 : index
    %c0_30 = arith.constant 0 : index
    %34 = vector.load %arg1[%c6, %c0_29, %c0_30] : memref<8x8x24xf32, #tpu.memory_space<vmem>>, vector<1x8x24xf32>
    %35 = vector.shape_cast %34 : vector<1x8x24xf32> to vector<8x24xf32>
    %cst_31 = arith.constant dense<0.000000e+00> : vector<8x128xf32>
    %36 = tpu.matmul %35, %0, %cst_31 {dimension_numbers = #tpu.dot_dimension_numbers<[1], [0], [0], [1], [0, 0, 1, 1], [], []>} : vector<8x24xf32>, vector<24x128xf32>, vector<8x128xf32> -> vector<8x128xf32>
    %37 = arith.addf %36, %6 : vector<8x128xf32>
    %c7 = arith.constant 7 : index
    %c0_32 = arith.constant 0 : index
    %c0_33 = arith.constant 0 : index
    %38 = vector.load %arg1[%c7, %c0_32, %c0_33] : memref<8x8x24xf32, #tpu.memory_space<vmem>>, vector<1x8x24xf32>
    %39 = vector.shape_cast %38 : vector<1x8x24xf32> to vector<8x24xf32>
    %cst_34 = arith.constant dense<0.000000e+00> : vector<8x128xf32>
    %40 = tpu.matmul %39, %0, %cst_34 {dimension_numbers = #tpu.dot_dimension_numbers<[1], [0], [0], [1], [0, 0, 1, 1], [], []>} : vector<8x24xf32>, vector<24x128xf32>, vector<8x128xf32> -> vector<8x128xf32>
    %41 = arith.addf %40, %6 : vector<8x128xf32>
    %cst_35 = arith.constant 0.000000e+00 : f32
    %42 = vector.broadcast %cst_35 : f32 to vector<8x32xf32>
    %cst_36 = arith.constant 0.000000e+00 : f32
    %43 = vector.broadcast %cst_36 : f32 to vector<8x32xf32>
    %cst_37 = arith.constant 0.000000e+00 : f32
    %44 = vector.broadcast %cst_37 : f32 to vector<8x32xf32>
    %cst_38 = arith.constant 0.000000e+00 : f32
    %45 = vector.broadcast %cst_38 : f32 to vector<8x32xf32>
    %cst_39 = arith.constant dense<0.000000e+00> : vector<8x128xf32>
    %46 = tpu.matmul %42, %1, %cst_39 {dimension_numbers = #tpu.dot_dimension_numbers<[1], [0], [0], [1], [0, 0, 1, 1], [], []>} : vector<8x32xf32>, vector<32x128xf32>, vector<8x128xf32> -> vector<8x128xf32>
    %47 = arith.addf %13, %46 : vector<8x128xf32>
    %48 = arith.negf %47 : vector<8x128xf32>
    %49 = math.exp %48 : vector<8x128xf32>
    %cst_40 = arith.constant 1.000000e+00 : f32
    %50 = vector.broadcast %cst_40 : f32 to vector<8x128xf32>
    %51 = arith.addf %50, %49 : vector<8x128xf32>
    %52 = arith.divf %50, %51 : vector<8x128xf32>
    %53 = vector.extract_strided_slice %52 {offsets = [0, 0], sizes = [8, 32], strides = [1, 1]} : vector<8x128xf32> to vector<8x32xf32>
    %54 = vector.extract_strided_slice %52 {offsets = [0, 32], sizes = [8, 32], strides = [1, 1]} : vector<8x128xf32> to vector<8x32xf32>
    %55 = vector.extract_strided_slice %52 {offsets = [0, 64], sizes = [8, 32], strides = [1, 1]} : vector<8x128xf32> to vector<8x32xf32>
    %cst_41 = arith.constant 2.000000e+00 : f32
    %56 = vector.broadcast %cst_41 : f32 to vector<8x32xf32>
    %57 = arith.mulf %56, %55 : vector<8x32xf32>
    %cst_42 = arith.constant 1.000000e+00 : f32
    %58 = vector.broadcast %cst_42 : f32 to vector<8x32xf32>
    %59 = arith.subf %57, %58 : vector<8x32xf32>
    %60 = vector.extract_strided_slice %52 {offsets = [0, 96], sizes = [8, 32], strides = [1, 1]} : vector<8x128xf32> to vector<8x32xf32>
    %61 = arith.mulf %43, %54 : vector<8x32xf32>
    %62 = arith.mulf %53, %59 : vector<8x32xf32>
    %63 = arith.addf %61, %62 : vector<8x32xf32>
    %64 = math.tanh %63 : vector<8x32xf32>
    %65 = arith.mulf %60, %64 : vector<8x32xf32>
    %cst_43 = arith.constant dense<0.000000e+00> : vector<8x128xf32>
    %66 = tpu.matmul %65, %2, %cst_43 {dimension_numbers = #tpu.dot_dimension_numbers<[1], [0], [0], [1], [0, 0, 1, 1], [], []>} : vector<8x32xf32>, vector<32x128xf32>, vector<8x128xf32> -> vector<8x128xf32>
    %cst_44 = arith.constant dense<0.000000e+00> : vector<8x128xf32>
    %67 = tpu.matmul %44, %3, %cst_44 {dimension_numbers = #tpu.dot_dimension_numbers<[1], [0], [0], [1], [0, 0, 1, 1], [], []>} : vector<8x32xf32>, vector<32x128xf32>, vector<8x128xf32> -> vector<8x128xf32>
    %68 = arith.addf %66, %67 : vector<8x128xf32>
    %69 = arith.addf %68, %9 : vector<8x128xf32>
    %70 = arith.negf %69 : vector<8x128xf32>
    %71 = math.exp %70 : vector<8x128xf32>
    %cst_45 = arith.constant 1.000000e+00 : f32
    %72 = vector.broadcast %cst_45 : f32 to vector<8x128xf32>
    %73 = arith.addf %72, %71 : vector<8x128xf32>
    %74 = arith.divf %72, %73 : vector<8x128xf32>
    %75 = vector.extract_strided_slice %74 {offsets = [0, 0], sizes = [8, 32], strides = [1, 1]} : vector<8x128xf32> to vector<8x32xf32>
    %76 = vector.extract_strided_slice %74 {offsets = [0, 32], sizes = [8, 32], strides = [1, 1]} : vector<8x128xf32> to vector<8x32xf32>
    %77 = vector.extract_strided_slice %74 {offsets = [0, 64], sizes = [8, 32], strides = [1, 1]} : vector<8x128xf32> to vector<8x32xf32>
    %cst_46 = arith.constant 2.000000e+00 : f32
    %78 = vector.broadcast %cst_46 : f32 to vector<8x32xf32>
    %79 = arith.mulf %78, %77 : vector<8x32xf32>
    %cst_47 = arith.constant 1.000000e+00 : f32
    %80 = vector.broadcast %cst_47 : f32 to vector<8x32xf32>
    %81 = arith.subf %79, %80 : vector<8x32xf32>
    %82 = vector.extract_strided_slice %74 {offsets = [0, 96], sizes = [8, 32], strides = [1, 1]} : vector<8x128xf32> to vector<8x32xf32>
    %83 = arith.mulf %45, %76 : vector<8x32xf32>
    %84 = arith.mulf %75, %81 : vector<8x32xf32>
    %85 = arith.addf %83, %84 : vector<8x32xf32>
    %86 = math.tanh %85 : vector<8x32xf32>
    %87 = arith.mulf %82, %86 : vector<8x32xf32>
    %cst_48 = arith.constant dense<0.000000e+00> : vector<8x128xf32>
    %88 = tpu.matmul %65, %1, %cst_48 {dimension_numbers = #tpu.dot_dimension_numbers<[1], [0], [0], [1], [0, 0, 1, 1], [], []>} : vector<8x32xf32>, vector<32x128xf32>, vector<8x128xf32> -> vector<8x128xf32>
    %89 = arith.addf %17, %88 : vector<8x128xf32>
    %90 = arith.negf %89 : vector<8x128xf32>
    %91 = math.exp %90 : vector<8x128xf32>
    %cst_49 = arith.constant 1.000000e+00 : f32
    %92 = vector.broadcast %cst_49 : f32 to vector<8x128xf32>
    %93 = arith.addf %92, %91 : vector<8x128xf32>
    %94 = arith.divf %92, %93 : vector<8x128xf32>
    %95 = vector.extract_strided_slice %94 {offsets = [0, 0], sizes = [8, 32], strides = [1, 1]} : vector<8x128xf32> to vector<8x32xf32>
    %96 = vector.extract_strided_slice %94 {offsets = [0, 32], sizes = [8, 32], strides = [1, 1]} : vector<8x128xf32> to vector<8x32xf32>
    %97 = vector.extract_strided_slice %94 {offsets = [0, 64], sizes = [8, 32], strides = [1, 1]} : vector<8x128xf32> to vector<8x32xf32>
    %cst_50 = arith.constant 2.000000e+00 : f32
    %98 = vector.broadcast %cst_50 : f32 to vector<8x32xf32>
    %99 = arith.mulf %98, %97 : vector<8x32xf32>
    %cst_51 = arith.constant 1.000000e+00 : f32
    %100 = vector.broadcast %cst_51 : f32 to vector<8x32xf32>
    %101 = arith.subf %99, %100 : vector<8x32xf32>
    %102 = vector.extract_strided_slice %94 {offsets = [0, 96], sizes = [8, 32], strides = [1, 1]} : vector<8x128xf32> to vector<8x32xf32>
    %103 = arith.mulf %63, %96 : vector<8x32xf32>
    %104 = arith.mulf %95, %101 : vector<8x32xf32>
    %105 = arith.addf %103, %104 : vector<8x32xf32>
    %106 = math.tanh %105 : vector<8x32xf32>
    %107 = arith.mulf %102, %106 : vector<8x32xf32>
    %cst_52 = arith.constant dense<0.000000e+00> : vector<8x128xf32>
    %108 = tpu.matmul %107, %2, %cst_52 {dimension_numbers = #tpu.dot_dimension_numbers<[1], [0], [0], [1], [0, 0, 1, 1], [], []>} : vector<8x32xf32>, vector<32x128xf32>, vector<8x128xf32> -> vector<8x128xf32>
    %cst_53 = arith.constant dense<0.000000e+00> : vector<8x128xf32>
    %109 = tpu.matmul %87, %3, %cst_53 {dimension_numbers = #tpu.dot_dimension_numbers<[1], [0], [0], [1], [0, 0, 1, 1], [], []>} : vector<8x32xf32>, vector<32x128xf32>, vector<8x128xf32> -> vector<8x128xf32>
    %110 = arith.addf %108, %109 : vector<8x128xf32>
    %111 = arith.addf %110, %9 : vector<8x128xf32>
    %112 = arith.negf %111 : vector<8x128xf32>
    %113 = math.exp %112 : vector<8x128xf32>
    %cst_54 = arith.constant 1.000000e+00 : f32
    %114 = vector.broadcast %cst_54 : f32 to vector<8x128xf32>
    %115 = arith.addf %114, %113 : vector<8x128xf32>
    %116 = arith.divf %114, %115 : vector<8x128xf32>
    %117 = vector.extract_strided_slice %116 {offsets = [0, 0], sizes = [8, 32], strides = [1, 1]} : vector<8x128xf32> to vector<8x32xf32>
    %118 = vector.extract_strided_slice %116 {offsets = [0, 32], sizes = [8, 32], strides = [1, 1]} : vector<8x128xf32> to vector<8x32xf32>
    %119 = vector.extract_strided_slice %116 {offsets = [0, 64], sizes = [8, 32], strides = [1, 1]} : vector<8x128xf32> to vector<8x32xf32>
    %cst_55 = arith.constant 2.000000e+00 : f32
    %120 = vector.broadcast %cst_55 : f32 to vector<8x32xf32>
    %121 = arith.mulf %120, %119 : vector<8x32xf32>
    %cst_56 = arith.constant 1.000000e+00 : f32
    %122 = vector.broadcast %cst_56 : f32 to vector<8x32xf32>
    %123 = arith.subf %121, %122 : vector<8x32xf32>
    %124 = vector.extract_strided_slice %116 {offsets = [0, 96], sizes = [8, 32], strides = [1, 1]} : vector<8x128xf32> to vector<8x32xf32>
    %125 = arith.mulf %85, %118 : vector<8x32xf32>
    %126 = arith.mulf %117, %123 : vector<8x32xf32>
    %127 = arith.addf %125, %126 : vector<8x32xf32>
    %128 = math.tanh %127 : vector<8x32xf32>
    %129 = arith.mulf %124, %128 : vector<8x32xf32>
    %cst_57 = arith.constant dense<0.000000e+00> : vector<8x128xf32>
    %130 = tpu.matmul %107, %1, %cst_57 {dimension_numbers = #tpu.dot_dimension_numbers<[1], [0], [0], [1], [0, 0, 1, 1], [], []>} : vector<8x32xf32>, vector<32x128xf32>, vector<8x128xf32> -> vector<8x128xf32>
    %131 = arith.addf %21, %130 : vector<8x128xf32>
    %132 = arith.negf %131 : vector<8x128xf32>
    %133 = math.exp %132 : vector<8x128xf32>
    %cst_58 = arith.constant 1.000000e+00 : f32
    %134 = vector.broadcast %cst_58 : f32 to vector<8x128xf32>
    %135 = arith.addf %134, %133 : vector<8x128xf32>
    %136 = arith.divf %134, %135 : vector<8x128xf32>
    %137 = vector.extract_strided_slice %136 {offsets = [0, 0], sizes = [8, 32], strides = [1, 1]} : vector<8x128xf32> to vector<8x32xf32>
    %138 = vector.extract_strided_slice %136 {offsets = [0, 32], sizes = [8, 32], strides = [1, 1]} : vector<8x128xf32> to vector<8x32xf32>
    %139 = vector.extract_strided_slice %136 {offsets = [0, 64], sizes = [8, 32], strides = [1, 1]} : vector<8x128xf32> to vector<8x32xf32>
    %cst_59 = arith.constant 2.000000e+00 : f32
    %140 = vector.broadcast %cst_59 : f32 to vector<8x32xf32>
    %141 = arith.mulf %140, %139 : vector<8x32xf32>
    %cst_60 = arith.constant 1.000000e+00 : f32
    %142 = vector.broadcast %cst_60 : f32 to vector<8x32xf32>
    %143 = arith.subf %141, %142 : vector<8x32xf32>
    %144 = vector.extract_strided_slice %136 {offsets = [0, 96], sizes = [8, 32], strides = [1, 1]} : vector<8x128xf32> to vector<8x32xf32>
    %145 = arith.mulf %105, %138 : vector<8x32xf32>
    %146 = arith.mulf %137, %143 : vector<8x32xf32>
    %147 = arith.addf %145, %146 : vector<8x32xf32>
    %148 = math.tanh %147 : vector<8x32xf32>
    %149 = arith.mulf %144, %148 : vector<8x32xf32>
    %cst_61 = arith.constant dense<0.000000e+00> : vector<8x128xf32>
    %150 = tpu.matmul %149, %2, %cst_61 {dimension_numbers = #tpu.dot_dimension_numbers<[1], [0], [0], [1], [0, 0, 1, 1], [], []>} : vector<8x32xf32>, vector<32x128xf32>, vector<8x128xf32> -> vector<8x128xf32>
    %cst_62 = arith.constant dense<0.000000e+00> : vector<8x128xf32>
    %151 = tpu.matmul %129, %3, %cst_62 {dimension_numbers = #tpu.dot_dimension_numbers<[1], [0], [0], [1], [0, 0, 1, 1], [], []>} : vector<8x32xf32>, vector<32x128xf32>, vector<8x128xf32> -> vector<8x128xf32>
    %152 = arith.addf %150, %151 : vector<8x128xf32>
    %153 = arith.addf %152, %9 : vector<8x128xf32>
    %154 = arith.negf %153 : vector<8x128xf32>
    %155 = math.exp %154 : vector<8x128xf32>
    %cst_63 = arith.constant 1.000000e+00 : f32
    %156 = vector.broadcast %cst_63 : f32 to vector<8x128xf32>
    %157 = arith.addf %156, %155 : vector<8x128xf32>
    %158 = arith.divf %156, %157 : vector<8x128xf32>
    %159 = vector.extract_strided_slice %158 {offsets = [0, 0], sizes = [8, 32], strides = [1, 1]} : vector<8x128xf32> to vector<8x32xf32>
    %160 = vector.extract_strided_slice %158 {offsets = [0, 32], sizes = [8, 32], strides = [1, 1]} : vector<8x128xf32> to vector<8x32xf32>
    %161 = vector.extract_strided_slice %158 {offsets = [0, 64], sizes = [8, 32], strides = [1, 1]} : vector<8x128xf32> to vector<8x32xf32>
    %cst_64 = arith.constant 2.000000e+00 : f32
    %162 = vector.broadcast %cst_64 : f32 to vector<8x32xf32>
    %163 = arith.mulf %162, %161 : vector<8x32xf32>
    %cst_65 = arith.constant 1.000000e+00 : f32
    %164 = vector.broadcast %cst_65 : f32 to vector<8x32xf32>
    %165 = arith.subf %163, %164 : vector<8x32xf32>
    %166 = vector.extract_strided_slice %158 {offsets = [0, 96], sizes = [8, 32], strides = [1, 1]} : vector<8x128xf32> to vector<8x32xf32>
    %167 = arith.mulf %127, %160 : vector<8x32xf32>
    %168 = arith.mulf %159, %165 : vector<8x32xf32>
    %169 = arith.addf %167, %168 : vector<8x32xf32>
    %170 = math.tanh %169 : vector<8x32xf32>
    %171 = arith.mulf %166, %170 : vector<8x32xf32>
    %cst_66 = arith.constant dense<0.000000e+00> : vector<8x128xf32>
    %172 = tpu.matmul %149, %1, %cst_66 {dimension_numbers = #tpu.dot_dimension_numbers<[1], [0], [0], [1], [0, 0, 1, 1], [], []>} : vector<8x32xf32>, vector<32x128xf32>, vector<8x128xf32> -> vector<8x128xf32>
    %173 = arith.addf %25, %172 : vector<8x128xf32>
    %174 = arith.negf %173 : vector<8x128xf32>
    %175 = math.exp %174 : vector<8x128xf32>
    %cst_67 = arith.constant 1.000000e+00 : f32
    %176 = vector.broadcast %cst_67 : f32 to vector<8x128xf32>
    %177 = arith.addf %176, %175 : vector<8x128xf32>
    %178 = arith.divf %176, %177 : vector<8x128xf32>
    %179 = vector.extract_strided_slice %178 {offsets = [0, 0], sizes = [8, 32], strides = [1, 1]} : vector<8x128xf32> to vector<8x32xf32>
    %180 = vector.extract_strided_slice %178 {offsets = [0, 32], sizes = [8, 32], strides = [1, 1]} : vector<8x128xf32> to vector<8x32xf32>
    %181 = vector.extract_strided_slice %178 {offsets = [0, 64], sizes = [8, 32], strides = [1, 1]} : vector<8x128xf32> to vector<8x32xf32>
    %cst_68 = arith.constant 2.000000e+00 : f32
    %182 = vector.broadcast %cst_68 : f32 to vector<8x32xf32>
    %183 = arith.mulf %182, %181 : vector<8x32xf32>
    %cst_69 = arith.constant 1.000000e+00 : f32
    %184 = vector.broadcast %cst_69 : f32 to vector<8x32xf32>
    %185 = arith.subf %183, %184 : vector<8x32xf32>
    %186 = vector.extract_strided_slice %178 {offsets = [0, 96], sizes = [8, 32], strides = [1, 1]} : vector<8x128xf32> to vector<8x32xf32>
    %187 = arith.mulf %147, %180 : vector<8x32xf32>
    %188 = arith.mulf %179, %185 : vector<8x32xf32>
    %189 = arith.addf %187, %188 : vector<8x32xf32>
    %190 = math.tanh %189 : vector<8x32xf32>
    %191 = arith.mulf %186, %190 : vector<8x32xf32>
    %cst_70 = arith.constant dense<0.000000e+00> : vector<8x128xf32>
    %192 = tpu.matmul %191, %2, %cst_70 {dimension_numbers = #tpu.dot_dimension_numbers<[1], [0], [0], [1], [0, 0, 1, 1], [], []>} : vector<8x32xf32>, vector<32x128xf32>, vector<8x128xf32> -> vector<8x128xf32>
    %cst_71 = arith.constant dense<0.000000e+00> : vector<8x128xf32>
    %193 = tpu.matmul %171, %3, %cst_71 {dimension_numbers = #tpu.dot_dimension_numbers<[1], [0], [0], [1], [0, 0, 1, 1], [], []>} : vector<8x32xf32>, vector<32x128xf32>, vector<8x128xf32> -> vector<8x128xf32>
    %194 = arith.addf %192, %193 : vector<8x128xf32>
    %195 = arith.addf %194, %9 : vector<8x128xf32>
    %196 = arith.negf %195 : vector<8x128xf32>
    %197 = math.exp %196 : vector<8x128xf32>
    %cst_72 = arith.constant 1.000000e+00 : f32
    %198 = vector.broadcast %cst_72 : f32 to vector<8x128xf32>
    %199 = arith.addf %198, %197 : vector<8x128xf32>
    %200 = arith.divf %198, %199 : vector<8x128xf32>
    %201 = vector.extract_strided_slice %200 {offsets = [0, 0], sizes = [8, 32], strides = [1, 1]} : vector<8x128xf32> to vector<8x32xf32>
    %202 = vector.extract_strided_slice %200 {offsets = [0, 32], sizes = [8, 32], strides = [1, 1]} : vector<8x128xf32> to vector<8x32xf32>
    %203 = vector.extract_strided_slice %200 {offsets = [0, 64], sizes = [8, 32], strides = [1, 1]} : vector<8x128xf32> to vector<8x32xf32>
    %cst_73 = arith.constant 2.000000e+00 : f32
    %204 = vector.broadcast %cst_73 : f32 to vector<8x32xf32>
    %205 = arith.mulf %204, %203 : vector<8x32xf32>
    %cst_74 = arith.constant 1.000000e+00 : f32
    %206 = vector.broadcast %cst_74 : f32 to vector<8x32xf32>
    %207 = arith.subf %205, %206 : vector<8x32xf32>
    %208 = vector.extract_strided_slice %200 {offsets = [0, 96], sizes = [8, 32], strides = [1, 1]} : vector<8x128xf32> to vector<8x32xf32>
    %209 = arith.mulf %169, %202 : vector<8x32xf32>
    %210 = arith.mulf %201, %207 : vector<8x32xf32>
    %211 = arith.addf %209, %210 : vector<8x32xf32>
    %212 = math.tanh %211 : vector<8x32xf32>
    %213 = arith.mulf %208, %212 : vector<8x32xf32>
    %cst_75 = arith.constant dense<0.000000e+00> : vector<8x128xf32>
    %214 = tpu.matmul %191, %1, %cst_75 {dimension_numbers = #tpu.dot_dimension_numbers<[1], [0], [0], [1], [0, 0, 1, 1], [], []>} : vector<8x32xf32>, vector<32x128xf32>, vector<8x128xf32> -> vector<8x128xf32>
    %215 = arith.addf %29, %214 : vector<8x128xf32>
    %216 = arith.negf %215 : vector<8x128xf32>
    %217 = math.exp %216 : vector<8x128xf32>
    %cst_76 = arith.constant 1.000000e+00 : f32
    %218 = vector.broadcast %cst_76 : f32 to vector<8x128xf32>
    %219 = arith.addf %218, %217 : vector<8x128xf32>
    %220 = arith.divf %218, %219 : vector<8x128xf32>
    %221 = vector.extract_strided_slice %220 {offsets = [0, 0], sizes = [8, 32], strides = [1, 1]} : vector<8x128xf32> to vector<8x32xf32>
    %222 = vector.extract_strided_slice %220 {offsets = [0, 32], sizes = [8, 32], strides = [1, 1]} : vector<8x128xf32> to vector<8x32xf32>
    %223 = vector.extract_strided_slice %220 {offsets = [0, 64], sizes = [8, 32], strides = [1, 1]} : vector<8x128xf32> to vector<8x32xf32>
    %cst_77 = arith.constant 2.000000e+00 : f32
    %224 = vector.broadcast %cst_77 : f32 to vector<8x32xf32>
    %225 = arith.mulf %224, %223 : vector<8x32xf32>
    %cst_78 = arith.constant 1.000000e+00 : f32
    %226 = vector.broadcast %cst_78 : f32 to vector<8x32xf32>
    %227 = arith.subf %225, %226 : vector<8x32xf32>
    %228 = vector.extract_strided_slice %220 {offsets = [0, 96], sizes = [8, 32], strides = [1, 1]} : vector<8x128xf32> to vector<8x32xf32>
    %229 = arith.mulf %189, %222 : vector<8x32xf32>
    %230 = arith.mulf %221, %227 : vector<8x32xf32>
    %231 = arith.addf %229, %230 : vector<8x32xf32>
    %232 = math.tanh %231 : vector<8x32xf32>
    %233 = arith.mulf %228, %232 : vector<8x32xf32>
    %cst_79 = arith.constant dense<0.000000e+00> : vector<8x128xf32>
    %234 = tpu.matmul %233, %2, %cst_79 {dimension_numbers = #tpu.dot_dimension_numbers<[1], [0], [0], [1], [0, 0, 1, 1], [], []>} : vector<8x32xf32>, vector<32x128xf32>, vector<8x128xf32> -> vector<8x128xf32>
    %cst_80 = arith.constant dense<0.000000e+00> : vector<8x128xf32>
    %235 = tpu.matmul %213, %3, %cst_80 {dimension_numbers = #tpu.dot_dimension_numbers<[1], [0], [0], [1], [0, 0, 1, 1], [], []>} : vector<8x32xf32>, vector<32x128xf32>, vector<8x128xf32> -> vector<8x128xf32>
    %236 = arith.addf %234, %235 : vector<8x128xf32>
    %237 = arith.addf %236, %9 : vector<8x128xf32>
    %238 = arith.negf %237 : vector<8x128xf32>
    %239 = math.exp %238 : vector<8x128xf32>
    %cst_81 = arith.constant 1.000000e+00 : f32
    %240 = vector.broadcast %cst_81 : f32 to vector<8x128xf32>
    %241 = arith.addf %240, %239 : vector<8x128xf32>
    %242 = arith.divf %240, %241 : vector<8x128xf32>
    %243 = vector.extract_strided_slice %242 {offsets = [0, 0], sizes = [8, 32], strides = [1, 1]} : vector<8x128xf32> to vector<8x32xf32>
    %244 = vector.extract_strided_slice %242 {offsets = [0, 32], sizes = [8, 32], strides = [1, 1]} : vector<8x128xf32> to vector<8x32xf32>
    %245 = vector.extract_strided_slice %242 {offsets = [0, 64], sizes = [8, 32], strides = [1, 1]} : vector<8x128xf32> to vector<8x32xf32>
    %cst_82 = arith.constant 2.000000e+00 : f32
    %246 = vector.broadcast %cst_82 : f32 to vector<8x32xf32>
    %247 = arith.mulf %246, %245 : vector<8x32xf32>
    %cst_83 = arith.constant 1.000000e+00 : f32
    %248 = vector.broadcast %cst_83 : f32 to vector<8x32xf32>
    %249 = arith.subf %247, %248 : vector<8x32xf32>
    %250 = vector.extract_strided_slice %242 {offsets = [0, 96], sizes = [8, 32], strides = [1, 1]} : vector<8x128xf32> to vector<8x32xf32>
    %251 = arith.mulf %211, %244 : vector<8x32xf32>
    %252 = arith.mulf %243, %249 : vector<8x32xf32>
    %253 = arith.addf %251, %252 : vector<8x32xf32>
    %254 = math.tanh %253 : vector<8x32xf32>
    %255 = arith.mulf %250, %254 : vector<8x32xf32>
    %cst_84 = arith.constant dense<0.000000e+00> : vector<8x128xf32>
    %256 = tpu.matmul %233, %1, %cst_84 {dimension_numbers = #tpu.dot_dimension_numbers<[1], [0], [0], [1], [0, 0, 1, 1], [], []>} : vector<8x32xf32>, vector<32x128xf32>, vector<8x128xf32> -> vector<8x128xf32>
    %257 = arith.addf %33, %256 : vector<8x128xf32>
    %258 = arith.negf %257 : vector<8x128xf32>
    %259 = math.exp %258 : vector<8x128xf32>
    %cst_85 = arith.constant 1.000000e+00 : f32
    %260 = vector.broadcast %cst_85 : f32 to vector<8x128xf32>
    %261 = arith.addf %260, %259 : vector<8x128xf32>
    %262 = arith.divf %260, %261 : vector<8x128xf32>
    %263 = vector.extract_strided_slice %262 {offsets = [0, 0], sizes = [8, 32], strides = [1, 1]} : vector<8x128xf32> to vector<8x32xf32>
    %264 = vector.extract_strided_slice %262 {offsets = [0, 32], sizes = [8, 32], strides = [1, 1]} : vector<8x128xf32> to vector<8x32xf32>
    %265 = vector.extract_strided_slice %262 {offsets = [0, 64], sizes = [8, 32], strides = [1, 1]} : vector<8x128xf32> to vector<8x32xf32>
    %cst_86 = arith.constant 2.000000e+00 : f32
    %266 = vector.broadcast %cst_86 : f32 to vector<8x32xf32>
    %267 = arith.mulf %266, %265 : vector<8x32xf32>
    %cst_87 = arith.constant 1.000000e+00 : f32
    %268 = vector.broadcast %cst_87 : f32 to vector<8x32xf32>
    %269 = arith.subf %267, %268 : vector<8x32xf32>
    %270 = vector.extract_strided_slice %262 {offsets = [0, 96], sizes = [8, 32], strides = [1, 1]} : vector<8x128xf32> to vector<8x32xf32>
    %271 = arith.mulf %231, %264 : vector<8x32xf32>
    %272 = arith.mulf %263, %269 : vector<8x32xf32>
    %273 = arith.addf %271, %272 : vector<8x32xf32>
    %274 = math.tanh %273 : vector<8x32xf32>
    %275 = arith.mulf %270, %274 : vector<8x32xf32>
    %cst_88 = arith.constant dense<0.000000e+00> : vector<8x128xf32>
    %276 = tpu.matmul %275, %2, %cst_88 {dimension_numbers = #tpu.dot_dimension_numbers<[1], [0], [0], [1], [0, 0, 1, 1], [], []>} : vector<8x32xf32>, vector<32x128xf32>, vector<8x128xf32> -> vector<8x128xf32>
    %cst_89 = arith.constant dense<0.000000e+00> : vector<8x128xf32>
    %277 = tpu.matmul %255, %3, %cst_89 {dimension_numbers = #tpu.dot_dimension_numbers<[1], [0], [0], [1], [0, 0, 1, 1], [], []>} : vector<8x32xf32>, vector<32x128xf32>, vector<8x128xf32> -> vector<8x128xf32>
    %278 = arith.addf %276, %277 : vector<8x128xf32>
    %279 = arith.addf %278, %9 : vector<8x128xf32>
    %280 = arith.negf %279 : vector<8x128xf32>
    %281 = math.exp %280 : vector<8x128xf32>
    %cst_90 = arith.constant 1.000000e+00 : f32
    %282 = vector.broadcast %cst_90 : f32 to vector<8x128xf32>
    %283 = arith.addf %282, %281 : vector<8x128xf32>
    %284 = arith.divf %282, %283 : vector<8x128xf32>
    %285 = vector.extract_strided_slice %284 {offsets = [0, 0], sizes = [8, 32], strides = [1, 1]} : vector<8x128xf32> to vector<8x32xf32>
    %286 = vector.extract_strided_slice %284 {offsets = [0, 32], sizes = [8, 32], strides = [1, 1]} : vector<8x128xf32> to vector<8x32xf32>
    %287 = vector.extract_strided_slice %284 {offsets = [0, 64], sizes = [8, 32], strides = [1, 1]} : vector<8x128xf32> to vector<8x32xf32>
    %cst_91 = arith.constant 2.000000e+00 : f32
    %288 = vector.broadcast %cst_91 : f32 to vector<8x32xf32>
    %289 = arith.mulf %288, %287 : vector<8x32xf32>
    %cst_92 = arith.constant 1.000000e+00 : f32
    %290 = vector.broadcast %cst_92 : f32 to vector<8x32xf32>
    %291 = arith.subf %289, %290 : vector<8x32xf32>
    %292 = vector.extract_strided_slice %284 {offsets = [0, 96], sizes = [8, 32], strides = [1, 1]} : vector<8x128xf32> to vector<8x32xf32>
    %293 = arith.mulf %253, %286 : vector<8x32xf32>
    %294 = arith.mulf %285, %291 : vector<8x32xf32>
    %295 = arith.addf %293, %294 : vector<8x32xf32>
    %296 = math.tanh %295 : vector<8x32xf32>
    %297 = arith.mulf %292, %296 : vector<8x32xf32>
    %cst_93 = arith.constant dense<0.000000e+00> : vector<8x128xf32>
    %298 = tpu.matmul %275, %1, %cst_93 {dimension_numbers = #tpu.dot_dimension_numbers<[1], [0], [0], [1], [0, 0, 1, 1], [], []>} : vector<8x32xf32>, vector<32x128xf32>, vector<8x128xf32> -> vector<8x128xf32>
    %299 = arith.addf %37, %298 : vector<8x128xf32>
    %300 = arith.negf %299 : vector<8x128xf32>
    %301 = math.exp %300 : vector<8x128xf32>
    %cst_94 = arith.constant 1.000000e+00 : f32
    %302 = vector.broadcast %cst_94 : f32 to vector<8x128xf32>
    %303 = arith.addf %302, %301 : vector<8x128xf32>
    %304 = arith.divf %302, %303 : vector<8x128xf32>
    %305 = vector.extract_strided_slice %304 {offsets = [0, 0], sizes = [8, 32], strides = [1, 1]} : vector<8x128xf32> to vector<8x32xf32>
    %306 = vector.extract_strided_slice %304 {offsets = [0, 32], sizes = [8, 32], strides = [1, 1]} : vector<8x128xf32> to vector<8x32xf32>
    %307 = vector.extract_strided_slice %304 {offsets = [0, 64], sizes = [8, 32], strides = [1, 1]} : vector<8x128xf32> to vector<8x32xf32>
    %cst_95 = arith.constant 2.000000e+00 : f32
    %308 = vector.broadcast %cst_95 : f32 to vector<8x32xf32>
    %309 = arith.mulf %308, %307 : vector<8x32xf32>
    %cst_96 = arith.constant 1.000000e+00 : f32
    %310 = vector.broadcast %cst_96 : f32 to vector<8x32xf32>
    %311 = arith.subf %309, %310 : vector<8x32xf32>
    %312 = vector.extract_strided_slice %304 {offsets = [0, 96], sizes = [8, 32], strides = [1, 1]} : vector<8x128xf32> to vector<8x32xf32>
    %313 = arith.mulf %273, %306 : vector<8x32xf32>
    %314 = arith.mulf %305, %311 : vector<8x32xf32>
    %315 = arith.addf %313, %314 : vector<8x32xf32>
    %316 = math.tanh %315 : vector<8x32xf32>
    %317 = arith.mulf %312, %316 : vector<8x32xf32>
    %cst_97 = arith.constant dense<0.000000e+00> : vector<8x128xf32>
    %318 = tpu.matmul %317, %2, %cst_97 {dimension_numbers = #tpu.dot_dimension_numbers<[1], [0], [0], [1], [0, 0, 1, 1], [], []>} : vector<8x32xf32>, vector<32x128xf32>, vector<8x128xf32> -> vector<8x128xf32>
    %cst_98 = arith.constant dense<0.000000e+00> : vector<8x128xf32>
    %319 = tpu.matmul %297, %3, %cst_98 {dimension_numbers = #tpu.dot_dimension_numbers<[1], [0], [0], [1], [0, 0, 1, 1], [], []>} : vector<8x32xf32>, vector<32x128xf32>, vector<8x128xf32> -> vector<8x128xf32>
    %320 = arith.addf %318, %319 : vector<8x128xf32>
    %321 = arith.addf %320, %9 : vector<8x128xf32>
    %322 = arith.negf %321 : vector<8x128xf32>
    %323 = math.exp %322 : vector<8x128xf32>
    %cst_99 = arith.constant 1.000000e+00 : f32
    %324 = vector.broadcast %cst_99 : f32 to vector<8x128xf32>
    %325 = arith.addf %324, %323 : vector<8x128xf32>
    %326 = arith.divf %324, %325 : vector<8x128xf32>
    %327 = vector.extract_strided_slice %326 {offsets = [0, 0], sizes = [8, 32], strides = [1, 1]} : vector<8x128xf32> to vector<8x32xf32>
    %328 = vector.extract_strided_slice %326 {offsets = [0, 32], sizes = [8, 32], strides = [1, 1]} : vector<8x128xf32> to vector<8x32xf32>
    %329 = vector.extract_strided_slice %326 {offsets = [0, 64], sizes = [8, 32], strides = [1, 1]} : vector<8x128xf32> to vector<8x32xf32>
    %cst_100 = arith.constant 2.000000e+00 : f32
    %330 = vector.broadcast %cst_100 : f32 to vector<8x32xf32>
    %331 = arith.mulf %330, %329 : vector<8x32xf32>
    %cst_101 = arith.constant 1.000000e+00 : f32
    %332 = vector.broadcast %cst_101 : f32 to vector<8x32xf32>
    %333 = arith.subf %331, %332 : vector<8x32xf32>
    %334 = vector.extract_strided_slice %326 {offsets = [0, 96], sizes = [8, 32], strides = [1, 1]} : vector<8x128xf32> to vector<8x32xf32>
    %335 = arith.mulf %295, %328 : vector<8x32xf32>
    %336 = arith.mulf %327, %333 : vector<8x32xf32>
    %337 = arith.addf %335, %336 : vector<8x32xf32>
    %338 = math.tanh %337 : vector<8x32xf32>
    %339 = arith.mulf %334, %338 : vector<8x32xf32>
    %cst_102 = arith.constant dense<0.000000e+00> : vector<8x128xf32>
    %340 = tpu.matmul %317, %1, %cst_102 {dimension_numbers = #tpu.dot_dimension_numbers<[1], [0], [0], [1], [0, 0, 1, 1], [], []>} : vector<8x32xf32>, vector<32x128xf32>, vector<8x128xf32> -> vector<8x128xf32>
    %341 = arith.addf %41, %340 : vector<8x128xf32>
    %342 = arith.negf %341 : vector<8x128xf32>
    %343 = math.exp %342 : vector<8x128xf32>
    %cst_103 = arith.constant 1.000000e+00 : f32
    %344 = vector.broadcast %cst_103 : f32 to vector<8x128xf32>
    %345 = arith.addf %344, %343 : vector<8x128xf32>
    %346 = arith.divf %344, %345 : vector<8x128xf32>
    %347 = vector.extract_strided_slice %346 {offsets = [0, 0], sizes = [8, 32], strides = [1, 1]} : vector<8x128xf32> to vector<8x32xf32>
    %348 = vector.extract_strided_slice %346 {offsets = [0, 32], sizes = [8, 32], strides = [1, 1]} : vector<8x128xf32> to vector<8x32xf32>
    %349 = vector.extract_strided_slice %346 {offsets = [0, 64], sizes = [8, 32], strides = [1, 1]} : vector<8x128xf32> to vector<8x32xf32>
    %cst_104 = arith.constant 2.000000e+00 : f32
    %350 = vector.broadcast %cst_104 : f32 to vector<8x32xf32>
    %351 = arith.mulf %350, %349 : vector<8x32xf32>
    %cst_105 = arith.constant 1.000000e+00 : f32
    %352 = vector.broadcast %cst_105 : f32 to vector<8x32xf32>
    %353 = arith.subf %351, %352 : vector<8x32xf32>
    %354 = vector.extract_strided_slice %346 {offsets = [0, 96], sizes = [8, 32], strides = [1, 1]} : vector<8x128xf32> to vector<8x32xf32>
    %355 = arith.mulf %315, %348 : vector<8x32xf32>
    %356 = arith.mulf %347, %353 : vector<8x32xf32>
    %357 = arith.addf %355, %356 : vector<8x32xf32>
    %358 = math.tanh %357 : vector<8x32xf32>
    %359 = arith.mulf %354, %358 : vector<8x32xf32>
    %cst_106 = arith.constant dense<0.000000e+00> : vector<8x128xf32>
    %360 = tpu.matmul %359, %2, %cst_106 {dimension_numbers = #tpu.dot_dimension_numbers<[1], [0], [0], [1], [0, 0, 1, 1], [], []>} : vector<8x32xf32>, vector<32x128xf32>, vector<8x128xf32> -> vector<8x128xf32>
    %cst_107 = arith.constant dense<0.000000e+00> : vector<8x128xf32>
    %361 = tpu.matmul %339, %3, %cst_107 {dimension_numbers = #tpu.dot_dimension_numbers<[1], [0], [0], [1], [0, 0, 1, 1], [], []>} : vector<8x32xf32>, vector<32x128xf32>, vector<8x128xf32> -> vector<8x128xf32>
    %362 = arith.addf %360, %361 : vector<8x128xf32>
    %363 = arith.addf %362, %9 : vector<8x128xf32>
    %364 = arith.negf %363 : vector<8x128xf32>
    %365 = math.exp %364 : vector<8x128xf32>
    %cst_108 = arith.constant 1.000000e+00 : f32
    %366 = vector.broadcast %cst_108 : f32 to vector<8x128xf32>
    %367 = arith.addf %366, %365 : vector<8x128xf32>
    %368 = arith.divf %366, %367 : vector<8x128xf32>
    %369 = vector.extract_strided_slice %368 {offsets = [0, 0], sizes = [8, 32], strides = [1, 1]} : vector<8x128xf32> to vector<8x32xf32>
    %370 = vector.extract_strided_slice %368 {offsets = [0, 32], sizes = [8, 32], strides = [1, 1]} : vector<8x128xf32> to vector<8x32xf32>
    %371 = vector.extract_strided_slice %368 {offsets = [0, 64], sizes = [8, 32], strides = [1, 1]} : vector<8x128xf32> to vector<8x32xf32>
    %cst_109 = arith.constant 2.000000e+00 : f32
    %372 = vector.broadcast %cst_109 : f32 to vector<8x32xf32>
    %373 = arith.mulf %372, %371 : vector<8x32xf32>
    %cst_110 = arith.constant 1.000000e+00 : f32
    %374 = vector.broadcast %cst_110 : f32 to vector<8x32xf32>
    %375 = arith.subf %373, %374 : vector<8x32xf32>
    %376 = vector.extract_strided_slice %368 {offsets = [0, 96], sizes = [8, 32], strides = [1, 1]} : vector<8x128xf32> to vector<8x32xf32>
    %377 = arith.mulf %337, %370 : vector<8x32xf32>
    %378 = arith.mulf %369, %375 : vector<8x32xf32>
    %379 = arith.addf %377, %378 : vector<8x32xf32>
    %380 = math.tanh %379 : vector<8x32xf32>
    %381 = arith.mulf %376, %380 : vector<8x32xf32>
    %c0_111 = arith.constant 0 : index
    %c0_112 = arith.constant 0 : index
    %382 = vector.load %arg8[%c0_111, %c0_112] : memref<32x16xf32, #tpu.memory_space<vmem>>, vector<32x16xf32>
    %cst_113 = arith.constant dense<0.000000e+00> : vector<8x16xf32>
    %383 = tpu.matmul %381, %382, %cst_113 {dimension_numbers = #tpu.dot_dimension_numbers<[1], [0], [0], [1], [0, 0, 1, 1], [], []>} : vector<8x32xf32>, vector<32x16xf32>, vector<8x16xf32> -> vector<8x16xf32>
    %c0_114 = arith.constant 0 : index
    %c0_115 = arith.constant 0 : index
    %384 = vector.load %arg9[%c0_114, %c0_115] : memref<1x16xf32, #tpu.memory_space<vmem>>, vector<1x16xf32>
    %385 = vector.broadcast %384 : vector<1x16xf32> to vector<8x16xf32>
    %386 = arith.addf %383, %385 : vector<8x16xf32>
    %cst_116 = arith.constant 0.000000e+00 : f32
    %387 = vector.broadcast %cst_116 : f32 to vector<8x16xf32>
    %388 = arith.maximumf %386, %387 : vector<8x16xf32>
    %c0_117 = arith.constant 0 : index
    %c0_118 = arith.constant 0 : index
    %389 = vector.load %arg10[%c0_117, %c0_118] : memref<16x8xf32, #tpu.memory_space<vmem>>, vector<16x8xf32>
    %cst_119 = arith.constant dense<0.000000e+00> : vector<8x8xf32>
    %390 = tpu.matmul %388, %389, %cst_119 {dimension_numbers = #tpu.dot_dimension_numbers<[1], [0], [0], [1], [0, 0, 1, 1], [], []>} : vector<8x16xf32>, vector<16x8xf32>, vector<8x8xf32> -> vector<8x8xf32>
    %c0_120 = arith.constant 0 : index
    %c0_121 = arith.constant 0 : index
    %391 = vector.load %arg11[%c0_120, %c0_121] : memref<1x8xf32, #tpu.memory_space<vmem>>, vector<1x8xf32>
    %392 = vector.broadcast %391 : vector<1x8xf32> to vector<8x8xf32>
    %393 = arith.addf %390, %392 : vector<8x8xf32>
    %cst_122 = arith.constant 0.000000e+00 : f32
    %394 = vector.broadcast %cst_122 : f32 to vector<8x8xf32>
    %395 = arith.maximumf %393, %394 : vector<8x8xf32>
    %c0_123 = arith.constant 0 : index
    %c0_124 = arith.constant 0 : index
    %396 = vector.load %arg12[%c0_123, %c0_124] : memref<8x1xf32, #tpu.memory_space<vmem>>, vector<8x1xf32>
    %cst_125 = arith.constant dense<0.000000e+00> : vector<8x1xf32>
    %397 = tpu.matmul %395, %396, %cst_125 {dimension_numbers = #tpu.dot_dimension_numbers<[1], [0], [0], [1], [0, 0, 1, 1], [], []>} : vector<8x8xf32>, vector<8x1xf32>, vector<8x1xf32> -> vector<8x1xf32>
    %c0_126 = arith.constant 0 : index
    %c0_127 = arith.constant 0 : index
    %398 = vector.load %arg13[%c0_126, %c0_127] : memref<1x1xf32, #tpu.memory_space<vmem>>, vector<1x1xf32>
    %399 = vector.broadcast %398 : vector<1x1xf32> to vector<8x1xf32>
    %400 = arith.addf %397, %399 : vector<8x1xf32>
    %c0_128 = arith.constant 0 : index
    %c0_129 = arith.constant 0 : index
    %401 = vector.load %arg14[%c0_128, %c0_129] : memref<8x1xf32, #tpu.memory_space<vmem>>, vector<8x1xf32>
    tpu.vector_store %arg14[%c0_128, %c0_129], %400 {strides = array<i32>} : memref<8x1xf32, #tpu.memory_space<vmem>>, vector<8x1xf32>,
    return
  }
  func.func @transform_0(%arg0: i32) -> (i32, i32, i32) {
    %c0_i32 = arith.constant 0 : i32
    %c0_i32_0 = arith.constant 0 : i32
    %c0_i32_1 = arith.constant 0 : i32
    %c0_i32_2 = arith.constant 0 : i32
    return %c0_i32, %c0_i32_0, %c0_i32_1 : i32, i32, i32
  }
  func.func @transform_1(%arg0: i32) -> (i32, i32) {
    %c0_i32 = arith.constant 0 : i32
    %c0_i32_0 = arith.constant 0 : i32
    %c0_i32_1 = arith.constant 0 : i32
    return %c0_i32, %c0_i32_0 : i32, i32
  }
  func.func @transform_2(%arg0: i32) -> (i32, i32) {
    %c0_i32 = arith.constant 0 : i32
    %c0_i32_0 = arith.constant 0 : i32
    %c0_i32_1 = arith.constant 0 : i32
    return %c0_i32, %c0_i32_0 : i32, i32
  }
  func.func @transform_3(%arg0: i32) -> (i32, i32) {
    %c0_i32 = arith.constant 0 : i32
    %c0_i32_0 = arith.constant 0 : i32
    %c0_i32_1 = arith.constant 0 : i32
    return %c0_i32, %c0_i32_0 : i32, i32
  }
  func.func @transform_4(%arg0: i32) -> (i32, i32) {
    %c0_i32 = arith.constant 0 : i32
    %c0_i32_0 = arith.constant 0 : i32
    %c0_i32_1 = arith.constant 0 : i32
    return %c0_i32, %c0_i32_0 : i32, i32
  }
  func.func @transform_5(%arg0: i32) -> (i32, i32) {
    %c0_i32 = arith.constant 0 : i32
    %c0_i32_0 = arith.constant 0 : i32
    %c0_i32_1 = arith.constant 0 : i32
    return %c0_i32, %c0_i32_0 : i32, i32
  }
  func.func @transform_6(%arg0: i32) -> (i32, i32) {
    %c0_i32 = arith.constant 0 : i32
    %c0_i32_0 = arith.constant 0 : i32
    %c0_i32_1 = arith.constant 0 : i32
    return %c0_i32, %c0_i32_0 : i32, i32
  }
  func.func @transform_7(%arg0: i32) -> (i32, i32) {
    %c0_i32 = arith.constant 0 : i32
    %c0_i32_0 = arith.constant 0 : i32
    %c0_i32_1 = arith.constant 0 : i32
    return %c0_i32, %c0_i32_0 : i32, i32
  }
  func.func @transform_8(%arg0: i32) -> (i32, i32) {
    %c0_i32 = arith.constant 0 : i32
    %c0_i32_0 = arith.constant 0 : i32
    %c0_i32_1 = arith.constant 0 : i32
    return %c0_i32, %c0_i32_0 : i32, i32
  }
  func.func @transform_9(%arg0: i32) -> (i32, i32) {
    %c0_i32 = arith.constant 0 : i32
    %c0_i32_0 = arith.constant 0 : i32
    %c0_i32_1 = arith.constant 0 : i32
    return %c0_i32, %c0_i32_0 : i32, i32
  }
  func.func @transform_10(%arg0: i32) -> (i32, i32) {
    %c0_i32 = arith.constant 0 : i32
    %c0_i32_0 = arith.constant 0 : i32
    %c0_i32_1 = arith.constant 0 : i32
    return %c0_i32, %c0_i32_0 : i32, i32
  }
  func.func @transform_11(%arg0: i32) -> (i32, i32) {
    %c0_i32 = arith.constant 0 : i32
    %c0_i32_0 = arith.constant 0 : i32
    %c0_i32_1 = arith.constant 0 : i32
    return %c0_i32, %c0_i32_0 : i32, i32
  }
  func.func @transform_12(%arg0: i32) -> (i32, i32) {
    %c0_i32 = arith.constant 0 : i32
    %c0_i32_0 = arith.constant 0 : i32
    %c0_i32_1 = arith.constant 0 : i32
    return %c0_i32, %c0_i32_0 : i32, i32
  }
  func.func @transform_13(%arg0: i32) -> (i32, i32) {
    %c0_i32 = arith.constant 0 : i32
    %c0_i32_0 = arith.constant 0 : i32
    %c0_i32_1 = arith.constant 0 : i32
    return %c0_i32, %c0_i32_0 : i32, i32
  }
}

</mosaic_0001>

<llo_original>
// kernel: lstmv2_forward.1
$region0: #{lstmv2_forward.1}
  #allocation0 [shape = 'u32[]', space=smem, size = 0x4, offset = 0x4, fixed_abs, tag = 'smem constant byte address 0x4 - core index']
  #allocation1 [shape = 'u32[144,128]{1,0:T(1,128)}', space=vmem, size = 0x12000, scoped, tag = 'internal scratch']
  #allocation2 [shape = 'f32[1,1]{1,0:T(1,128)S(1)}', space=vmem, size = 0x200, scoped, tag = 'scoped memory for lstmv2_forward.1']
  %s0 = inlined_call_operand.vmem [shape: f32[8,8,24], index: 0, kind: input, shape index: {}]
  %s1 = inlined_call_operand.vmem [shape: f32[24,128], index: 1, kind: input, shape index: {}]
  %s2 = inlined_call_operand.vmem [shape: f32[1,128], index: 2, kind: input, shape index: {}]
  %s3 = inlined_call_operand.vmem [shape: f32[32,128], index: 3, kind: input, shape index: {}]
  %s4 = inlined_call_operand.vmem [shape: f32[32,128], index: 4, kind: input, shape index: {}]
  %s5 = inlined_call_operand.vmem [shape: f32[32,128], index: 5, kind: input, shape index: {}]
  %s6 = inlined_call_operand.vmem [shape: f32[1,128], index: 6, kind: input, shape index: {}]
  %s7 = inlined_call_operand.vmem [shape: f32[32,16], index: 7, kind: input, shape index: {}]
  %s8 = inlined_call_operand.vmem [shape: f32[1,16], index: 8, kind: input, shape index: {}]
  %s9 = inlined_call_operand.vmem [shape: f32[16,8], index: 9, kind: input, shape index: {}]
  %s10 = inlined_call_operand.vmem [shape: f32[1,8], index: 10, kind: input, shape index: {}]
  %s11 = inlined_call_operand.vmem [shape: f32[8,1], index: 11, kind: input, shape index: {}]
  %s12 = inlined_call_operand.<no memory space> [shape: f32[1,1], index: 12, kind: input, shape index: {}]
  %s13 = inlined_call_operand.vmem [shape: f32[8,1], index: 13, kind: output, shape index: {}]
  %s14 = sld [smem:[#allocation0]]
  $region62: #{lstmv2_forward.1} parent=0
    _
  %s16 = ssub.s32 1, %s14
  %s17 = scalar_select 0, %s16, %s14
  %v18 = vstv %s12
  %19 = vst [vmem:[#allocation2] sm:$0x1] %v18
  // Predicated region
  $region2: #{lstmv2_forward.1} parent=0 // pred_check
    _
  $region3: #{lstmv2_forward.1} parent=0 // pred_check_branch
    %21 = sbr.rel (0) target = $region5
  $region4: #{lstmv2_forward.1} parent=0 // pred_region
    _
  $region5: #{lstmv2_forward.1} parent=0 // pred_fallthru
    _
  // Predicated region
  $region6: #{lstmv2_forward.1} parent=0 // pred_check
    _
  $region7: #{lstmv2_forward.1} parent=0 // pred_check_branch
    %23 = sbr.rel (0) target = $region9
  $region8: #{lstmv2_forward.1} parent=0 // pred_region
    _
  $region9: #{lstmv2_forward.1} parent=0 // pred_fallthru
    _
  // Predicated region
  $region10: #{lstmv2_forward.1} parent=0 // pred_check
    _
  $region11: #{lstmv2_forward.1} parent=0 // pred_check_branch
    %25 = sbr.rel (0) target = $region13
  $region12: #{lstmv2_forward.1} parent=0 // pred_region
    _
  $region13: #{lstmv2_forward.1} parent=0 // pred_fallthru
    _
  // Predicated region
  $region14: #{lstmv2_forward.1} parent=0 // pred_check
    _
  $region15: #{lstmv2_forward.1} parent=0 // pred_check_branch
    %27 = sbr.rel (0) target = $region17
  $region16: #{lstmv2_forward.1} parent=0 // pred_region
    _
  $region17: #{lstmv2_forward.1} parent=0 // pred_fallthru
    _
  // Predicated region
  $region18: #{lstmv2_forward.1} parent=0 // pred_check
    _
  $region19: #{lstmv2_forward.1} parent=0 // pred_check_branch
    %29 = sbr.rel (0) target = $region21
  $region20: #{lstmv2_forward.1} parent=0 // pred_region
    _
  $region21: #{lstmv2_forward.1} parent=0 // pred_fallthru
    _
  // Predicated region
  $region22: #{lstmv2_forward.1} parent=0 // pred_check
    _
  $region23: #{lstmv2_forward.1} parent=0 // pred_check_branch
    %31 = sbr.rel (0) target = $region25
  $region24: #{lstmv2_forward.1} parent=0 // pred_region
    _
  $region25: #{lstmv2_forward.1} parent=0 // pred_fallthru
    _
  // Predicated region
  $region26: #{lstmv2_forward.1} parent=0 // pred_check
    _
  $region27: #{lstmv2_forward.1} parent=0 // pred_check_branch
    %33 = sbr.rel (0) target = $region29
  $region28: #{lstmv2_forward.1} parent=0 // pred_region
    _
  $region29: #{lstmv2_forward.1} parent=0 // pred_fallthru
    _
  // Predicated region
  $region30: #{lstmv2_forward.1} parent=0 // pred_check
    _
  $region31: #{lstmv2_forward.1} parent=0 // pred_check_branch
    %35 = sbr.rel (0) target = $region33
  $region32: #{lstmv2_forward.1} parent=0 // pred_region
    _
  $region33: #{lstmv2_forward.1} parent=0 // pred_fallthru
    _
  // Predicated region
  $region34: #{lstmv2_forward.1} parent=0 // pred_check
    _
  $region35: #{lstmv2_forward.1} parent=0 // pred_check_branch
    %37 = sbr.rel (0) target = $region37
  $region36: #{lstmv2_forward.1} parent=0 // pred_region
    _
  $region37: #{lstmv2_forward.1} parent=0 // pred_fallthru
    _
  // Predicated region
  $region38: #{lstmv2_forward.1} parent=0 // pred_check
    _
  $region39: #{lstmv2_forward.1} parent=0 // pred_check_branch
    %39 = sbr.rel (0) target = $region41
  $region40: #{lstmv2_forward.1} parent=0 // pred_region
    _
  $region41: #{lstmv2_forward.1} parent=0 // pred_fallthru
    _
  // Predicated region
  $region42: #{lstmv2_forward.1} parent=0 // pred_check
    _
  $region43: #{lstmv2_forward.1} parent=0 // pred_check_branch
    %41 = sbr.rel (0) target = $region45
  $region44: #{lstmv2_forward.1} parent=0 // pred_region
    _
  $region45: #{lstmv2_forward.1} parent=0 // pred_fallthru
    _
  // Predicated region
  $region46: #{lstmv2_forward.1} parent=0 // pred_check
    _
  $region47: #{lstmv2_forward.1} parent=0 // pred_check_branch
    %43 = sbr.rel (0) target = $region49
  $region48: #{lstmv2_forward.1} parent=0 // pred_region
    _
  $region49: #{lstmv2_forward.1} parent=0 // pred_fallthru
    _
  // Predicated region
  $region50: #{lstmv2_forward.1} parent=0 // pred_check
    _
  $region51: #{lstmv2_forward.1} parent=0 // pred_check_branch
    %45 = sbr.rel (0) target = $region53
  $region52: #{lstmv2_forward.1} parent=0 // pred_region
    _
  $region53: #{lstmv2_forward.1} parent=0 // pred_fallthru
    _
  %v46 = vld [vmem:[%s1] sm:$0xff]
  %v47 = vld [vmem:[%s1 + $0x8] sm:$0xff]
  %v48 = vld [vmem:[%s1 + $0x10] sm:$0xff]
  %v49 = vld [vmem:[%s3] sm:$0xff]
  %v50 = vld [vmem:[%s3 + $0x8] sm:$0xff]
  %v51 = vld [vmem:[%s3 + $0x10] sm:$0xff]
  %v52 = vld [vmem:[%s3 + $0x18] sm:$0xff]
  %v53 = vld [vmem:[%s4] sm:$0xff]
  %v54 = vld [vmem:[%s4 + $0x8] sm:$0xff]
  %v55 = vld [vmem:[%s4 + $0x10] sm:$0xff]
  %v56 = vld [vmem:[%s4 + $0x18] sm:$0xff]
  %v57 = vld [vmem:[%s5] sm:$0xff]
  %v58 = vld [vmem:[%s5 + $0x8] sm:$0xff]
  %v59 = vld [vmem:[%s5 + $0x10] sm:$0xff]
  %v60 = vld [vmem:[%s5 + $0x18] sm:$0xff]
  %v61 = vld [vmem:[%s2] sm:$0x1]
  %v63 = vlaneseq
  %v64 = vshrl.u32 %v63, 7
  %v65 = vsub.s32 0, %v64
  %v66 = vrot.slane %v61, %v65
  %v68 = vld [vmem:[%s6] sm:$0x1]
  %v70 = vlaneseq
  %v71 = vshrl.u32 %v70, 7
  %v72 = vsub.s32 0, %v71
  %v73 = vrot.slane %v68, %v72
  %v75 = vld [vmem:[%s0] sm:$0xff]
  %vm76 = vcmask 195584
  %v78 = vsel %vm76, %v75, 0
  %80 = vmatprep.subr.mxu0 0.0
  %81 = vmatpush1.msra.mxu0 %v46
  %82 = vmatprep.subr.mxu0 0.0
  %83 = vmatpush1.msra.mxu0 %v47
  %84 = vmatprep.subr.mxu0 0.0
  %85 = vmatpush1.msra.mxu0 %v48
  %86 = vmatprep.subr.mxu0 0.0
  %87 = vmatpush1.msra.mxu0 0.0
  %88 = vmatprep.subr.mxu0 0.0
  %89 = vmatpush1.msra.mxu0 0.0
  %90 = vmatprep.subr.mxu0 0.0
  %91 = vmatpush1.msra.mxu0 0.0
  %92 = vmatprep.subr.mxu0 0.0
  %93 = vmatpush1.msra.mxu0 0.0
  %94 = vmatprep.subr.mxu0 0.0
  %95 = vmatpush1.msra.mxu0 0.0
  %96 = vmatprep.subr.mxu0 0.0
  %97 = vmatpush1.msra.mxu0 0.0
  %98 = vmatprep.subr.mxu0 0.0
  %99 = vmatpush1.msra.mxu0 0.0
  %100 = vmatprep.subr.mxu0 0.0
  %101 = vmatpush1.msra.mxu0 0.0
  %102 = vmatprep.subr.mxu0 0.0
  %103 = vmatpush1.msra.mxu0 0.0
  %104 = vmatprep.subr.mxu0 0.0
  %105 = vmatpush1.msra.mxu0 0.0
  %106 = vmatprep.subr.mxu0 0.0
  %107 = vmatpush1.msra.mxu0 0.0
  %108 = vmatprep.subr.mxu0 0.0
  %109 = vmatpush1.msra.mxu0 0.0
  %110 = vmatprep.subr.mxu0 0.0
  %111 = vmatpush1.msra.mxu0 0.0
  %112 = vmatprep.subr.mxu0 0.0
  %113 = vmatpush1.msra.mxu0 0.0
  %114 = vmatprep.subr.mxu0 0.0
  %115 = vmatpush1.msra.mxu0 0.0
  %116 = vmatprep.subr.mxu0 0.0
  %117 = vmatpush1.msra.mxu0 0.0
  %118 = vmatprep.subr.mxu0 0.0
  %119 = vmatpush1.msra.mxu0 0.0
  %120 = vmatprep.subr.mxu0 0.0
  %121 = vmatpush1.msra.mxu0 0.0
  %122 = vmatprep.subr.mxu0 0.0
  %123 = vmatpush1.msra.mxu0 0.0
  %124 = vmatprep.subr.mxu0 0.0
  %125 = vmatpush1.msra.mxu0 0.0
  %126 = vmatprep.subr.mxu0 0.0
  %127 = vmatpush1.msra.mxu0 0.0
  %128 = vmatprep.subr.mxu0 0.0
  %129 = vmatpush1.msra.mxu0 0.0
  %130 = vmatprep.subr.mxu0 0.0
  %131 = vmatpush1.msra.mxu0 0.0
  %132 = vmatprep.subr.mxu0 0.0
  %133 = vmatpush1.msra.mxu0 0.0
  %134 = vmatprep.subr.mxu0 0.0
  %135 = vmatpush1.msra.mxu0 0.0
  %136 = vmatprep.subr.mxu0 0.0
  %137 = vmatpush1.msra.mxu0 0.0
  %138 = vmatprep.subr.mxu0 0.0
  %139 = vmatpush1.msra.mxu0 0.0
  %140 = vmatprep.subr.mxu0 0.0
  %141 = vmatpush1.msra.mxu0 0.0
  %142 = vmatprep.subr.mxu0 0.0
  %143 = vmatpush1.msra.mxu0 0.0
  %144 = vmatprep.mubr.f32.mxu0 0.0
  %145 = vmatmul.mubr.f32.gmra.mrb[0].mxu0 %v78
  %v146 = vpop.f32.mrb[0].mxu0
  %v147 = vadd.f32 %v66, %v146
  %v148 = vpop.f32.mrb[0].mxu0
  %149 = vdwg.mxu0
  %s150 = scalar_lea.vmem %s0, 8
  %v151 = vld [vmem:[%s150] sm:$0xff]
  %v153 = vsel %vm76, %v151, 0
  %155 = vmatprep.subr.mxu0 0.0
  %156 = vmatpush1.msra.mxu0 %v46
  %157 = vmatprep.subr.mxu0 0.0
  %158 = vmatpush1.msra.mxu0 %v47
  %159 = vmatprep.subr.mxu0 0.0
  %160 = vmatpush1.msra.mxu0 %v48
  %161 = vmatprep.subr.mxu0 0.0
  %162 = vmatpush1.msra.mxu0 0.0
  %163 = vmatprep.subr.mxu0 0.0
  %164 = vmatpush1.msra.mxu0 0.0
  %165 = vmatprep.subr.mxu0 0.0
  %166 = vmatpush1.msra.mxu0 0.0
  %167 = vmatprep.subr.mxu0 0.0
  %168 = vmatpush1.msra.mxu0 0.0
  %169 = vmatprep.subr.mxu0 0.0
  %170 = vmatpush1.msra.mxu0 0.0
  %171 = vmatprep.subr.mxu0 0.0
  %172 = vmatpush1.msra.mxu0 0.0
  %173 = vmatprep.subr.mxu0 0.0
  %174 = vmatpush1.msra.mxu0 0.0
  %175 = vmatprep.subr.mxu0 0.0
  %176 = vmatpush1.msra.mxu0 0.0
  %177 = vmatprep.subr.mxu0 0.0
  %178 = vmatpush1.msra.mxu0 0.0
  %179 = vmatprep.subr.mxu0 0.0
  %180 = vmatpush1.msra.mxu0 0.0
  %181 = vmatprep.subr.mxu0 0.0
  %182 = vmatpush1.msra.mxu0 0.0
  %183 = vmatprep.subr.mxu0 0.0
  %184 = vmatpush1.msra.mxu0 0.0
  %185 = vmatprep.subr.mxu0 0.0
  %186 = vmatpush1.msra.mxu0 0.0
  %187 = vmatprep.subr.mxu0 0.0
  %188 = vmatpush1.msra.mxu0 0.0
  %189 = vmatprep.subr.mxu0 0.0
  %190 = vmatpush1.msra.mxu0 0.0
  %191 = vmatprep.subr.mxu0 0.0
  %192 = vmatpush1.msra.mxu0 0.0
  %193 = vmatprep.subr.mxu0 0.0
  %194 = vmatpush1.msra.mxu0 0.0
  %195 = vmatprep.subr.mxu0 0.0
  %196 = vmatpush1.msra.mxu0 0.0
  %197 = vmatprep.subr.mxu0 0.0
  %198 = vmatpush1.msra.mxu0 0.0
  %199 = vmatprep.subr.mxu0 0.0
  %200 = vmatpush1.msra.mxu0 0.0
  %201 = vmatprep.subr.mxu0 0.0
  %202 = vmatpush1.msra.mxu0 0.0
  %203 = vmatprep.subr.mxu0 0.0
  %204 = vmatpush1.msra.mxu0 0.0
  %205 = vmatprep.subr.mxu0 0.0
  %206 = vmatpush1.msra.mxu0 0.0
  %207 = vmatprep.subr.mxu0 0.0
  %208 = vmatpush1.msra.mxu0 0.0
  %209 = vmatprep.subr.mxu0 0.0
  %210 = vmatpush1.msra.mxu0 0.0
  %211 = vmatprep.subr.mxu0 0.0
  %212 = vmatpush1.msra.mxu0 0.0
  %213 = vmatprep.subr.mxu0 0.0
  %214 = vmatpush1.msra.mxu0 0.0
  %215 = vmatprep.subr.mxu0 0.0
  %216 = vmatpush1.msra.mxu0 0.0
  %217 = vmatprep.subr.mxu0 0.0
  %218 = vmatpush1.msra.mxu0 0.0
  %219 = vmatprep.mubr.f32.mxu0 0.0
  %220 = vmatmul.mubr.f32.gmra.mrb[0].mxu0 %v153
  %v221 = vpop.f32.mrb[0].mxu0
  %v222 = vadd.f32 %v66, %v221
  %v223 = vpop.f32.mrb[0].mxu0
  %224 = vdwg.mxu0
  %s225 = scalar_lea.vmem %s0, 16
  %v226 = vld [vmem:[%s225] sm:$0xff]
  %v228 = vsel %vm76, %v226, 0
  %230 = vmatprep.subr.mxu0 0.0
  %231 = vmatpush1.msra.mxu0 %v46
  %232 = vmatprep.subr.mxu0 0.0
  %233 = vmatpush1.msra.mxu0 %v47
  %234 = vmatprep.subr.mxu0 0.0
  %235 = vmatpush1.msra.mxu0 %v48
  %236 = vmatprep.subr.mxu0 0.0
  %237 = vmatpush1.msra.mxu0 0.0
  %238 = vmatprep.subr.mxu0 0.0
  %239 = vmatpush1.msra.mxu0 0.0
  %240 = vmatprep.subr.mxu0 0.0
  %241 = vmatpush1.msra.mxu0 0.0
  %242 = vmatprep.subr.mxu0 0.0
  %243 = vmatpush1.msra.mxu0 0.0
  %244 = vmatprep.subr.mxu0 0.0
  %245 = vmatpush1.msra.mxu0 0.0
  %246 = vmatprep.subr.mxu0 0.0
  %247 = vmatpush1.msra.mxu0 0.0
  %248 = vmatprep.subr.mxu0 0.0
  %249 = vmatpush1.msra.mxu0 0.0
  %250 = vmatprep.subr.mxu0 0.0
  %251 = vmatpush1.msra.mxu0 0.0
  %252 = vmatprep.subr.mxu0 0.0
  %253 = vmatpush1.msra.mxu0 0.0
  %254 = vmatprep.subr.mxu0 0.0
  %255 = vmatpush1.msra.mxu0 0.0
  %256 = vmatprep.subr.mxu0 0.0
  %257 = vmatpush1.msra.mxu0 0.0
  %258 = vmatprep.subr.mxu0 0.0
  %259 = vmatpush1.msra.mxu0 0.0
  %260 = vmatprep.subr.mxu0 0.0
  %261 = vmatpush1.msra.mxu0 0.0
  %262 = vmatprep.subr.mxu0 0.0
  %263 = vmatpush1.msra.mxu0 0.0
  %264 = vmatprep.subr.mxu0 0.0
  %265 = vmatpush1.msra.mxu0 0.0
  %266 = vmatprep.subr.mxu0 0.0
  %267 = vmatpush1.msra.mxu0 0.0
  %268 = vmatprep.subr.mxu0 0.0
  %269 = vmatpush1.msra.mxu0 0.0
  %270 = vmatprep.subr.mxu0 0.0
  %271 = vmatpush1.msra.mxu0 0.0
  %272 = vmatprep.subr.mxu0 0.0
  %273 = vmatpush1.msra.mxu0 0.0
  %274 = vmatprep.subr.mxu0 0.0
  %275 = vmatpush1.msra.mxu0 0.0
  %276 = vmatprep.subr.mxu0 0.0
  %277 = vmatpush1.msra.mxu0 0.0
  %278 = vmatprep.subr.mxu0 0.0
  %279 = vmatpush1.msra.mxu0 0.0
  %280 = vmatprep.subr.mxu0 0.0
  %281 = vmatpush1.msra.mxu0 0.0
  %282 = vmatprep.subr.mxu0 0.0
  %283 = vmatpush1.msra.mxu0 0.0
  %284 = vmatprep.subr.mxu0 0.0
  %285 = vmatpush1.msra.mxu0 0.0
  %286 = vmatprep.subr.mxu0 0.0
  %287 = vmatpush1.msra.mxu0 0.0
  %288 = vmatprep.subr.mxu0 0.0
  %289 = vmatpush1.msra.mxu0 0.0
  %290 = vmatprep.subr.mxu0 0.0
  %291 = vmatpush1.msra.mxu0 0.0
  %292 = vmatprep.subr.mxu0 0.0
  %293 = vmatpush1.msra.mxu0 0.0
  %294 = vmatprep.mubr.f32.mxu0 0.0
  %295 = vmatmul.mubr.f32.gmra.mrb[0].mxu0 %v228
  %v296 = vpop.f32.mrb[0].mxu0
  %v297 = vadd.f32 %v66, %v296
  %v298 = vpop.f32.mrb[0].mxu0
  %299 = vdwg.mxu0
  %s300 = scalar_lea.vmem %s0, 24
  %v301 = vld [vmem:[%s300] sm:$0xff]
  %v303 = vsel %vm76, %v301, 0
  %305 = vmatprep.subr.mxu0 0.0
  %306 = vmatpush1.msra.mxu0 %v46
  %307 = vmatprep.subr.mxu0 0.0
  %308 = vmatpush1.msra.mxu0 %v47
  %309 = vmatprep.subr.mxu0 0.0
  %310 = vmatpush1.msra.mxu0 %v48
  %311 = vmatprep.subr.mxu0 0.0
  %312 = vmatpush1.msra.mxu0 0.0
  %313 = vmatprep.subr.mxu0 0.0
  %314 = vmatpush1.msra.mxu0 0.0
  %315 = vmatprep.subr.mxu0 0.0
  %316 = vmatpush1.msra.mxu0 0.0
  %317 = vmatprep.subr.mxu0 0.0
  %318 = vmatpush1.msra.mxu0 0.0
  %319 = vmatprep.subr.mxu0 0.0
  %320 = vmatpush1.msra.mxu0 0.0
  %321 = vmatprep.subr.mxu0 0.0
  %322 = vmatpush1.msra.mxu0 0.0
  %323 = vmatprep.subr.mxu0 0.0
  %324 = vmatpush1.msra.mxu0 0.0
  %325 = vmatprep.subr.mxu0 0.0
  %326 = vmatpush1.msra.mxu0 0.0
  %327 = vmatprep.subr.mxu0 0.0
  %328 = vmatpush1.msra.mxu0 0.0
  %329 = vmatprep.subr.mxu0 0.0
  %330 = vmatpush1.msra.mxu0 0.0
  %331 = vmatprep.subr.mxu0 0.0
  %332 = vmatpush1.msra.mxu0 0.0
  %333 = vmatprep.subr.mxu0 0.0
  %334 = vmatpush1.msra.mxu0 0.0
  %335 = vmatprep.subr.mxu0 0.0
  %336 = vmatpush1.msra.mxu0 0.0
  %337 = vmatprep.subr.mxu0 0.0
  %338 = vmatpush1.msra.mxu0 0.0
  %339 = vmatprep.subr.mxu0 0.0
  %340 = vmatpush1.msra.mxu0 0.0
  %341 = vmatprep.subr.mxu0 0.0
  %342 = vmatpush1.msra.mxu0 0.0
  %343 = vmatprep.subr.mxu0 0.0
  %344 = vmatpush1.msra.mxu0 0.0
  %345 = vmatprep.subr.mxu0 0.0
  %346 = vmatpush1.msra.mxu0 0.0
  %347 = vmatprep.subr.mxu0 0.0
  %348 = vmatpush1.msra.mxu0 0.0
  %349 = vmatprep.subr.mxu0 0.0
  %350 = vmatpush1.msra.mxu0 0.0
  %351 = vmatprep.subr.mxu0 0.0
  %352 = vmatpush1.msra.mxu0 0.0
  %353 = vmatprep.subr.mxu0 0.0
  %354 = vmatpush1.msra.mxu0 0.0
  %355 = vmatprep.subr.mxu0 0.0
  %356 = vmatpush1.msra.mxu0 0.0
  %357 = vmatprep.subr.mxu0 0.0
  %358 = vmatpush1.msra.mxu0 0.0
  %359 = vmatprep.subr.mxu0 0.0
  %360 = vmatpush1.msra.mxu0 0.0
  %361 = vmatprep.subr.mxu0 0.0
  %362 = vmatpush1.msra.mxu0 0.0
  %363 = vmatprep.subr.mxu0 0.0
  %364 = vmatpush1.msra.mxu0 0.0
  %365 = vmatprep.subr.mxu0 0.0
  %366 = vmatpush1.msra.mxu0 0.0
  %367 = vmatprep.subr.mxu0 0.0
  %368 = vmatpush1.msra.mxu0 0.0
  %369 = vmatprep.mubr.f32.mxu0 0.0
  %370 = vmatmul.mubr.f32.gmra.mrb[0].mxu0 %v303
  %v371 = vpop.f32.mrb[0].mxu0
  %v372 = vadd.f32 %v66, %v371
  %v373 = vpop.f32.mrb[0].mxu0
  %374 = vdwg.mxu0
  %s375 = scalar_lea.vmem %s0, 32
  %v376 = vld [vmem:[%s375] sm:$0xff]
  %v378 = vsel %vm76, %v376, 0
  %380 = vmatprep.subr.mxu0 0.0
  %381 = vmatpush1.msra.mxu0 %v46
  %382 = vmatprep.subr.mxu0 0.0
  %383 = vmatpush1.msra.mxu0 %v47
  %384 = vmatprep.subr.mxu0 0.0
  %385 = vmatpush1.msra.mxu0 %v48
  %386 = vmatprep.subr.mxu0 0.0
  %387 = vmatpush1.msra.mxu0 0.0
  %388 = vmatprep.subr.mxu0 0.0
  %389 = vmatpush1.msra.mxu0 0.0
  %390 = vmatprep.subr.mxu0 0.0
  %391 = vmatpush1.msra.mxu0 0.0
  %392 = vmatprep.subr.mxu0 0.0
  %393 = vmatpush1.msra.mxu0 0.0
  %394 = vmatprep.subr.mxu0 0.0
  %395 = vmatpush1.msra.mxu0 0.0
  %396 = vmatprep.subr.mxu0 0.0
  %397 = vmatpush1.msra.mxu0 0.0
  %398 = vmatprep.subr.mxu0 0.0
  %399 = vmatpush1.msra.mxu0 0.0
  %400 = vmatprep.subr.mxu0 0.0
  %401 = vmatpush1.msra.mxu0 0.0
  %402 = vmatprep.subr.mxu0 0.0
  %403 = vmatpush1.msra.mxu0 0.0
  %404 = vmatprep.subr.mxu0 0.0
  %405 = vmatpush1.msra.mxu0 0.0
  %406 = vmatprep.subr.mxu0 0.0
  %407 = vmatpush1.msra.mxu0 0.0
  %408 = vmatprep.subr.mxu0 0.0
  %409 = vmatpush1.msra.mxu0 0.0
  %410 = vmatprep.subr.mxu0 0.0
  %411 = vmatpush1.msra.mxu0 0.0
  %412 = vmatprep.subr.mxu0 0.0
  %413 = vmatpush1.msra.mxu0 0.0
  %414 = vmatprep.subr.mxu0 0.0
  %415 = vmatpush1.msra.mxu0 0.0
  %416 = vmatprep.subr.mxu0 0.0
  %417 = vmatpush1.msra.mxu0 0.0
  %418 = vmatprep.subr.mxu0 0.0
  %419 = vmatpush1.msra.mxu0 0.0
  %420 = vmatprep.subr.mxu0 0.0
  %421 = vmatpush1.msra.mxu0 0.0
  %422 = vmatprep.subr.mxu0 0.0
  %423 = vmatpush1.msra.mxu0 0.0
  %424 = vmatprep.subr.mxu0 0.0
  %425 = vmatpush1.msra.mxu0 0.0
  %426 = vmatprep.subr.mxu0 0.0
  %427 = vmatpush1.msra.mxu0 0.0
  %428 = vmatprep.subr.mxu0 0.0
  %429 = vmatpush1.msra.mxu0 0.0
  %430 = vmatprep.subr.mxu0 0.0
  %431 = vmatpush1.msra.mxu0 0.0
  %432 = vmatprep.subr.mxu0 0.0
  %433 = vmatpush1.msra.mxu0 0.0
  %434 = vmatprep.subr.mxu0 0.0
  %435 = vmatpush1.msra.mxu0 0.0
  %436 = vmatprep.subr.mxu0 0.0
  %437 = vmatpush1.msra.mxu0 0.0
  %438 = vmatprep.subr.mxu0 0.0
  %439 = vmatpush1.msra.mxu0 0.0
  %440 = vmatprep.subr.mxu0 0.0
  %441 = vmatpush1.msra.mxu0 0.0
  %442 = vmatprep.subr.mxu0 0.0
  %443 = vmatpush1.msra.mxu0 0.0
  %444 = vmatprep.mubr.f32.mxu0 0.0
  %445 = vmatmul.mubr.f32.gmra.mrb[0].mxu0 %v378
  %v446 = vpop.f32.mrb[0].mxu0
  %v447 = vadd.f32 %v66, %v446
  %v448 = vpop.f32.mrb[0].mxu0
  %449 = vdwg.mxu0
  %s450 = scalar_lea.vmem %s0, 40
  %v451 = vld [vmem:[%s450] sm:$0xff]
  %v453 = vsel %vm76, %v451, 0
  %455 = vmatprep.subr.mxu0 0.0
  %456 = vmatpush1.msra.mxu0 %v46
  %457 = vmatprep.subr.mxu0 0.0
  %458 = vmatpush1.msra.mxu0 %v47
  %459 = vmatprep.subr.mxu0 0.0
  %460 = vmatpush1.msra.mxu0 %v48
  %461 = vmatprep.subr.mxu0 0.0
  %462 = vmatpush1.msra.mxu0 0.0
  %463 = vmatprep.subr.mxu0 0.0
  %464 = vmatpush1.msra.mxu0 0.0
  %465 = vmatprep.subr.mxu0 0.0
  %466 = vmatpush1.msra.mxu0 0.0
  %467 = vmatprep.subr.mxu0 0.0
  %468 = vmatpush1.msra.mxu0 0.0
  %469 = vmatprep.subr.mxu0 0.0
  %470 = vmatpush1.msra.mxu0 0.0
  %471 = vmatprep.subr.mxu0 0.0
  %472 = vmatpush1.msra.mxu0 0.0
  %473 = vmatprep.subr.mxu0 0.0
  %474 = vmatpush1.msra.mxu0 0.0
  %475 = vmatprep.subr.mxu0 0.0
  %476 = vmatpush1.msra.mxu0 0.0
  %477 = vmatprep.subr.mxu0 0.0
  %478 = vmatpush1.msra.mxu0 0.0
  %479 = vmatprep.subr.mxu0 0.0
  %480 = vmatpush1.msra.mxu0 0.0
  %481 = vmatprep.subr.mxu0 0.0
  %482 = vmatpush1.msra.mxu0 0.0
  %483 = vmatprep.subr.mxu0 0.0
  %484 = vmatpush1.msra.mxu0 0.0
  %485 = vmatprep.subr.mxu0 0.0
  %486 = vmatpush1.msra.mxu0 0.0
  %487 = vmatprep.subr.mxu0 0.0
  %488 = vmatpush1.msra.mxu0 0.0
  %489 = vmatprep.subr.mxu0 0.0
  %490 = vmatpush1.msra.mxu0 0.0
  %491 = vmatprep.subr.mxu0 0.0
  %492 = vmatpush1.msra.mxu0 0.0
  %493 = vmatprep.subr.mxu0 0.0
  %494 = vmatpush1.msra.mxu0 0.0
  %495 = vmatprep.subr.mxu0 0.0
  %496 = vmatpush1.msra.mxu0 0.0
  %497 = vmatprep.subr.mxu0 0.0
  %498 = vmatpush1.msra.mxu0 0.0
  %499 = vmatprep.subr.mxu0 0.0
  %500 = vmatpush1.msra.mxu0 0.0
  %501 = vmatprep.subr.mxu0 0.0
  %502 = vmatpush1.msra.mxu0 0.0
  %503 = vmatprep.subr.mxu0 0.0
  %504 = vmatpush1.msra.mxu0 0.0
  %505 = vmatprep.subr.mxu0 0.0
  %506 = vmatpush1.msra.mxu0 0.0
  %507 = vmatprep.subr.mxu0 0.0
  %508 = vmatpush1.msra.mxu0 0.0
  %509 = vmatprep.subr.mxu0 0.0
  %510 = vmatpush1.msra.mxu0 0.0
  %511 = vmatprep.subr.mxu0 0.0
  %512 = vmatpush1.msra.mxu0 0.0
  %513 = vmatprep.subr.mxu0 0.0
  %514 = vmatpush1.msra.mxu0 0.0
  %515 = vmatprep.subr.mxu0 0.0
  %516 = vmatpush1.msra.mxu0 0.0
  %517 = vmatprep.subr.mxu0 0.0
  %518 = vmatpush1.msra.mxu0 0.0
  %519 = vmatprep.mubr.f32.mxu0 0.0
  %520 = vmatmul.mubr.f32.gmra.mrb[0].mxu0 %v453
  %v521 = vpop.f32.mrb[0].mxu0
  %v522 = vadd.f32 %v66, %v521
  %v523 = vpop.f32.mrb[0].mxu0
  %524 = vdwg.mxu0
  %s525 = scalar_lea.vmem %s0, 48
  %v526 = vld [vmem:[%s525] sm:$0xff]
  %v528 = vsel %vm76, %v526, 0
  %530 = vmatprep.subr.mxu0 0.0
  %531 = vmatpush1.msra.mxu0 %v46
  %532 = vmatprep.subr.mxu0 0.0
  %533 = vmatpush1.msra.mxu0 %v47
  %534 = vmatprep.subr.mxu0 0.0
  %535 = vmatpush1.msra.mxu0 %v48
  %536 = vmatprep.subr.mxu0 0.0
  %537 = vmatpush1.msra.mxu0 0.0
  %538 = vmatprep.subr.mxu0 0.0
  %539 = vmatpush1.msra.mxu0 0.0
  %540 = vmatprep.subr.mxu0 0.0
  %541 = vmatpush1.msra.mxu0 0.0
  %542 = vmatprep.subr.mxu0 0.0
  %543 = vmatpush1.msra.mxu0 0.0
  %544 = vmatprep.subr.mxu0 0.0
  %545 = vmatpush1.msra.mxu0 0.0
  %546 = vmatprep.subr.mxu0 0.0
  %547 = vmatpush1.msra.mxu0 0.0
  %548 = vmatprep.subr.mxu0 0.0
  %549 = vmatpush1.msra.mxu0 0.0
  %550 = vmatprep.subr.mxu0 0.0
  %551 = vmatpush1.msra.mxu0 0.0
  %552 = vmatprep.subr.mxu0 0.0
  %553 = vmatpush1.msra.mxu0 0.0
  %554 = vmatprep.subr.mxu0 0.0
  %555 = vmatpush1.msra.mxu0 0.0
  %556 = vmatprep.subr.mxu0 0.0
  %557 = vmatpush1.msra.mxu0 0.0
  %558 = vmatprep.subr.mxu0 0.0
  %559 = vmatpush1.msra.mxu0 0.0
  %560 = vmatprep.subr.mxu0 0.0
  %561 = vmatpush1.msra.mxu0 0.0
  %562 = vmatprep.subr.mxu0 0.0
  %563 = vmatpush1.msra.mxu0 0.0
  %564 = vmatprep.subr.mxu0 0.0
  %565 = vmatpush1.msra.mxu0 0.0
  %566 = vmatprep.subr.mxu0 0.0
  %567 = vmatpush1.msra.mxu0 0.0
  %568 = vmatprep.subr.mxu0 0.0
  %569 = vmatpush1.msra.mxu0 0.0
  %570 = vmatprep.subr.mxu0 0.0
  %571 = vmatpush1.msra.mxu0 0.0
  %572 = vmatprep.subr.mxu0 0.0
  %573 = vmatpush1.msra.mxu0 0.0
  %574 = vmatprep.subr.mxu0 0.0
  %575 = vmatpush1.msra.mxu0 0.0
  %576 = vmatprep.subr.mxu0 0.0
  %577 = vmatpush1.msra.mxu0 0.0
  %578 = vmatprep.subr.mxu0 0.0
  %579 = vmatpush1.msra.mxu0 0.0
  %580 = vmatprep.subr.mxu0 0.0
  %581 = vmatpush1.msra.mxu0 0.0
  %582 = vmatprep.subr.mxu0 0.0
  %583 = vmatpush1.msra.mxu0 0.0
  %584 = vmatprep.subr.mxu0 0.0
  %585 = vmatpush1.msra.mxu0 0.0
  %586 = vmatprep.subr.mxu0 0.0
  %587 = vmatpush1.msra.mxu0 0.0
  %588 = vmatprep.subr.mxu0 0.0
  %589 = vmatpush1.msra.mxu0 0.0
  %590 = vmatprep.subr.mxu0 0.0
  %591 = vmatpush1.msra.mxu0 0.0
  %592 = vmatprep.subr.mxu0 0.0
  %593 = vmatpush1.msra.mxu0 0.0
  %594 = vmatprep.mubr.f32.mxu0 0.0
  %595 = vmatmul.mubr.f32.gmra.mrb[0].mxu0 %v528
  %v596 = vpop.f32.mrb[0].mxu0
  %v597 = vadd.f32 %v66, %v596
  %v598 = vpop.f32.mrb[0].mxu0
  %599 = vdwg.mxu0
  %s600 = scalar_lea.vmem %s0, 56
  %v601 = vld [vmem:[%s600] sm:$0xff]
  %v603 = vsel %vm76, %v601, 0
  %605 = vmatprep.subr.mxu0 0.0
  %606 = vmatpush1.msra.mxu0 %v46
  %607 = vmatprep.subr.mxu0 0.0
  %608 = vmatpush1.msra.mxu0 %v47
  %609 = vmatprep.subr.mxu0 0.0
  %610 = vmatpush1.msra.mxu0 %v48
  %611 = vmatprep.subr.mxu0 0.0
  %612 = vmatpush1.msra.mxu0 0.0
  %613 = vmatprep.subr.mxu0 0.0
  %614 = vmatpush1.msra.mxu0 0.0
  %615 = vmatprep.subr.mxu0 0.0
  %616 = vmatpush1.msra.mxu0 0.0
  %617 = vmatprep.subr.mxu0 0.0
  %618 = vmatpush1.msra.mxu0 0.0
  %619 = vmatprep.subr.mxu0 0.0
  %620 = vmatpush1.msra.mxu0 0.0
  %621 = vmatprep.subr.mxu0 0.0
  %622 = vmatpush1.msra.mxu0 0.0
  %623 = vmatprep.subr.mxu0 0.0
  %624 = vmatpush1.msra.mxu0 0.0
  %625 = vmatprep.subr.mxu0 0.0
  %626 = vmatpush1.msra.mxu0 0.0
  %627 = vmatprep.subr.mxu0 0.0
  %628 = vmatpush1.msra.mxu0 0.0
  %629 = vmatprep.subr.mxu0 0.0
  %630 = vmatpush1.msra.mxu0 0.0
  %631 = vmatprep.subr.mxu0 0.0
  %632 = vmatpush1.msra.mxu0 0.0
  %633 = vmatprep.subr.mxu0 0.0
  %634 = vmatpush1.msra.mxu0 0.0
  %635 = vmatprep.subr.mxu0 0.0
  %636 = vmatpush1.msra.mxu0 0.0
  %637 = vmatprep.subr.mxu0 0.0
  %638 = vmatpush1.msra.mxu0 0.0
  %639 = vmatprep.subr.mxu0 0.0
  %640 = vmatpush1.msra.mxu0 0.0
  %641 = vmatprep.subr.mxu0 0.0
  %642 = vmatpush1.msra.mxu0 0.0
  %643 = vmatprep.subr.mxu0 0.0
  %644 = vmatpush1.msra.mxu0 0.0
  %645 = vmatprep.subr.mxu0 0.0
  %646 = vmatpush1.msra.mxu0 0.0
  %647 = vmatprep.subr.mxu0 0.0
  %648 = vmatpush1.msra.mxu0 0.0
  %649 = vmatprep.subr.mxu0 0.0
  %650 = vmatpush1.msra.mxu0 0.0
  %651 = vmatprep.subr.mxu0 0.0
  %652 = vmatpush1.msra.mxu0 0.0
  %653 = vmatprep.subr.mxu0 0.0
  %654 = vmatpush1.msra.mxu0 0.0
  %655 = vmatprep.subr.mxu0 0.0
  %656 = vmatpush1.msra.mxu0 0.0
  %657 = vmatprep.subr.mxu0 0.0
  %658 = vmatpush1.msra.mxu0 0.0
  %659 = vmatprep.subr.mxu0 0.0
  %660 = vmatpush1.msra.mxu0 0.0
  %661 = vmatprep.subr.mxu0 0.0
  %662 = vmatpush1.msra.mxu0 0.0
  %663 = vmatprep.subr.mxu0 0.0
  %664 = vmatpush1.msra.mxu0 0.0
  %665 = vmatprep.subr.mxu0 0.0
  %666 = vmatpush1.msra.mxu0 0.0
  %667 = vmatprep.subr.mxu0 0.0
  %668 = vmatpush1.msra.mxu0 0.0
  %669 = vmatprep.mubr.f32.mxu0 0.0
  %670 = vmatmul.mubr.f32.gmra.mrb[0].mxu0 %v603
  %v671 = vpop.f32.mrb[0].mxu0
  %v672 = vadd.f32 %v66, %v671
  %v673 = vpop.f32.mrb[0].mxu0
  %674 = vdwg.mxu0
  %vm675 = vcmask 261120
  %v677 = vsel %vm675, 0.0, 0
  %679 = vmatprep.subr.mxu0 0.0
  %680 = vmatpush1.msra.mxu0 %v49
  %681 = vmatprep.subr.mxu0 0.0
  %682 = vmatpush1.msra.mxu0 %v50
  %683 = vmatprep.subr.mxu0 0.0
  %684 = vmatpush1.msra.mxu0 %v51
  %685 = vmatprep.subr.mxu0 0.0
  %686 = vmatpush1.msra.mxu0 %v52
  %687 = vmatprep.subr.mxu0 0.0
  %688 = vmatpush1.msra.mxu0 0.0
  %689 = vmatprep.subr.mxu0 0.0
  %690 = vmatpush1.msra.mxu0 0.0
  %691 = vmatprep.subr.mxu0 0.0
  %692 = vmatpush1.msra.mxu0 0.0
  %693 = vmatprep.subr.mxu0 0.0
  %694 = vmatpush1.msra.mxu0 0.0
  %695 = vmatprep.subr.mxu0 0.0
  %696 = vmatpush1.msra.mxu0 0.0
  %697 = vmatprep.subr.mxu0 0.0
  %698 = vmatpush1.msra.mxu0 0.0
  %699 = vmatprep.subr.mxu0 0.0
  %700 = vmatpush1.msra.mxu0 0.0
  %701 = vmatprep.subr.mxu0 0.0
  %702 = vmatpush1.msra.mxu0 0.0
  %703 = vmatprep.subr.mxu0 0.0
  %704 = vmatpush1.msra.mxu0 0.0
  %705 = vmatprep.subr.mxu0 0.0
  %706 = vmatpush1.msra.mxu0 0.0
  %707 = vmatprep.subr.mxu0 0.0
  %708 = vmatpush1.msra.mxu0 0.0
  %709 = vmatprep.subr.mxu0 0.0
  %710 = vmatpush1.msra.mxu0 0.0
  %711 = vmatprep.subr.mxu0 0.0
  %712 = vmatpush1.msra.mxu0 0.0
  %713 = vmatprep.subr.mxu0 0.0
  %714 = vmatpush1.msra.mxu0 0.0
  %715 = vmatprep.subr.mxu0 0.0
  %716 = vmatpush1.msra.mxu0 0.0
  %717 = vmatprep.subr.mxu0 0.0
  %718 = vmatpush1.msra.mxu0 0.0
  %719 = vmatprep.subr.mxu0 0.0
  %720 = vmatpush1.msra.mxu0 0.0
  %721 = vmatprep.subr.mxu0 0.0
  %722 = vmatpush1.msra.mxu0 0.0
  %723 = vmatprep.subr.mxu0 0.0
  %724 = vmatpush1.msra.mxu0 0.0
  %725 = vmatprep.subr.mxu0 0.0
  %726 = vmatpush1.msra.mxu0 0.0
  %727 = vmatprep.subr.mxu0 0.0
  %728 = vmatpush1.msra.mxu0 0.0
  %729 = vmatprep.subr.mxu0 0.0
  %730 = vmatpush1.msra.mxu0 0.0
  %731 = vmatprep.subr.mxu0 0.0
  %732 = vmatpush1.msra.mxu0 0.0
  %733 = vmatprep.subr.mxu0 0.0
  %734 = vmatpush1.msra.mxu0 0.0
  %735 = vmatprep.subr.mxu0 0.0
  %736 = vmatpush1.msra.mxu0 0.0
  %737 = vmatprep.subr.mxu0 0.0
  %738 = vmatpush1.msra.mxu0 0.0
  %739 = vmatprep.subr.mxu0 0.0
  %740 = vmatpush1.msra.mxu0 0.0
  %741 = vmatprep.subr.mxu0 0.0
  %742 = vmatpush1.msra.mxu0 0.0
  %743 = vmatprep.mubr.f32.mxu0 0.0
  %744 = vmatmul.mubr.f32.gmra.mrb[0].mxu0 %v677
  %v745 = vpop.f32.mrb[0].mxu0
  %v746 = vadd.f32 0.0, %v745
  %v747 = vpop.f32.mrb[0].mxu0
  %748 = vdwg.mxu0
  %v749 = vadd.f32 %v147, %v746
  %v750 = vxor.u32 %v749, 2147483648
  %v751 = vmul.f32 %v750, 1.442695
  %v752 = vpow.pop %v751
  %v753 = vadd.f32 %v752, 1.0
  %v754 = vrcp.pop %v753
  %v755 = vmul.f32 1.0, %v754
  %v756 = vmul.f32 %v755, 2.0
  %v757 = vsub.f32 %v756, 1.0
  %v758 = vmul.f32 %v755, 0.0
  %760 = vrot.lane.b32.xlu0 %v757, 64
  %v761 = vpop.permute.xlu0 %760
  %v763 = vmul.f32 %v755, %v761
  %765 = vrot.lane.b32.xlu0 %v763, 32
  %v766 = vpop.permute.xlu0 %765
  %v768 = vadd.f32 %v758, %v766
  %v769 = vtanh.pop %v768
  %771 = vrot.lane.b32.xlu0 %v769, 64
  %v772 = vpop.permute.xlu0 %771
  %v774 = vmul.f32 %v755, %v772
  %775 = vmatprep.subr.mxu0 0.0
  %776 = vmatpush1.msra.mxu0 %v57
  %777 = vmatprep.subr.mxu0 0.0
  %778 = vmatpush1.msra.mxu0 %v58
  %779 = vmatprep.subr.mxu0 0.0
  %780 = vmatpush1.msra.mxu0 %v59
  %781 = vmatprep.subr.mxu0 0.0
  %782 = vmatpush1.msra.mxu0 %v60
  %783 = vmatprep.subr.mxu0 0.0
  %784 = vmatpush1.msra.mxu0 0.0
  %785 = vmatprep.subr.mxu0 0.0
  %786 = vmatpush1.msra.mxu0 0.0
  %787 = vmatprep.subr.mxu0 0.0
  %788 = vmatpush1.msra.mxu0 0.0
  %789 = vmatprep.subr.mxu0 0.0
  %790 = vmatpush1.msra.mxu0 0.0
  %791 = vmatprep.subr.mxu0 0.0
  %792 = vmatpush1.msra.mxu0 0.0
  %793 = vmatprep.subr.mxu0 0.0
  %794 = vmatpush1.msra.mxu0 0.0
  %795 = vmatprep.subr.mxu0 0.0
  %796 = vmatpush1.msra.mxu0 0.0
  %797 = vmatprep.subr.mxu0 0.0
  %798 = vmatpush1.msra.mxu0 0.0
  %799 = vmatprep.subr.mxu0 0.0
  %800 = vmatpush1.msra.mxu0 0.0
  %801 = vmatprep.subr.mxu0 0.0
  %802 = vmatpush1.msra.mxu0 0.0
  %803 = vmatprep.subr.mxu0 0.0
  %804 = vmatpush1.msra.mxu0 0.0
  %805 = vmatprep.subr.mxu0 0.0
  %806 = vmatpush1.msra.mxu0 0.0
  %807 = vmatprep.subr.mxu0 0.0
  %808 = vmatpush1.msra.mxu0 0.0
  %809 = vmatprep.subr.mxu0 0.0
  %810 = vmatpush1.msra.mxu0 0.0
  %811 = vmatprep.subr.mxu0 0.0
  %812 = vmatpush1.msra.mxu0 0.0
  %813 = vmatprep.subr.mxu0 0.0
  %814 = vmatpush1.msra.mxu0 0.0
  %815 = vmatprep.subr.mxu0 0.0
  %816 = vmatpush1.msra.mxu0 0.0
  %817 = vmatprep.subr.mxu0 0.0
  %818 = vmatpush1.msra.mxu0 0.0
  %819 = vmatprep.subr.mxu0 0.0
  %820 = vmatpush1.msra.mxu0 0.0
  %821 = vmatprep.subr.mxu0 0.0
  %822 = vmatpush1.msra.mxu0 0.0
  %823 = vmatprep.subr.mxu0 0.0
  %824 = vmatpush1.msra.mxu0 0.0
  %825 = vmatprep.subr.mxu0 0.0
  %826 = vmatpush1.msra.mxu0 0.0
  %827 = vmatprep.subr.mxu0 0.0
  %828 = vmatpush1.msra.mxu0 0.0
  %829 = vmatprep.subr.mxu0 0.0
  %830 = vmatpush1.msra.mxu0 0.0
  %831 = vmatprep.subr.mxu0 0.0
  %832 = vmatpush1.msra.mxu0 0.0
  %833 = vmatprep.subr.mxu0 0.0
  %834 = vmatpush1.msra.mxu0 0.0
  %835 = vmatprep.subr.mxu0 0.0
  %836 = vmatpush1.msra.mxu0 0.0
  %837 = vmatprep.subr.mxu0 0.0
  %838 = vmatpush1.msra.mxu0 0.0
  %839 = vmatprep.mubr.f32.mxu0 0.0
  %840 = vmatmul.mubr.f32.gmra.mrb[0].mxu0 %v677
  %v841 = vpop.f32.mrb[0].mxu0
  %v842 = vadd.f32 0.0, %v841
  %v843 = vpop.f32.mrb[0].mxu0
  %844 = vdwg.mxu0
  %846 = vrot.lane.b32.xlu0 %v774, 32
  %v847 = vpop.permute.xlu0 %846
  %v848 = vsel %vm675, %v847, 0
  %850 = vmatprep.subr.mxu0 0.0
  %851 = vmatpush1.msra.mxu0 %v53
  %852 = vmatprep.subr.mxu0 0.0
  %853 = vmatpush1.msra.mxu0 %v54
  %854 = vmatprep.subr.mxu0 0.0
  %855 = vmatpush1.msra.mxu0 %v55
  %856 = vmatprep.subr.mxu0 0.0
  %857 = vmatpush1.msra.mxu0 %v56
  %858 = vmatprep.subr.mxu0 0.0
  %859 = vmatpush1.msra.mxu0 0.0
  %860 = vmatprep.subr.mxu0 0.0
  %861 = vmatpush1.msra.mxu0 0.0
  %862 = vmatprep.subr.mxu0 0.0
  %863 = vmatpush1.msra.mxu0 0.0
  %864 = vmatprep.subr.mxu0 0.0
  %865 = vmatpush1.msra.mxu0 0.0
  %866 = vmatprep.subr.mxu0 0.0
  %867 = vmatpush1.msra.mxu0 0.0
  %868 = vmatprep.subr.mxu0 0.0
  %869 = vmatpush1.msra.mxu0 0.0
  %870 = vmatprep.subr.mxu0 0.0
  %871 = vmatpush1.msra.mxu0 0.0
  %872 = vmatprep.subr.mxu0 0.0
  %873 = vmatpush1.msra.mxu0 0.0
  %874 = vmatprep.subr.mxu0 0.0
  %875 = vmatpush1.msra.mxu0 0.0
  %876 = vmatprep.subr.mxu0 0.0
  %877 = vmatpush1.msra.mxu0 0.0
  %878 = vmatprep.subr.mxu0 0.0
  %879 = vmatpush1.msra.mxu0 0.0
  %880 = vmatprep.subr.mxu0 0.0
  %881 = vmatpush1.msra.mxu0 0.0
  %882 = vmatprep.subr.mxu0 0.0
  %883 = vmatpush1.msra.mxu0 0.0
  %884 = vmatprep.subr.mxu0 0.0
  %885 = vmatpush1.msra.mxu0 0.0
  %886 = vmatprep.subr.mxu0 0.0
  %887 = vmatpush1.msra.mxu0 0.0
  %888 = vmatprep.subr.mxu0 0.0
  %889 = vmatpush1.msra.mxu0 0.0
  %890 = vmatprep.subr.mxu0 0.0
  %891 = vmatpush1.msra.mxu0 0.0
  %892 = vmatprep.subr.mxu0 0.0
  %893 = vmatpush1.msra.mxu0 0.0
  %894 = vmatprep.subr.mxu0 0.0
  %895 = vmatpush1.msra.mxu0 0.0
  %896 = vmatprep.subr.mxu0 0.0
  %897 = vmatpush1.msra.mxu0 0.0
  %898 = vmatprep.subr.mxu0 0.0
  %899 = vmatpush1.msra.mxu0 0.0
  %900 = vmatprep.subr.mxu0 0.0
  %901 = vmatpush1.msra.mxu0 0.0
  %902 = vmatprep.subr.mxu0 0.0
  %903 = vmatpush1.msra.mxu0 0.0
  %904 = vmatprep.subr.mxu0 0.0
  %905 = vmatpush1.msra.mxu0 0.0
  %906 = vmatprep.subr.mxu0 0.0
  %907 = vmatpush1.msra.mxu0 0.0
  %908 = vmatprep.subr.mxu0 0.0
  %909 = vmatpush1.msra.mxu0 0.0
  %910 = vmatprep.subr.mxu0 0.0
  %911 = vmatpush1.msra.mxu0 0.0
  %912 = vmatprep.subr.mxu0 0.0
  %913 = vmatpush1.msra.mxu0 0.0
  %914 = vmatprep.mubr.f32.mxu0 0.0
  %915 = vmatmul.mubr.f32.gmra.mrb[0].mxu0 %v848
  %v916 = vpop.f32.mrb[0].mxu0
  %v917 = vadd.f32 %v842, %v916
  %v918 = vpop.f32.mrb[0].mxu0
  %919 = vdwg.mxu0
  %v920 = vadd.f32 %v917, %v73
  %v921 = vxor.u32 %v920, 2147483648
  %v922 = vmul.f32 %v921, 1.442695
  %v923 = vpow.pop %v922
  %v924 = vadd.f32 %v923, 1.0
  %v925 = vrcp.pop %v924
  %v926 = vmul.f32 1.0, %v925
  %v927 = vmul.f32 %v926, 2.0
  %v928 = vsub.f32 %v927, 1.0
  %v929 = vmul.f32 %v926, 0.0
  %931 = vrot.lane.b32.xlu0 %v928, 64
  %v932 = vpop.permute.xlu0 %931
  %v934 = vmul.f32 %v926, %v932
  %936 = vrot.lane.b32.xlu0 %v934, 32
  %v937 = vpop.permute.xlu0 %936
  %v939 = vadd.f32 %v929, %v937
  %v940 = vtanh.pop %v939
  %942 = vrot.lane.b32.xlu0 %v940, 64
  %v943 = vpop.permute.xlu0 %942
  %v945 = vmul.f32 %v926, %v943
  %946 = vmatprep.subr.mxu0 0.0
  %947 = vmatpush1.msra.mxu0 %v49
  %948 = vmatprep.subr.mxu0 0.0
  %949 = vmatpush1.msra.mxu0 %v50
  %950 = vmatprep.subr.mxu0 0.0
  %951 = vmatpush1.msra.mxu0 %v51
  %952 = vmatprep.subr.mxu0 0.0
  %953 = vmatpush1.msra.mxu0 %v52
  %954 = vmatprep.subr.mxu0 0.0
  %955 = vmatpush1.msra.mxu0 0.0
  %956 = vmatprep.subr.mxu0 0.0
  %957 = vmatpush1.msra.mxu0 0.0
  %958 = vmatprep.subr.mxu0 0.0
  %959 = vmatpush1.msra.mxu0 0.0
  %960 = vmatprep.subr.mxu0 0.0
  %961 = vmatpush1.msra.mxu0 0.0
  %962 = vmatprep.subr.mxu0 0.0
  %963 = vmatpush1.msra.mxu0 0.0
  %964 = vmatprep.subr.mxu0 0.0
  %965 = vmatpush1.msra.mxu0 0.0
  %966 = vmatprep.subr.mxu0 0.0
  %967 = vmatpush1.msra.mxu0 0.0
  %968 = vmatprep.subr.mxu0 0.0
  %969 = vmatpush1.msra.mxu0 0.0
  %970 = vmatprep.subr.mxu0 0.0
  %971 = vmatpush1.msra.mxu0 0.0
  %972 = vmatprep.subr.mxu0 0.0
  %973 = vmatpush1.msra.mxu0 0.0
  %974 = vmatprep.subr.mxu0 0.0
  %975 = vmatpush1.msra.mxu0 0.0
  %976 = vmatprep.subr.mxu0 0.0
  %977 = vmatpush1.msra.mxu0 0.0
  %978 = vmatprep.subr.mxu0 0.0
  %979 = vmatpush1.msra.mxu0 0.0
  %980 = vmatprep.subr.mxu0 0.0
  %981 = vmatpush1.msra.mxu0 0.0
  %982 = vmatprep.subr.mxu0 0.0
  %983 = vmatpush1.msra.mxu0 0.0
  %984 = vmatprep.subr.mxu0 0.0
  %985 = vmatpush1.msra.mxu0 0.0
  %986 = vmatprep.subr.mxu0 0.0
  %987 = vmatpush1.msra.mxu0 0.0
  %988 = vmatprep.subr.mxu0 0.0
  %989 = vmatpush1.msra.mxu0 0.0
  %990 = vmatprep.subr.mxu0 0.0
  %991 = vmatpush1.msra.mxu0 0.0
  %992 = vmatprep.subr.mxu0 0.0
  %993 = vmatpush1.msra.mxu0 0.0
  %994 = vmatprep.subr.mxu0 0.0
  %995 = vmatpush1.msra.mxu0 0.0
  %996 = vmatprep.subr.mxu0 0.0
  %997 = vmatpush1.msra.mxu0 0.0
  %998 = vmatprep.subr.mxu0 0.0
  %999 = vmatpush1.msra.mxu0 0.0
  %1000 = vmatprep.subr.mxu0 0.0
  %1001 = vmatpush1.msra.mxu0 0.0
  %1002 = vmatprep.subr.mxu0 0.0
  %1003 = vmatpush1.msra.mxu0 0.0
  %1004 = vmatprep.subr.mxu0 0.0
  %1005 = vmatpush1.msra.mxu0 0.0
  %1006 = vmatprep.subr.mxu0 0.0
  %1007 = vmatpush1.msra.mxu0 0.0
  %1008 = vmatprep.subr.mxu0 0.0
  %1009 = vmatpush1.msra.mxu0 0.0
  %1010 = vmatprep.mubr.f32.mxu0 0.0
  %1011 = vmatmul.mubr.f32.gmra.mrb[0].mxu0 %v848
  %v1012 = vpop.f32.mrb[0].mxu0
  %v1013 = vadd.f32 0.0, %v1012
  %v1014 = vpop.f32.mrb[0].mxu0
  %1015 = vdwg.mxu0
  %v1016 = vadd.f32 %v222, %v1013
  %v1017 = vxor.u32 %v1016, 2147483648
  %v1018 = vmul.f32 %v1017, 1.442695
  %v1019 = vpow.pop %v1018
  %v1020 = vadd.f32 %v1019, 1.0
  %v1021 = vrcp.pop %v1020
  %v1022 = vmul.f32 1.0, %v1021
  %v1023 = vmul.f32 %v1022, 2.0
  %v1024 = vsub.f32 %v1023, 1.0
  %v1025 = vmul.f32 %v768, %v1022
  %1027 = vrot.lane.b32.xlu0 %v1024, 64
  %v1028 = vpop.permute.xlu0 %1027
  %v1030 = vmul.f32 %v1022, %v1028
  %1032 = vrot.lane.b32.xlu0 %v1030, 32
  %v1033 = vpop.permute.xlu0 %1032
  %v1035 = vadd.f32 %v1025, %v1033
  %v1036 = vtanh.pop %v1035
  %1038 = vrot.lane.b32.xlu0 %v1036, 64
  %v1039 = vpop.permute.xlu0 %1038
  %v1041 = vmul.f32 %v1022, %v1039
  %1043 = vrot.lane.b32.xlu0 %v945, 32
  %v1044 = vpop.permute.xlu0 %1043
  %v1045 = vsel %vm675, %v1044, 0
  %1047 = vmatprep.subr.mxu0 0.0
  %1048 = vmatpush1.msra.mxu0 %v57
  %1049 = vmatprep.subr.mxu0 0.0
  %1050 = vmatpush1.msra.mxu0 %v58
  %1051 = vmatprep.subr.mxu0 0.0
  %1052 = vmatpush1.msra.mxu0 %v59
  %1053 = vmatprep.subr.mxu0 0.0
  %1054 = vmatpush1.msra.mxu0 %v60
  %1055 = vmatprep.subr.mxu0 0.0
  %1056 = vmatpush1.msra.mxu0 0.0
  %1057 = vmatprep.subr.mxu0 0.0
  %1058 = vmatpush1.msra.mxu0 0.0
  %1059 = vmatprep.subr.mxu0 0.0
  %1060 = vmatpush1.msra.mxu0 0.0
  %1061 = vmatprep.subr.mxu0 0.0
  %1062 = vmatpush1.msra.mxu0 0.0
  %1063 = vmatprep.subr.mxu0 0.0
  %1064 = vmatpush1.msra.mxu0 0.0
  %1065 = vmatprep.subr.mxu0 0.0
  %1066 = vmatpush1.msra.mxu0 0.0
  %1067 = vmatprep.subr.mxu0 0.0
  %1068 = vmatpush1.msra.mxu0 0.0
  %1069 = vmatprep.subr.mxu0 0.0
  %1070 = vmatpush1.msra.mxu0 0.0
  %1071 = vmatprep.subr.mxu0 0.0
  %1072 = vmatpush1.msra.mxu0 0.0
  %1073 = vmatprep.subr.mxu0 0.0
  %1074 = vmatpush1.msra.mxu0 0.0
  %1075 = vmatprep.subr.mxu0 0.0
  %1076 = vmatpush1.msra.mxu0 0.0
  %1077 = vmatprep.subr.mxu0 0.0
  %1078 = vmatpush1.msra.mxu0 0.0
  %1079 = vmatprep.subr.mxu0 0.0
  %1080 = vmatpush1.msra.mxu0 0.0
  %1081 = vmatprep.subr.mxu0 0.0
  %1082 = vmatpush1.msra.mxu0 0.0
  %1083 = vmatprep.subr.mxu0 0.0
  %1084 = vmatpush1.msra.mxu0 0.0
  %1085 = vmatprep.subr.mxu0 0.0
  %1086 = vmatpush1.msra.mxu0 0.0
  %1087 = vmatprep.subr.mxu0 0.0
  %1088 = vmatpush1.msra.mxu0 0.0
  %1089 = vmatprep.subr.mxu0 0.0
  %1090 = vmatpush1.msra.mxu0 0.0
  %1091 = vmatprep.subr.mxu0 0.0
  %1092 = vmatpush1.msra.mxu0 0.0
  %1093 = vmatprep.subr.mxu0 0.0
  %1094 = vmatpush1.msra.mxu0 0.0
  %1095 = vmatprep.subr.mxu0 0.0
  %1096 = vmatpush1.msra.mxu0 0.0
  %1097 = vmatprep.subr.mxu0 0.0
  %1098 = vmatpush1.msra.mxu0 0.0
  %1099 = vmatprep.subr.mxu0 0.0
  %1100 = vmatpush1.msra.mxu0 0.0
  %1101 = vmatprep.subr.mxu0 0.0
  %1102 = vmatpush1.msra.mxu0 0.0
  %1103 = vmatprep.subr.mxu0 0.0
  %1104 = vmatpush1.msra.mxu0 0.0
  %1105 = vmatprep.subr.mxu0 0.0
  %1106 = vmatpush1.msra.mxu0 0.0
  %1107 = vmatprep.subr.mxu0 0.0
  %1108 = vmatpush1.msra.mxu0 0.0
  %1109 = vmatprep.subr.mxu0 0.0
  %1110 = vmatpush1.msra.mxu0 0.0
  %1111 = vmatprep.mubr.f32.mxu0 0.0
  %1112 = vmatmul.mubr.f32.gmra.mrb[0].mxu0 %v1045
  %v1113 = vpop.f32.mrb[0].mxu0
  %v1114 = vadd.f32 0.0, %v1113
  %v1115 = vpop.f32.mrb[0].mxu0
  %1116 = vdwg.mxu0
  %1118 = vrot.lane.b32.xlu0 %v1041, 32
  %v1119 = vpop.permute.xlu0 %1118
  %v1120 = vsel %vm675, %v1119, 0
  %1122 = vmatprep.subr.mxu0 0.0
  %1123 = vmatpush1.msra.mxu0 %v53
  %1124 = vmatprep.subr.mxu0 0.0
  %1125 = vmatpush1.msra.mxu0 %v54
  %1126 = vmatprep.subr.mxu0 0.0
  %1127 = vmatpush1.msra.mxu0 %v55
  %1128 = vmatprep.subr.mxu0 0.0
  %1129 = vmatpush1.msra.mxu0 %v56
  %1130 = vmatprep.subr.mxu0 0.0
  %1131 = vmatpush1.msra.mxu0 0.0
  %1132 = vmatprep.subr.mxu0 0.0
  %1133 = vmatpush1.msra.mxu0 0.0
  %1134 = vmatprep.subr.mxu0 0.0
  %1135 = vmatpush1.msra.mxu0 0.0
  %1136 = vmatprep.subr.mxu0 0.0
  %1137 = vmatpush1.msra.mxu0 0.0
  %1138 = vmatprep.subr.mxu0 0.0
  %1139 = vmatpush1.msra.mxu0 0.0
  %1140 = vmatprep.subr.mxu0 0.0
  %1141 = vmatpush1.msra.mxu0 0.0
  %1142 = vmatprep.subr.mxu0 0.0
  %1143 = vmatpush1.msra.mxu0 0.0
  %1144 = vmatprep.subr.mxu0 0.0
  %1145 = vmatpush1.msra.mxu0 0.0
  %1146 = vmatprep.subr.mxu0 0.0
  %1147 = vmatpush1.msra.mxu0 0.0
  %1148 = vmatprep.subr.mxu0 0.0
  %1149 = vmatpush1.msra.mxu0 0.0
  %1150 = vmatprep.subr.mxu0 0.0
  %1151 = vmatpush1.msra.mxu0 0.0
  %1152 = vmatprep.subr.mxu0 0.0
  %1153 = vmatpush1.msra.mxu0 0.0
  %1154 = vmatprep.subr.mxu0 0.0
  %1155 = vmatpush1.msra.mxu0 0.0
  %1156 = vmatprep.subr.mxu0 0.0
  %1157 = vmatpush1.msra.mxu0 0.0
  %1158 = vmatprep.subr.mxu0 0.0
  %1159 = vmatpush1.msra.mxu0 0.0
  %1160 = vmatprep.subr.mxu0 0.0
  %1161 = vmatpush1.msra.mxu0 0.0
  %1162 = vmatprep.subr.mxu0 0.0
  %1163 = vmatpush1.msra.mxu0 0.0
  %1164 = vmatprep.subr.mxu0 0.0
  %1165 = vmatpush1.msra.mxu0 0.0
  %1166 = vmatprep.subr.mxu0 0.0
  %1167 = vmatpush1.msra.mxu0 0.0
  %1168 = vmatprep.subr.mxu0 0.0
  %1169 = vmatpush1.msra.mxu0 0.0
  %1170 = vmatprep.subr.mxu0 0.0
  %1171 = vmatpush1.msra.mxu0 0.0
  %1172 = vmatprep.subr.mxu0 0.0
  %1173 = vmatpush1.msra.mxu0 0.0
  %1174 = vmatprep.subr.mxu0 0.0
  %1175 = vmatpush1.msra.mxu0 0.0
  %1176 = vmatprep.subr.mxu0 0.0
  %1177 = vmatpush1.msra.mxu0 0.0
  %1178 = vmatprep.subr.mxu0 0.0
  %1179 = vmatpush1.msra.mxu0 0.0
  %1180 = vmatprep.subr.mxu0 0.0
  %1181 = vmatpush1.msra.mxu0 0.0
  %1182 = vmatprep.subr.mxu0 0.0
  %1183 = vmatpush1.msra.mxu0 0.0
  %1184 = vmatprep.subr.mxu0 0.0
  %1185 = vmatpush1.msra.mxu0 0.0
  %1186 = vmatprep.mubr.f32.mxu0 0.0
  %1187 = vmatmul.mubr.f32.gmra.mrb[0].mxu0 %v1120
  %v1188 = vpop.f32.mrb[0].mxu0
  %v1189 = vadd.f32 %v1114, %v1188
  %v1190 = vpop.f32.mrb[0].mxu0
  %1191 = vdwg.mxu0
  %v1192 = vadd.f32 %v1189, %v73
  %v1193 = vxor.u32 %v1192, 2147483648
  %v1194 = vmul.f32 %v1193, 1.442695
  %v1195 = vpow.pop %v1194
  %v1196 = vadd.f32 %v1195, 1.0
  %v1197 = vrcp.pop %v1196
  %v1198 = vmul.f32 1.0, %v1197
  %v1199 = vmul.f32 %v1198, 2.0
  %v1200 = vsub.f32 %v1199, 1.0
  %v1201 = vmul.f32 %v939, %v1198
  %1203 = vrot.lane.b32.xlu0 %v1200, 64
  %v1204 = vpop.permute.xlu0 %1203
  %v1206 = vmul.f32 %v1198, %v1204
  %1208 = vrot.lane.b32.xlu0 %v1206, 32
  %v1209 = vpop.permute.xlu0 %1208
  %v1211 = vadd.f32 %v1201, %v1209
  %v1212 = vtanh.pop %v1211
  %1214 = vrot.lane.b32.xlu0 %v1212, 64
  %v1215 = vpop.permute.xlu0 %1214
  %v1217 = vmul.f32 %v1198, %v1215
  %1218 = vmatprep.subr.mxu0 0.0
  %1219 = vmatpush1.msra.mxu0 %v49
  %1220 = vmatprep.subr.mxu0 0.0
  %1221 = vmatpush1.msra.mxu0 %v50
  %1222 = vmatprep.subr.mxu0 0.0
  %1223 = vmatpush1.msra.mxu0 %v51
  %1224 = vmatprep.subr.mxu0 0.0
  %1225 = vmatpush1.msra.mxu0 %v52
  %1226 = vmatprep.subr.mxu0 0.0
  %1227 = vmatpush1.msra.mxu0 0.0
  %1228 = vmatprep.subr.mxu0 0.0
  %1229 = vmatpush1.msra.mxu0 0.0
  %1230 = vmatprep.subr.mxu0 0.0
  %1231 = vmatpush1.msra.mxu0 0.0
  %1232 = vmatprep.subr.mxu0 0.0
  %1233 = vmatpush1.msra.mxu0 0.0
  %1234 = vmatprep.subr.mxu0 0.0
  %1235 = vmatpush1.msra.mxu0 0.0
  %1236 = vmatprep.subr.mxu0 0.0
  %1237 = vmatpush1.msra.mxu0 0.0
  %1238 = vmatprep.subr.mxu0 0.0
  %1239 = vmatpush1.msra.mxu0 0.0
  %1240 = vmatprep.subr.mxu0 0.0
  %1241 = vmatpush1.msra.mxu0 0.0
  %1242 = vmatprep.subr.mxu0 0.0
  %1243 = vmatpush1.msra.mxu0 0.0
  %1244 = vmatprep.subr.mxu0 0.0
  %1245 = vmatpush1.msra.mxu0 0.0
  %1246 = vmatprep.subr.mxu0 0.0
  %1247 = vmatpush1.msra.mxu0 0.0
  %1248 = vmatprep.subr.mxu0 0.0
  %1249 = vmatpush1.msra.mxu0 0.0
  %1250 = vmatprep.subr.mxu0 0.0
  %1251 = vmatpush1.msra.mxu0 0.0
  %1252 = vmatprep.subr.mxu0 0.0
  %1253 = vmatpush1.msra.mxu0 0.0
  %1254 = vmatprep.subr.mxu0 0.0
  %1255 = vmatpush1.msra.mxu0 0.0
  %1256 = vmatprep.subr.mxu0 0.0
  %1257 = vmatpush1.msra.mxu0 0.0
  %1258 = vmatprep.subr.mxu0 0.0
  %1259 = vmatpush1.msra.mxu0 0.0
  %1260 = vmatprep.subr.mxu0 0.0
  %1261 = vmatpush1.msra.mxu0 0.0
  %1262 = vmatprep.subr.mxu0 0.0
  %1263 = vmatpush1.msra.mxu0 0.0
  %1264 = vmatprep.subr.mxu0 0.0
  %1265 = vmatpush1.msra.mxu0 0.0
  %1266 = vmatprep.subr.mxu0 0.0
  %1267 = vmatpush1.msra.mxu0 0.0
  %1268 = vmatprep.subr.mxu0 0.0
  %1269 = vmatpush1.msra.mxu0 0.0
  %1270 = vmatprep.subr.mxu0 0.0
  %1271 = vmatpush1.msra.mxu0 0.0
  %1272 = vmatprep.subr.mxu0 0.0
  %1273 = vmatpush1.msra.mxu0 0.0
  %1274 = vmatprep.subr.mxu0 0.0
  %1275 = vmatpush1.msra.mxu0 0.0
  %1276 = vmatprep.subr.mxu0 0.0
  %1277 = vmatpush1.msra.mxu0 0.0
  %1278 = vmatprep.subr.mxu0 0.0
  %1279 = vmatpush1.msra.mxu0 0.0
  %1280 = vmatprep.subr.mxu0 0.0
  %1281 = vmatpush1.msra.mxu0 0.0
  %1282 = vmatprep.mubr.f32.mxu0 0.0
  %1283 = vmatmul.mubr.f32.gmra.mrb[0].mxu0 %v1120
  %v1284 = vpop.f32.mrb[0].mxu0
  %v1285 = vadd.f32 0.0, %v1284
  %v1286 = vpop.f32.mrb[0].mxu0
  %1287 = vdwg.mxu0
  %v1288 = vadd.f32 %v297, %v1285
  %v1289 = vxor.u32 %v1288, 2147483648
  %v1290 = vmul.f32 %v1289, 1.442695
  %v1291 = vpow.pop %v1290
  %v1292 = vadd.f32 %v1291, 1.0
  %v1293 = vrcp.pop %v1292
  %v1294 = vmul.f32 1.0, %v1293
  %v1295 = vmul.f32 %v1294, 2.0
  %v1296 = vsub.f32 %v1295, 1.0
  %v1297 = vmul.f32 %v1035, %v1294
  %1299 = vrot.lane.b32.xlu0 %v1296, 64
  %v1300 = vpop.permute.xlu0 %1299
  %v1302 = vmul.f32 %v1294, %v1300
  %1304 = vrot.lane.b32.xlu0 %v1302, 32
  %v1305 = vpop.permute.xlu0 %1304
  %v1307 = vadd.f32 %v1297, %v1305
  %v1308 = vtanh.pop %v1307
  %1310 = vrot.lane.b32.xlu0 %v1308, 64
  %v1311 = vpop.permute.xlu0 %1310
  %v1313 = vmul.f32 %v1294, %v1311
  %1315 = vrot.lane.b32.xlu0 %v1217, 32
  %v1316 = vpop.permute.xlu0 %1315
  %v1317 = vsel %vm675, %v1316, 0
  %1319 = vmatprep.subr.mxu0 0.0
  %1320 = vmatpush1.msra.mxu0 %v57
  %1321 = vmatprep.subr.mxu0 0.0
  %1322 = vmatpush1.msra.mxu0 %v58
  %1323 = vmatprep.subr.mxu0 0.0
  %1324 = vmatpush1.msra.mxu0 %v59
  %1325 = vmatprep.subr.mxu0 0.0
  %1326 = vmatpush1.msra.mxu0 %v60
  %1327 = vmatprep.subr.mxu0 0.0
  %1328 = vmatpush1.msra.mxu0 0.0
  %1329 = vmatprep.subr.mxu0 0.0
  %1330 = vmatpush1.msra.mxu0 0.0
  %1331 = vmatprep.subr.mxu0 0.0
  %1332 = vmatpush1.msra.mxu0 0.0
  %1333 = vmatprep.subr.mxu0 0.0
  %1334 = vmatpush1.msra.mxu0 0.0
  %1335 = vmatprep.subr.mxu0 0.0
  %1336 = vmatpush1.msra.mxu0 0.0
  %1337 = vmatprep.subr.mxu0 0.0
  %1338 = vmatpush1.msra.mxu0 0.0
  %1339 = vmatprep.subr.mxu0 0.0
  %1340 = vmatpush1.msra.mxu0 0.0
  %1341 = vmatprep.subr.mxu0 0.0
  %1342 = vmatpush1.msra.mxu0 0.0
  %1343 = vmatprep.subr.mxu0 0.0
  %1344 = vmatpush1.msra.mxu0 0.0
  %1345 = vmatprep.subr.mxu0 0.0
  %1346 = vmatpush1.msra.mxu0 0.0
  %1347 = vmatprep.subr.mxu0 0.0
  %1348 = vmatpush1.msra.mxu0 0.0
  %1349 = vmatprep.subr.mxu0 0.0
  %1350 = vmatpush1.msra.mxu0 0.0
  %1351 = vmatprep.subr.mxu0 0.0
  %1352 = vmatpush1.msra.mxu0 0.0
  %1353 = vmatprep.subr.mxu0 0.0
  %1354 = vmatpush1.msra.mxu0 0.0
  %1355 = vmatprep.subr.mxu0 0.0
  %1356 = vmatpush1.msra.mxu0 0.0
  %1357 = vmatprep.subr.mxu0 0.0
  %1358 = vmatpush1.msra.mxu0 0.0
  %1359 = vmatprep.subr.mxu0 0.0
  %1360 = vmatpush1.msra.mxu0 0.0
  %1361 = vmatprep.subr.mxu0 0.0
  %1362 = vmatpush1.msra.mxu0 0.0
  %1363 = vmatprep.subr.mxu0 0.0
  %1364 = vmatpush1.msra.mxu0 0.0
  %1365 = vmatprep.subr.mxu0 0.0
  %1366 = vmatpush1.msra.mxu0 0.0
  %1367 = vmatprep.subr.mxu0 0.0
  %1368 = vmatpush1.msra.mxu0 0.0
  %1369 = vmatprep.subr.mxu0 0.0
  %1370 = vmatpush1.msra.mxu0 0.0
  %1371 = vmatprep.subr.mxu0 0.0
  %1372 = vmatpush1.msra.mxu0 0.0
  %1373 = vmatprep.subr.mxu0 0.0
  %1374 = vmatpush1.msra.mxu0 0.0
  %1375 = vmatprep.subr.mxu0 0.0
  %1376 = vmatpush1.msra.mxu0 0.0
  %1377 = vmatprep.subr.mxu0 0.0
  %1378 = vmatpush1.msra.mxu0 0.0
  %1379 = vmatprep.subr.mxu0 0.0
  %1380 = vmatpush1.msra.mxu0 0.0
  %1381 = vmatprep.subr.mxu0 0.0
  %1382 = vmatpush1.msra.mxu0 0.0
  %1383 = vmatprep.mubr.f32.mxu0 0.0
  %1384 = vmatmul.mubr.f32.gmra.mrb[0].mxu0 %v1317
  %v1385 = vpop.f32.mrb[0].mxu0
  %v1386 = vadd.f32 0.0, %v1385
  %v1387 = vpop.f32.mrb[0].mxu0
  %1388 = vdwg.mxu0
  %1390 = vrot.lane.b32.xlu0 %v1313, 32
  %v1391 = vpop.permute.xlu0 %1390
  %v1392 = vsel %vm675, %v1391, 0
  %1394 = vmatprep.subr.mxu0 0.0
  %1395 = vmatpush1.msra.mxu0 %v53
  %1396 = vmatprep.subr.mxu0 0.0
  %1397 = vmatpush1.msra.mxu0 %v54
  %1398 = vmatprep.subr.mxu0 0.0
  %1399 = vmatpush1.msra.mxu0 %v55
  %1400 = vmatprep.subr.mxu0 0.0
  %1401 = vmatpush1.msra.mxu0 %v56
  %1402 = vmatprep.subr.mxu0 0.0
  %1403 = vmatpush1.msra.mxu0 0.0
  %1404 = vmatprep.subr.mxu0 0.0
  %1405 = vmatpush1.msra.mxu0 0.0
  %1406 = vmatprep.subr.mxu0 0.0
  %1407 = vmatpush1.msra.mxu0 0.0
  %1408 = vmatprep.subr.mxu0 0.0
  %1409 = vmatpush1.msra.mxu0 0.0
  %1410 = vmatprep.subr.mxu0 0.0
  %1411 = vmatpush1.msra.mxu0 0.0
  %1412 = vmatprep.subr.mxu0 0.0
  %1413 = vmatpush1.msra.mxu0 0.0
  %1414 = vmatprep.subr.mxu0 0.0
  %1415 = vmatpush1.msra.mxu0 0.0
  %1416 = vmatprep.subr.mxu0 0.0
  %1417 = vmatpush1.msra.mxu0 0.0
  %1418 = vmatprep.subr.mxu0 0.0
  %1419 = vmatpush1.msra.mxu0 0.0
  %1420 = vmatprep.subr.mxu0 0.0
  %1421 = vmatpush1.msra.mxu0 0.0
  %1422 = vmatprep.subr.mxu0 0.0
  %1423 = vmatpush1.msra.mxu0 0.0
  %1424 = vmatprep.subr.mxu0 0.0
  %1425 = vmatpush1.msra.mxu0 0.0
  %1426 = vmatprep.subr.mxu0 0.0
  %1427 = vmatpush1.msra.mxu0 0.0
  %1428 = vmatprep.subr.mxu0 0.0
  %1429 = vmatpush1.msra.mxu0 0.0
  %1430 = vmatprep.subr.mxu0 0.0
  %1431 = vmatpush1.msra.mxu0 0.0
  %1432 = vmatprep.subr.mxu0 0.0
  %1433 = vmatpush1.msra.mxu0 0.0
  %1434 = vmatprep.subr.mxu0 0.0
  %1435 = vmatpush1.msra.mxu0 0.0
  %1436 = vmatprep.subr.mxu0 0.0
  %1437 = vmatpush1.msra.mxu0 0.0
  %1438 = vmatprep.subr.mxu0 0.0
  %1439 = vmatpush1.msra.mxu0 0.0
  %1440 = vmatprep.subr.mxu0 0.0
  %1441 = vmatpush1.msra.mxu0 0.0
  %1442 = vmatprep.subr.mxu0 0.0
  %1443 = vmatpush1.msra.mxu0 0.0
  %1444 = vmatprep.subr.mxu0 0.0
  %1445 = vmatpush1.msra.mxu0 0.0
  %1446 = vmatprep.subr.mxu0 0.0
  %1447 = vmatpush1.msra.mxu0 0.0
  %1448 = vmatprep.subr.mxu0 0.0
  %1449 = vmatpush1.msra.mxu0 0.0
  %1450 = vmatprep.subr.mxu0 0.0
  %1451 = vmatpush1.msra.mxu0 0.0
  %1452 = vmatprep.subr.mxu0 0.0
  %1453 = vmatpush1.msra.mxu0 0.0
  %1454 = vmatprep.subr.mxu0 0.0
  %1455 = vmatpush1.msra.mxu0 0.0
  %1456 = vmatprep.subr.mxu0 0.0
  %1457 = vmatpush1.msra.mxu0 0.0
  %1458 = vmatprep.mubr.f32.mxu0 0.0
  %1459 = vmatmul.mubr.f32.gmra.mrb[0].mxu0 %v1392
  %v1460 = vpop.f32.mrb[0].mxu0
  %v1461 = vadd.f32 %v1386, %v1460
  %v1462 = vpop.f32.mrb[0].mxu0
  %1463 = vdwg.mxu0
  %v1464 = vadd.f32 %v1461, %v73
  %v1465 = vxor.u32 %v1464, 2147483648
  %v1466 = vmul.f32 %v1465, 1.442695
  %v1467 = vpow.pop %v1466
  %v1468 = vadd.f32 %v1467, 1.0
  %v1469 = vrcp.pop %v1468
  %v1470 = vmul.f32 1.0, %v1469
  %v1471 = vmul.f32 %v1470, 2.0
  %v1472 = vsub.f32 %v1471, 1.0
  %v1473 = vmul.f32 %v1211, %v1470
  %1475 = vrot.lane.b32.xlu0 %v1472, 64
  %v1476 = vpop.permute.xlu0 %1475
  %v1478 = vmul.f32 %v1470, %v1476
  %1480 = vrot.lane.b32.xlu0 %v1478, 32
  %v1481 = vpop.permute.xlu0 %1480
  %v1483 = vadd.f32 %v1473, %v1481
  %v1484 = vtanh.pop %v1483
  %1486 = vrot.lane.b32.xlu0 %v1484, 64
  %v1487 = vpop.permute.xlu0 %1486
  %v1489 = vmul.f32 %v1470, %v1487
  %1490 = vmatprep.subr.mxu0 0.0
  %1491 = vmatpush1.msra.mxu0 %v49
  %1492 = vmatprep.subr.mxu0 0.0
  %1493 = vmatpush1.msra.mxu0 %v50
  %1494 = vmatprep.subr.mxu0 0.0
  %1495 = vmatpush1.msra.mxu0 %v51
  %1496 = vmatprep.subr.mxu0 0.0
  %1497 = vmatpush1.msra.mxu0 %v52
  %1498 = vmatprep.subr.mxu0 0.0
  %1499 = vmatpush1.msra.mxu0 0.0
  %1500 = vmatprep.subr.mxu0 0.0
  %1501 = vmatpush1.msra.mxu0 0.0
  %1502 = vmatprep.subr.mxu0 0.0
  %1503 = vmatpush1.msra.mxu0 0.0
  %1504 = vmatprep.subr.mxu0 0.0
  %1505 = vmatpush1.msra.mxu0 0.0
  %1506 = vmatprep.subr.mxu0 0.0
  %1507 = vmatpush1.msra.mxu0 0.0
  %1508 = vmatprep.subr.mxu0 0.0
  %1509 = vmatpush1.msra.mxu0 0.0
  %1510 = vmatprep.subr.mxu0 0.0
  %1511 = vmatpush1.msra.mxu0 0.0
  %1512 = vmatprep.subr.mxu0 0.0
  %1513 = vmatpush1.msra.mxu0 0.0
  %1514 = vmatprep.subr.mxu0 0.0
  %1515 = vmatpush1.msra.mxu0 0.0
  %1516 = vmatprep.subr.mxu0 0.0
  %1517 = vmatpush1.msra.mxu0 0.0
  %1518 = vmatprep.subr.mxu0 0.0
  %1519 = vmatpush1.msra.mxu0 0.0
  %1520 = vmatprep.subr.mxu0 0.0
  %1521 = vmatpush1.msra.mxu0 0.0
  %1522 = vmatprep.subr.mxu0 0.0
  %1523 = vmatpush1.msra.mxu0 0.0
  %1524 = vmatprep.subr.mxu0 0.0
  %1525 = vmatpush1.msra.mxu0 0.0
  %1526 = vmatprep.subr.mxu0 0.0
  %1527 = vmatpush1.msra.mxu0 0.0
  %1528 = vmatprep.subr.mxu0 0.0
  %1529 = vmatpush1.msra.mxu0 0.0
  %1530 = vmatprep.subr.mxu0 0.0
  %1531 = vmatpush1.msra.mxu0 0.0
  %1532 = vmatprep.subr.mxu0 0.0
  %1533 = vmatpush1.msra.mxu0 0.0
  %1534 = vmatprep.subr.mxu0 0.0
  %1535 = vmatpush1.msra.mxu0 0.0
  %1536 = vmatprep.subr.mxu0 0.0
  %1537 = vmatpush1.msra.mxu0 0.0
  %1538 = vmatprep.subr.mxu0 0.0
  %1539 = vmatpush1.msra.mxu0 0.0
  %1540 = vmatprep.subr.mxu0 0.0
  %1541 = vmatpush1.msra.mxu0 0.0
  %1542 = vmatprep.subr.mxu0 0.0
  %1543 = vmatpush1.msra.mxu0 0.0
  %1544 = vmatprep.subr.mxu0 0.0
  %1545 = vmatpush1.msra.mxu0 0.0
  %1546 = vmatprep.subr.mxu0 0.0
  %1547 = vmatpush1.msra.mxu0 0.0
  %1548 = vmatprep.subr.mxu0 0.0
  %1549 = vmatpush1.msra.mxu0 0.0
  %1550 = vmatprep.subr.mxu0 0.0
  %1551 = vmatpush1.msra.mxu0 0.0
  %1552 = vmatprep.subr.mxu0 0.0
  %1553 = vmatpush1.msra.mxu0 0.0
  %1554 = vmatprep.mubr.f32.mxu0 0.0
  %1555 = vmatmul.mubr.f32.gmra.mrb[0].mxu0 %v1392
  %v1556 = vpop.f32.mrb[0].mxu0
  %v1557 = vadd.f32 0.0, %v1556
  %v1558 = vpop.f32.mrb[0].mxu0
  %1559 = vdwg.mxu0
  %v1560 = vadd.f32 %v372, %v1557
  %v1561 = vxor.u32 %v1560, 2147483648
  %v1562 = vmul.f32 %v1561, 1.442695
  %v1563 = vpow.pop %v1562
  %v1564 = vadd.f32 %v1563, 1.0
  %v1565 = vrcp.pop %v1564
  %v1566 = vmul.f32 1.0, %v1565
  %v1567 = vmul.f32 %v1566, 2.0
  %v1568 = vsub.f32 %v1567, 1.0
  %v1569 = vmul.f32 %v1307, %v1566
  %1571 = vrot.lane.b32.xlu0 %v1568, 64
  %v1572 = vpop.permute.xlu0 %1571
  %v1574 = vmul.f32 %v1566, %v1572
  %1576 = vrot.lane.b32.xlu0 %v1574, 32
  %v1577 = vpop.permute.xlu0 %1576
  %v1579 = vadd.f32 %v1569, %v1577
  %v1580 = vtanh.pop %v1579
  %1582 = vrot.lane.b32.xlu0 %v1580, 64
  %v1583 = vpop.permute.xlu0 %1582
  %v1585 = vmul.f32 %v1566, %v1583
  %1587 = vrot.lane.b32.xlu0 %v1489, 32
  %v1588 = vpop.permute.xlu0 %1587
  %v1589 = vsel %vm675, %v1588, 0
  %1591 = vmatprep.subr.mxu0 0.0
  %1592 = vmatpush1.msra.mxu0 %v57
  %1593 = vmatprep.subr.mxu0 0.0
  %1594 = vmatpush1.msra.mxu0 %v58
  %1595 = vmatprep.subr.mxu0 0.0
  %1596 = vmatpush1.msra.mxu0 %v59
  %1597 = vmatprep.subr.mxu0 0.0
  %1598 = vmatpush1.msra.mxu0 %v60
  %1599 = vmatprep.subr.mxu0 0.0
  %1600 = vmatpush1.msra.mxu0 0.0
  %1601 = vmatprep.subr.mxu0 0.0
  %1602 = vmatpush1.msra.mxu0 0.0
  %1603 = vmatprep.subr.mxu0 0.0
  %1604 = vmatpush1.msra.mxu0 0.0
  %1605 = vmatprep.subr.mxu0 0.0
  %1606 = vmatpush1.msra.mxu0 0.0
  %1607 = vmatprep.subr.mxu0 0.0
  %1608 = vmatpush1.msra.mxu0 0.0
  %1609 = vmatprep.subr.mxu0 0.0
  %1610 = vmatpush1.msra.mxu0 0.0
  %1611 = vmatprep.subr.mxu0 0.0
  %1612 = vmatpush1.msra.mxu0 0.0
  %1613 = vmatprep.subr.mxu0 0.0
  %1614 = vmatpush1.msra.mxu0 0.0
  %1615 = vmatprep.subr.mxu0 0.0
  %1616 = vmatpush1.msra.mxu0 0.0
  %1617 = vmatprep.subr.mxu0 0.0
  %1618 = vmatpush1.msra.mxu0 0.0
  %1619 = vmatprep.subr.mxu0 0.0
  %1620 = vmatpush1.msra.mxu0 0.0
  %1621 = vmatprep.subr.mxu0 0.0
  %1622 = vmatpush1.msra.mxu0 0.0
  %1623 = vmatprep.subr.mxu0 0.0
  %1624 = vmatpush1.msra.mxu0 0.0
  %1625 = vmatprep.subr.mxu0 0.0
  %1626 = vmatpush1.msra.mxu0 0.0
  %1627 = vmatprep.subr.mxu0 0.0
  %1628 = vmatpush1.msra.mxu0 0.0
  %1629 = vmatprep.subr.mxu0 0.0
  %1630 = vmatpush1.msra.mxu0 0.0
  %1631 = vmatprep.subr.mxu0 0.0
  %1632 = vmatpush1.msra.mxu0 0.0
  %1633 = vmatprep.subr.mxu0 0.0
  %1634 = vmatpush1.msra.mxu0 0.0
  %1635 = vmatprep.subr.mxu0 0.0
  %1636 = vmatpush1.msra.mxu0 0.0
  %1637 = vmatprep.subr.mxu0 0.0
  %1638 = vmatpush1.msra.mxu0 0.0
  %1639 = vmatprep.subr.mxu0 0.0
  %1640 = vmatpush1.msra.mxu0 0.0
  %1641 = vmatprep.subr.mxu0 0.0
  %1642 = vmatpush1.msra.mxu0 0.0
  %1643 = vmatprep.subr.mxu0 0.0
  %1644 = vmatpush1.msra.mxu0 0.0
  %1645 = vmatprep.subr.mxu0 0.0
  %1646 = vmatpush1.msra.mxu0 0.0
  %1647 = vmatprep.subr.mxu0 0.0
  %1648 = vmatpush1.msra.mxu0 0.0
  %1649 = vmatprep.subr.mxu0 0.0
  %1650 = vmatpush1.msra.mxu0 0.0
  %1651 = vmatprep.subr.mxu0 0.0
  %1652 = vmatpush1.msra.mxu0 0.0
  %1653 = vmatprep.subr.mxu0 0.0
  %1654 = vmatpush1.msra.mxu0 0.0
  %1655 = vmatprep.mubr.f32.mxu0 0.0
  %1656 = vmatmul.mubr.f32.gmra.mrb[0].mxu0 %v1589
  %v1657 = vpop.f32.mrb[0].mxu0
  %v1658 = vadd.f32 0.0, %v1657
  %v1659 = vpop.f32.mrb[0].mxu0
  %1660 = vdwg.mxu0
  %1662 = vrot.lane.b32.xlu0 %v1585, 32
  %v1663 = vpop.permute.xlu0 %1662
  %v1664 = vsel %vm675, %v1663, 0
  %1666 = vmatprep.subr.mxu0 0.0
  %1667 = vmatpush1.msra.mxu0 %v53
  %1668 = vmatprep.subr.mxu0 0.0
  %1669 = vmatpush1.msra.mxu0 %v54
  %1670 = vmatprep.subr.mxu0 0.0
  %1671 = vmatpush1.msra.mxu0 %v55
  %1672 = vmatprep.subr.mxu0 0.0
  %1673 = vmatpush1.msra.mxu0 %v56
  %1674 = vmatprep.subr.mxu0 0.0
  %1675 = vmatpush1.msra.mxu0 0.0
  %1676 = vmatprep.subr.mxu0 0.0
  %1677 = vmatpush1.msra.mxu0 0.0
  %1678 = vmatprep.subr.mxu0 0.0
  %1679 = vmatpush1.msra.mxu0 0.0
  %1680 = vmatprep.subr.mxu0 0.0
  %1681 = vmatpush1.msra.mxu0 0.0
  %1682 = vmatprep.subr.mxu0 0.0
  %1683 = vmatpush1.msra.mxu0 0.0
  %1684 = vmatprep.subr.mxu0 0.0
  %1685 = vmatpush1.msra.mxu0 0.0
  %1686 = vmatprep.subr.mxu0 0.0
  %1687 = vmatpush1.msra.mxu0 0.0
  %1688 = vmatprep.subr.mxu0 0.0
  %1689 = vmatpush1.msra.mxu0 0.0
  %1690 = vmatprep.subr.mxu0 0.0
  %1691 = vmatpush1.msra.mxu0 0.0
  %1692 = vmatprep.subr.mxu0 0.0
  %1693 = vmatpush1.msra.mxu0 0.0
  %1694 = vmatprep.subr.mxu0 0.0
  %1695 = vmatpush1.msra.mxu0 0.0
  %1696 = vmatprep.subr.mxu0 0.0
  %1697 = vmatpush1.msra.mxu0 0.0
  %1698 = vmatprep.subr.mxu0 0.0
  %1699 = vmatpush1.msra.mxu0 0.0
  %1700 = vmatprep.subr.mxu0 0.0
  %1701 = vmatpush1.msra.mxu0 0.0
  %1702 = vmatprep.subr.mxu0 0.0
  %1703 = vmatpush1.msra.mxu0 0.0
  %1704 = vmatprep.subr.mxu0 0.0
  %1705 = vmatpush1.msra.mxu0 0.0
  %1706 = vmatprep.subr.mxu0 0.0
  %1707 = vmatpush1.msra.mxu0 0.0
  %1708 = vmatprep.subr.mxu0 0.0
  %1709 = vmatpush1.msra.mxu0 0.0
  %1710 = vmatprep.subr.mxu0 0.0
  %1711 = vmatpush1.msra.mxu0 0.0
  %1712 = vmatprep.subr.mxu0 0.0
  %1713 = vmatpush1.msra.mxu0 0.0
  %1714 = vmatprep.subr.mxu0 0.0
  %1715 = vmatpush1.msra.mxu0 0.0
  %1716 = vmatprep.subr.mxu0 0.0
  %1717 = vmatpush1.msra.mxu0 0.0
  %1718 = vmatprep.subr.mxu0 0.0
  %1719 = vmatpush1.msra.mxu0 0.0
  %1720 = vmatprep.subr.mxu0 0.0
  %1721 = vmatpush1.msra.mxu0 0.0
  %1722 = vmatprep.subr.mxu0 0.0
  %1723 = vmatpush1.msra.mxu0 0.0
  %1724 = vmatprep.subr.mxu0 0.0
  %1725 = vmatpush1.msra.mxu0 0.0
  %1726 = vmatprep.subr.mxu0 0.0
  %1727 = vmatpush1.msra.mxu0 0.0
  %1728 = vmatprep.subr.mxu0 0.0
  %1729 = vmatpush1.msra.mxu0 0.0
  %1730 = vmatprep.mubr.f32.mxu0 0.0
  %1731 = vmatmul.mubr.f32.gmra.mrb[0].mxu0 %v1664
  %v1732 = vpop.f32.mrb[0].mxu0
  %v1733 = vadd.f32 %v1658, %v1732
  %v1734 = vpop.f32.mrb[0].mxu0
  %1735 = vdwg.mxu0
  %v1736 = vadd.f32 %v1733, %v73
  %v1737 = vxor.u32 %v1736, 2147483648
  %v1738 = vmul.f32 %v1737, 1.442695
  %v1739 = vpow.pop %v1738
  %v1740 = vadd.f32 %v1739, 1.0
  %v1741 = vrcp.pop %v1740
  %v1742 = vmul.f32 1.0, %v1741
  %v1743 = vmul.f32 %v1742, 2.0
  %v1744 = vsub.f32 %v1743, 1.0
  %v1745 = vmul.f32 %v1483, %v1742
  %1747 = vrot.lane.b32.xlu0 %v1744, 64
  %v1748 = vpop.permute.xlu0 %1747
  %v1750 = vmul.f32 %v1742, %v1748
  %1752 = vrot.lane.b32.xlu0 %v1750, 32
  %v1753 = vpop.permute.xlu0 %1752
  %v1755 = vadd.f32 %v1745, %v1753
  %v1756 = vtanh.pop %v1755
  %1758 = vrot.lane.b32.xlu0 %v1756, 64
  %v1759 = vpop.permute.xlu0 %1758
  %v1761 = vmul.f32 %v1742, %v1759
  %1762 = vmatprep.subr.mxu0 0.0
  %1763 = vmatpush1.msra.mxu0 %v49
  %1764 = vmatprep.subr.mxu0 0.0
  %1765 = vmatpush1.msra.mxu0 %v50
  %1766 = vmatprep.subr.mxu0 0.0
  %1767 = vmatpush1.msra.mxu0 %v51
  %1768 = vmatprep.subr.mxu0 0.0
  %1769 = vmatpush1.msra.mxu0 %v52
  %1770 = vmatprep.subr.mxu0 0.0
  %1771 = vmatpush1.msra.mxu0 0.0
  %1772 = vmatprep.subr.mxu0 0.0
  %1773 = vmatpush1.msra.mxu0 0.0
  %1774 = vmatprep.subr.mxu0 0.0
  %1775 = vmatpush1.msra.mxu0 0.0
  %1776 = vmatprep.subr.mxu0 0.0
  %1777 = vmatpush1.msra.mxu0 0.0
  %1778 = vmatprep.subr.mxu0 0.0
  %1779 = vmatpush1.msra.mxu0 0.0
  %1780 = vmatprep.subr.mxu0 0.0
  %1781 = vmatpush1.msra.mxu0 0.0
  %1782 = vmatprep.subr.mxu0 0.0
  %1783 = vmatpush1.msra.mxu0 0.0
  %1784 = vmatprep.subr.mxu0 0.0
  %1785 = vmatpush1.msra.mxu0 0.0
  %1786 = vmatprep.subr.mxu0 0.0
  %1787 = vmatpush1.msra.mxu0 0.0
  %1788 = vmatprep.subr.mxu0 0.0
  %1789 = vmatpush1.msra.mxu0 0.0
  %1790 = vmatprep.subr.mxu0 0.0
  %1791 = vmatpush1.msra.mxu0 0.0
  %1792 = vmatprep.subr.mxu0 0.0
  %1793 = vmatpush1.msra.mxu0 0.0
  %1794 = vmatprep.subr.mxu0 0.0
  %1795 = vmatpush1.msra.mxu0 0.0
  %1796 = vmatprep.subr.mxu0 0.0
  %1797 = vmatpush1.msra.mxu0 0.0
  %1798 = vmatprep.subr.mxu0 0.0
  %1799 = vmatpush1.msra.mxu0 0.0
  %1800 = vmatprep.subr.mxu0 0.0
  %1801 = vmatpush1.msra.mxu0 0.0
  %1802 = vmatprep.subr.mxu0 0.0
  %1803 = vmatpush1.msra.mxu0 0.0
  %1804 = vmatprep.subr.mxu0 0.0
  %1805 = vmatpush1.msra.mxu0 0.0
  %1806 = vmatprep.subr.mxu0 0.0
  %1807 = vmatpush1.msra.mxu0 0.0
  %1808 = vmatprep.subr.mxu0 0.0
  %1809 = vmatpush1.msra.mxu0 0.0
  %1810 = vmatprep.subr.mxu0 0.0
  %1811 = vmatpush1.msra.mxu0 0.0
  %1812 = vmatprep.subr.mxu0 0.0
  %1813 = vmatpush1.msra.mxu0 0.0
  %1814 = vmatprep.subr.mxu0 0.0
  %1815 = vmatpush1.msra.mxu0 0.0
  %1816 = vmatprep.subr.mxu0 0.0
  %1817 = vmatpush1.msra.mxu0 0.0
  %1818 = vmatprep.subr.mxu0 0.0
  %1819 = vmatpush1.msra.mxu0 0.0
  %1820 = vmatprep.subr.mxu0 0.0
  %1821 = vmatpush1.msra.mxu0 0.0
  %1822 = vmatprep.subr.mxu0 0.0
  %1823 = vmatpush1.msra.mxu0 0.0
  %1824 = vmatprep.subr.mxu0 0.0
  %1825 = vmatpush1.msra.mxu0 0.0
  %1826 = vmatprep.mubr.f32.mxu0 0.0
  %1827 = vmatmul.mubr.f32.gmra.mrb[0].mxu0 %v1664
  %v1828 = vpop.f32.mrb[0].mxu0
  %v1829 = vadd.f32 0.0, %v1828
  %v1830 = vpop.f32.mrb[0].mxu0
  %1831 = vdwg.mxu0
  %v1832 = vadd.f32 %v447, %v1829
  %v1833 = vxor.u32 %v1832, 2147483648
  %v1834 = vmul.f32 %v1833, 1.442695
  %v1835 = vpow.pop %v1834
  %v1836 = vadd.f32 %v1835, 1.0
  %v1837 = vrcp.pop %v1836
  %v1838 = vmul.f32 1.0, %v1837
  %v1839 = vmul.f32 %v1838, 2.0
  %v1840 = vsub.f32 %v1839, 1.0
  %v1841 = vmul.f32 %v1579, %v1838
  %1843 = vrot.lane.b32.xlu0 %v1840, 64
  %v1844 = vpop.permute.xlu0 %1843
  %v1846 = vmul.f32 %v1838, %v1844
  %1848 = vrot.lane.b32.xlu0 %v1846, 32
  %v1849 = vpop.permute.xlu0 %1848
  %v1851 = vadd.f32 %v1841, %v1849
  %v1852 = vtanh.pop %v1851
  %1854 = vrot.lane.b32.xlu0 %v1852, 64
  %v1855 = vpop.permute.xlu0 %1854
  %v1857 = vmul.f32 %v1838, %v1855
  %1859 = vrot.lane.b32.xlu0 %v1761, 32
  %v1860 = vpop.permute.xlu0 %1859
  %v1861 = vsel %vm675, %v1860, 0
  %1863 = vmatprep.subr.mxu0 0.0
  %1864 = vmatpush1.msra.mxu0 %v57
  %1865 = vmatprep.subr.mxu0 0.0
  %1866 = vmatpush1.msra.mxu0 %v58
  %1867 = vmatprep.subr.mxu0 0.0
  %1868 = vmatpush1.msra.mxu0 %v59
  %1869 = vmatprep.subr.mxu0 0.0
  %1870 = vmatpush1.msra.mxu0 %v60
  %1871 = vmatprep.subr.mxu0 0.0
  %1872 = vmatpush1.msra.mxu0 0.0
  %1873 = vmatprep.subr.mxu0 0.0
  %1874 = vmatpush1.msra.mxu0 0.0
  %1875 = vmatprep.subr.mxu0 0.0
  %1876 = vmatpush1.msra.mxu0 0.0
  %1877 = vmatprep.subr.mxu0 0.0
  %1878 = vmatpush1.msra.mxu0 0.0
  %1879 = vmatprep.subr.mxu0 0.0
  %1880 = vmatpush1.msra.mxu0 0.0
  %1881 = vmatprep.subr.mxu0 0.0
  %1882 = vmatpush1.msra.mxu0 0.0
  %1883 = vmatprep.subr.mxu0 0.0
  %1884 = vmatpush1.msra.mxu0 0.0
  %1885 = vmatprep.subr.mxu0 0.0
  %1886 = vmatpush1.msra.mxu0 0.0
  %1887 = vmatprep.subr.mxu0 0.0
  %1888 = vmatpush1.msra.mxu0 0.0
  %1889 = vmatprep.subr.mxu0 0.0
  %1890 = vmatpush1.msra.mxu0 0.0
  %1891 = vmatprep.subr.mxu0 0.0
  %1892 = vmatpush1.msra.mxu0 0.0
  %1893 = vmatprep.subr.mxu0 0.0
  %1894 = vmatpush1.msra.mxu0 0.0
  %1895 = vmatprep.subr.mxu0 0.0
  %1896 = vmatpush1.msra.mxu0 0.0
  %1897 = vmatprep.subr.mxu0 0.0
  %1898 = vmatpush1.msra.mxu0 0.0
  %1899 = vmatprep.subr.mxu0 0.0
  %1900 = vmatpush1.msra.mxu0 0.0
  %1901 = vmatprep.subr.mxu0 0.0
  %1902 = vmatpush1.msra.mxu0 0.0
  %1903 = vmatprep.subr.mxu0 0.0
  %1904 = vmatpush1.msra.mxu0 0.0
  %1905 = vmatprep.subr.mxu0 0.0
  %1906 = vmatpush1.msra.mxu0 0.0
  %1907 = vmatprep.subr.mxu0 0.0
  %1908 = vmatpush1.msra.mxu0 0.0
  %1909 = vmatprep.subr.mxu0 0.0
  %1910 = vmatpush1.msra.mxu0 0.0
  %1911 = vmatprep.subr.mxu0 0.0
  %1912 = vmatpush1.msra.mxu0 0.0
  %1913 = vmatprep.subr.mxu0 0.0
  %1914 = vmatpush1.msra.mxu0 0.0
  %1915 = vmatprep.subr.mxu0 0.0
  %1916 = vmatpush1.msra.mxu0 0.0
  %1917 = vmatprep.subr.mxu0 0.0
  %1918 = vmatpush1.msra.mxu0 0.0
  %1919 = vmatprep.subr.mxu0 0.0
  %1920 = vmatpush1.msra.mxu0 0.0
  %1921 = vmatprep.subr.mxu0 0.0
  %1922 = vmatpush1.msra.mxu0 0.0
  %1923 = vmatprep.subr.mxu0 0.0
  %1924 = vmatpush1.msra.mxu0 0.0
  %1925 = vmatprep.subr.mxu0 0.0
  %1926 = vmatpush1.msra.mxu0 0.0
  %1927 = vmatprep.mubr.f32.mxu0 0.0
  %1928 = vmatmul.mubr.f32.gmra.mrb[0].mxu0 %v1861
  %v1929 = vpop.f32.mrb[0].mxu0
  %v1930 = vadd.f32 0.0, %v1929
  %v1931 = vpop.f32.mrb[0].mxu0
  %1932 = vdwg.mxu0
  %1934 = vrot.lane.b32.xlu0 %v1857, 32
  %v1935 = vpop.permute.xlu0 %1934
  %v1936 = vsel %vm675, %v1935, 0
  %1938 = vmatprep.subr.mxu0 0.0
  %1939 = vmatpush1.msra.mxu0 %v53
  %1940 = vmatprep.subr.mxu0 0.0
  %1941 = vmatpush1.msra.mxu0 %v54
  %1942 = vmatprep.subr.mxu0 0.0
  %1943 = vmatpush1.msra.mxu0 %v55
  %1944 = vmatprep.subr.mxu0 0.0
  %1945 = vmatpush1.msra.mxu0 %v56
  %1946 = vmatprep.subr.mxu0 0.0
  %1947 = vmatpush1.msra.mxu0 0.0
  %1948 = vmatprep.subr.mxu0 0.0
  %1949 = vmatpush1.msra.mxu0 0.0
  %1950 = vmatprep.subr.mxu0 0.0
  %1951 = vmatpush1.msra.mxu0 0.0
  %1952 = vmatprep.subr.mxu0 0.0
  %1953 = vmatpush1.msra.mxu0 0.0
  %1954 = vmatprep.subr.mxu0 0.0
  %1955 = vmatpush1.msra.mxu0 0.0
  %1956 = vmatprep.subr.mxu0 0.0
  %1957 = vmatpush1.msra.mxu0 0.0
  %1958 = vmatprep.subr.mxu0 0.0
  %1959 = vmatpush1.msra.mxu0 0.0
  %1960 = vmatprep.subr.mxu0 0.0
  %1961 = vmatpush1.msra.mxu0 0.0
  %1962 = vmatprep.subr.mxu0 0.0
  %1963 = vmatpush1.msra.mxu0 0.0
  %1964 = vmatprep.subr.mxu0 0.0
  %1965 = vmatpush1.msra.mxu0 0.0
  %1966 = vmatprep.subr.mxu0 0.0
  %1967 = vmatpush1.msra.mxu0 0.0
  %1968 = vmatprep.subr.mxu0 0.0
  %1969 = vmatpush1.msra.mxu0 0.0
  %1970 = vmatprep.subr.mxu0 0.0
  %1971 = vmatpush1.msra.mxu0 0.0
  %1972 = vmatprep.subr.mxu0 0.0
  %1973 = vmatpush1.msra.mxu0 0.0
  %1974 = vmatprep.subr.mxu0 0.0
  %1975 = vmatpush1.msra.mxu0 0.0
  %1976 = vmatprep.subr.mxu0 0.0
  %1977 = vmatpush1.msra.mxu0 0.0
  %1978 = vmatprep.subr.mxu0 0.0
  %1979 = vmatpush1.msra.mxu0 0.0
  %1980 = vmatprep.subr.mxu0 0.0
  %1981 = vmatpush1.msra.mxu0 0.0
  %1982 = vmatprep.subr.mxu0 0.0
  %1983 = vmatpush1.msra.mxu0 0.0
  %1984 = vmatprep.subr.mxu0 0.0
  %1985 = vmatpush1.msra.mxu0 0.0
  %1986 = vmatprep.subr.mxu0 0.0
  %1987 = vmatpush1.msra.mxu0 0.0
  %1988 = vmatprep.subr.mxu0 0.0
  %1989 = vmatpush1.msra.mxu0 0.0
  %1990 = vmatprep.subr.mxu0 0.0
  %1991 = vmatpush1.msra.mxu0 0.0
  %1992 = vmatprep.subr.mxu0 0.0
  %1993 = vmatpush1.msra.mxu0 0.0
  %1994 = vmatprep.subr.mxu0 0.0
  %1995 = vmatpush1.msra.mxu0 0.0
  %1996 = vmatprep.subr.mxu0 0.0
  %1997 = vmatpush1.msra.mxu0 0.0
  %1998 = vmatprep.subr.mxu0 0.0
  %1999 = vmatpush1.msra.mxu0 0.0
  %2000 = vmatprep.subr.mxu0 0.0
  %2001 = vmatpush1.msra.mxu0 0.0
  %2002 = vmatprep.mubr.f32.mxu0 0.0
  %2003 = vmatmul.mubr.f32.gmra.mrb[0].mxu0 %v1936
  %v2004 = vpop.f32.mrb[0].mxu0
  %v2005 = vadd.f32 %v1930, %v2004
  %v2006 = vpop.f32.mrb[0].mxu0
  %2007 = vdwg.mxu0
  %v2008 = vadd.f32 %v2005, %v73
  %v2009 = vxor.u32 %v2008, 2147483648
  %v2010 = vmul.f32 %v2009, 1.442695
  %v2011 = vpow.pop %v2010
  %v2012 = vadd.f32 %v2011, 1.0
  %v2013 = vrcp.pop %v2012
  %v2014 = vmul.f32 1.0, %v2013
  %v2015 = vmul.f32 %v2014, 2.0
  %v2016 = vsub.f32 %v2015, 1.0
  %v2017 = vmul.f32 %v1755, %v2014
  %2019 = vrot.lane.b32.xlu0 %v2016, 64
  %v2020 = vpop.permute.xlu0 %2019
  %v2022 = vmul.f32 %v2014, %v2020
  %2024 = vrot.lane.b32.xlu0 %v2022, 32
  %v2025 = vpop.permute.xlu0 %2024
  %v2027 = vadd.f32 %v2017, %v2025
  %v2028 = vtanh.pop %v2027
  %2030 = vrot.lane.b32.xlu0 %v2028, 64
  %v2031 = vpop.permute.xlu0 %2030
  %v2033 = vmul.f32 %v2014, %v2031
  %2034 = vmatprep.subr.mxu0 0.0
  %2035 = vmatpush1.msra.mxu0 %v49
  %2036 = vmatprep.subr.mxu0 0.0
  %2037 = vmatpush1.msra.mxu0 %v50
  %2038 = vmatprep.subr.mxu0 0.0
  %2039 = vmatpush1.msra.mxu0 %v51
  %2040 = vmatprep.subr.mxu0 0.0
  %2041 = vmatpush1.msra.mxu0 %v52
  %2042 = vmatprep.subr.mxu0 0.0
  %2043 = vmatpush1.msra.mxu0 0.0
  %2044 = vmatprep.subr.mxu0 0.0
  %2045 = vmatpush1.msra.mxu0 0.0
  %2046 = vmatprep.subr.mxu0 0.0
  %2047 = vmatpush1.msra.mxu0 0.0
  %2048 = vmatprep.subr.mxu0 0.0
  %2049 = vmatpush1.msra.mxu0 0.0
  %2050 = vmatprep.subr.mxu0 0.0
  %2051 = vmatpush1.msra.mxu0 0.0
  %2052 = vmatprep.subr.mxu0 0.0
  %2053 = vmatpush1.msra.mxu0 0.0
  %2054 = vmatprep.subr.mxu0 0.0
  %2055 = vmatpush1.msra.mxu0 0.0
  %2056 = vmatprep.subr.mxu0 0.0
  %2057 = vmatpush1.msra.mxu0 0.0
  %2058 = vmatprep.subr.mxu0 0.0
  %2059 = vmatpush1.msra.mxu0 0.0
  %2060 = vmatprep.subr.mxu0 0.0
  %2061 = vmatpush1.msra.mxu0 0.0
  %2062 = vmatprep.subr.mxu0 0.0
  %2063 = vmatpush1.msra.mxu0 0.0
  %2064 = vmatprep.subr.mxu0 0.0
  %2065 = vmatpush1.msra.mxu0 0.0
  %2066 = vmatprep.subr.mxu0 0.0
  %2067 = vmatpush1.msra.mxu0 0.0
  %2068 = vmatprep.subr.mxu0 0.0
  %2069 = vmatpush1.msra.mxu0 0.0
  %2070 = vmatprep.subr.mxu0 0.0
  %2071 = vmatpush1.msra.mxu0 0.0
  %2072 = vmatprep.subr.mxu0 0.0
  %2073 = vmatpush1.msra.mxu0 0.0
  %2074 = vmatprep.subr.mxu0 0.0
  %2075 = vmatpush1.msra.mxu0 0.0
  %2076 = vmatprep.subr.mxu0 0.0
  %2077 = vmatpush1.msra.mxu0 0.0
  %2078 = vmatprep.subr.mxu0 0.0
  %2079 = vmatpush1.msra.mxu0 0.0
  %2080 = vmatprep.subr.mxu0 0.0
  %2081 = vmatpush1.msra.mxu0 0.0
  %2082 = vmatprep.subr.mxu0 0.0
  %2083 = vmatpush1.msra.mxu0 0.0
  %2084 = vmatprep.subr.mxu0 0.0
  %2085 = vmatpush1.msra.mxu0 0.0
  %2086 = vmatprep.subr.mxu0 0.0
  %2087 = vmatpush1.msra.mxu0 0.0
  %2088 = vmatprep.subr.mxu0 0.0
  %2089 = vmatpush1.msra.mxu0 0.0
  %2090 = vmatprep.subr.mxu0 0.0
  %2091 = vmatpush1.msra.mxu0 0.0
  %2092 = vmatprep.subr.mxu0 0.0
  %2093 = vmatpush1.msra.mxu0 0.0
  %2094 = vmatprep.subr.mxu0 0.0
  %2095 = vmatpush1.msra.mxu0 0.0
  %2096 = vmatprep.subr.mxu0 0.0
  %2097 = vmatpush1.msra.mxu0 0.0
  %2098 = vmatprep.mubr.f32.mxu0 0.0
  %2099 = vmatmul.mubr.f32.gmra.mrb[0].mxu0 %v1936
  %v2100 = vpop.f32.mrb[0].mxu0
  %v2101 = vadd.f32 0.0, %v2100
  %v2102 = vpop.f32.mrb[0].mxu0
  %2103 = vdwg.mxu0
  %v2104 = vadd.f32 %v522, %v2101
  %v2105 = vxor.u32 %v2104, 2147483648
  %v2106 = vmul.f32 %v2105, 1.442695
  %v2107 = vpow.pop %v2106
  %v2108 = vadd.f32 %v2107, 1.0
  %v2109 = vrcp.pop %v2108
  %v2110 = vmul.f32 1.0, %v2109
  %v2111 = vmul.f32 %v2110, 2.0
  %v2112 = vsub.f32 %v2111, 1.0
  %v2113 = vmul.f32 %v1851, %v2110
  %2115 = vrot.lane.b32.xlu0 %v2112, 64
  %v2116 = vpop.permute.xlu0 %2115
  %v2118 = vmul.f32 %v2110, %v2116
  %2120 = vrot.lane.b32.xlu0 %v2118, 32
  %v2121 = vpop.permute.xlu0 %2120
  %v2123 = vadd.f32 %v2113, %v2121
  %v2124 = vtanh.pop %v2123
  %2126 = vrot.lane.b32.xlu0 %v2124, 64
  %v2127 = vpop.permute.xlu0 %2126
  %v2129 = vmul.f32 %v2110, %v2127
  %2131 = vrot.lane.b32.xlu0 %v2033, 32
  %v2132 = vpop.permute.xlu0 %2131
  %v2133 = vsel %vm675, %v2132, 0
  %2135 = vmatprep.subr.mxu0 0.0
  %2136 = vmatpush1.msra.mxu0 %v57
  %2137 = vmatprep.subr.mxu0 0.0
  %2138 = vmatpush1.msra.mxu0 %v58
  %2139 = vmatprep.subr.mxu0 0.0
  %2140 = vmatpush1.msra.mxu0 %v59
  %2141 = vmatprep.subr.mxu0 0.0
  %2142 = vmatpush1.msra.mxu0 %v60
  %2143 = vmatprep.subr.mxu0 0.0
  %2144 = vmatpush1.msra.mxu0 0.0
  %2145 = vmatprep.subr.mxu0 0.0
  %2146 = vmatpush1.msra.mxu0 0.0
  %2147 = vmatprep.subr.mxu0 0.0
  %2148 = vmatpush1.msra.mxu0 0.0
  %2149 = vmatprep.subr.mxu0 0.0
  %2150 = vmatpush1.msra.mxu0 0.0
  %2151 = vmatprep.subr.mxu0 0.0
  %2152 = vmatpush1.msra.mxu0 0.0
  %2153 = vmatprep.subr.mxu0 0.0
  %2154 = vmatpush1.msra.mxu0 0.0
  %2155 = vmatprep.subr.mxu0 0.0
  %2156 = vmatpush1.msra.mxu0 0.0
  %2157 = vmatprep.subr.mxu0 0.0
  %2158 = vmatpush1.msra.mxu0 0.0
  %2159 = vmatprep.subr.mxu0 0.0
  %2160 = vmatpush1.msra.mxu0 0.0
  %2161 = vmatprep.subr.mxu0 0.0
  %2162 = vmatpush1.msra.mxu0 0.0
  %2163 = vmatprep.subr.mxu0 0.0
  %2164 = vmatpush1.msra.mxu0 0.0
  %2165 = vmatprep.subr.mxu0 0.0
  %2166 = vmatpush1.msra.mxu0 0.0
  %2167 = vmatprep.subr.mxu0 0.0
  %2168 = vmatpush1.msra.mxu0 0.0
  %2169 = vmatprep.subr.mxu0 0.0
  %2170 = vmatpush1.msra.mxu0 0.0
  %2171 = vmatprep.subr.mxu0 0.0
  %2172 = vmatpush1.msra.mxu0 0.0
  %2173 = vmatprep.subr.mxu0 0.0
  %2174 = vmatpush1.msra.mxu0 0.0
  %2175 = vmatprep.subr.mxu0 0.0
  %2176 = vmatpush1.msra.mxu0 0.0
  %2177 = vmatprep.subr.mxu0 0.0
  %2178 = vmatpush1.msra.mxu0 0.0
  %2179 = vmatprep.subr.mxu0 0.0
  %2180 = vmatpush1.msra.mxu0 0.0
  %2181 = vmatprep.subr.mxu0 0.0
  %2182 = vmatpush1.msra.mxu0 0.0
  %2183 = vmatprep.subr.mxu0 0.0
  %2184 = vmatpush1.msra.mxu0 0.0
  %2185 = vmatprep.subr.mxu0 0.0
  %2186 = vmatpush1.msra.mxu0 0.0
  %2187 = vmatprep.subr.mxu0 0.0
  %2188 = vmatpush1.msra.mxu0 0.0
  %2189 = vmatprep.subr.mxu0 0.0
  %2190 = vmatpush1.msra.mxu0 0.0
  %2191 = vmatprep.subr.mxu0 0.0
  %2192 = vmatpush1.msra.mxu0 0.0
  %2193 = vmatprep.subr.mxu0 0.0
  %2194 = vmatpush1.msra.mxu0 0.0
  %2195 = vmatprep.subr.mxu0 0.0
  %2196 = vmatpush1.msra.mxu0 0.0
  %2197 = vmatprep.subr.mxu0 0.0
  %2198 = vmatpush1.msra.mxu0 0.0
  %2199 = vmatprep.mubr.f32.mxu0 0.0
  %2200 = vmatmul.mubr.f32.gmra.mrb[0].mxu0 %v2133
  %v2201 = vpop.f32.mrb[0].mxu0
  %v2202 = vadd.f32 0.0, %v2201
  %v2203 = vpop.f32.mrb[0].mxu0
  %2204 = vdwg.mxu0
  %2206 = vrot.lane.b32.xlu0 %v2129, 32
  %v2207 = vpop.permute.xlu0 %2206
  %v2208 = vsel %vm675, %v2207, 0
  %2210 = vmatprep.subr.mxu0 0.0
  %2211 = vmatpush1.msra.mxu0 %v53
  %2212 = vmatprep.subr.mxu0 0.0
  %2213 = vmatpush1.msra.mxu0 %v54
  %2214 = vmatprep.subr.mxu0 0.0
  %2215 = vmatpush1.msra.mxu0 %v55
  %2216 = vmatprep.subr.mxu0 0.0
  %2217 = vmatpush1.msra.mxu0 %v56
  %2218 = vmatprep.subr.mxu0 0.0
  %2219 = vmatpush1.msra.mxu0 0.0
  %2220 = vmatprep.subr.mxu0 0.0
  %2221 = vmatpush1.msra.mxu0 0.0
  %2222 = vmatprep.subr.mxu0 0.0
  %2223 = vmatpush1.msra.mxu0 0.0
  %2224 = vmatprep.subr.mxu0 0.0
  %2225 = vmatpush1.msra.mxu0 0.0
  %2226 = vmatprep.subr.mxu0 0.0
  %2227 = vmatpush1.msra.mxu0 0.0
  %2228 = vmatprep.subr.mxu0 0.0
  %2229 = vmatpush1.msra.mxu0 0.0
  %2230 = vmatprep.subr.mxu0 0.0
  %2231 = vmatpush1.msra.mxu0 0.0
  %2232 = vmatprep.subr.mxu0 0.0
  %2233 = vmatpush1.msra.mxu0 0.0
  %2234 = vmatprep.subr.mxu0 0.0
  %2235 = vmatpush1.msra.mxu0 0.0
  %2236 = vmatprep.subr.mxu0 0.0
  %2237 = vmatpush1.msra.mxu0 0.0
  %2238 = vmatprep.subr.mxu0 0.0
  %2239 = vmatpush1.msra.mxu0 0.0
  %2240 = vmatprep.subr.mxu0 0.0
  %2241 = vmatpush1.msra.mxu0 0.0
  %2242 = vmatprep.subr.mxu0 0.0
  %2243 = vmatpush1.msra.mxu0 0.0
  %2244 = vmatprep.subr.mxu0 0.0
  %2245 = vmatpush1.msra.mxu0 0.0
  %2246 = vmatprep.subr.mxu0 0.0
  %2247 = vmatpush1.msra.mxu0 0.0
  %2248 = vmatprep.subr.mxu0 0.0
  %2249 = vmatpush1.msra.mxu0 0.0
  %2250 = vmatprep.subr.mxu0 0.0
  %2251 = vmatpush1.msra.mxu0 0.0
  %2252 = vmatprep.subr.mxu0 0.0
  %2253 = vmatpush1.msra.mxu0 0.0
  %2254 = vmatprep.subr.mxu0 0.0
  %2255 = vmatpush1.msra.mxu0 0.0
  %2256 = vmatprep.subr.mxu0 0.0
  %2257 = vmatpush1.msra.mxu0 0.0
  %2258 = vmatprep.subr.mxu0 0.0
  %2259 = vmatpush1.msra.mxu0 0.0
  %2260 = vmatprep.subr.mxu0 0.0
  %2261 = vmatpush1.msra.mxu0 0.0
  %2262 = vmatprep.subr.mxu0 0.0
  %2263 = vmatpush1.msra.mxu0 0.0
  %2264 = vmatprep.subr.mxu0 0.0
  %2265 = vmatpush1.msra.mxu0 0.0
  %2266 = vmatprep.subr.mxu0 0.0
  %2267 = vmatpush1.msra.mxu0 0.0
  %2268 = vmatprep.subr.mxu0 0.0
  %2269 = vmatpush1.msra.mxu0 0.0
  %2270 = vmatprep.subr.mxu0 0.0
  %2271 = vmatpush1.msra.mxu0 0.0
  %2272 = vmatprep.subr.mxu0 0.0
  %2273 = vmatpush1.msra.mxu0 0.0
  %2274 = vmatprep.mubr.f32.mxu0 0.0
  %2275 = vmatmul.mubr.f32.gmra.mrb[0].mxu0 %v2208
  %v2276 = vpop.f32.mrb[0].mxu0
  %v2277 = vadd.f32 %v2202, %v2276
  %v2278 = vpop.f32.mrb[0].mxu0
  %2279 = vdwg.mxu0
  %v2280 = vadd.f32 %v2277, %v73
  %v2281 = vxor.u32 %v2280, 2147483648
  %v2282 = vmul.f32 %v2281, 1.442695
  %v2283 = vpow.pop %v2282
  %v2284 = vadd.f32 %v2283, 1.0
  %v2285 = vrcp.pop %v2284
  %v2286 = vmul.f32 1.0, %v2285
  %v2287 = vmul.f32 %v2286, 2.0
  %v2288 = vsub.f32 %v2287, 1.0
  %v2289 = vmul.f32 %v2027, %v2286
  %2291 = vrot.lane.b32.xlu0 %v2288, 64
  %v2292 = vpop.permute.xlu0 %2291
  %v2294 = vmul.f32 %v2286, %v2292
  %2296 = vrot.lane.b32.xlu0 %v2294, 32
  %v2297 = vpop.permute.xlu0 %2296
  %v2299 = vadd.f32 %v2289, %v2297
  %v2300 = vtanh.pop %v2299
  %2302 = vrot.lane.b32.xlu0 %v2300, 64
  %v2303 = vpop.permute.xlu0 %2302
  %v2305 = vmul.f32 %v2286, %v2303
  %2306 = vmatprep.subr.mxu0 0.0
  %2307 = vmatpush1.msra.mxu0 %v49
  %2308 = vmatprep.subr.mxu0 0.0
  %2309 = vmatpush1.msra.mxu0 %v50
  %2310 = vmatprep.subr.mxu0 0.0
  %2311 = vmatpush1.msra.mxu0 %v51
  %2312 = vmatprep.subr.mxu0 0.0
  %2313 = vmatpush1.msra.mxu0 %v52
  %2314 = vmatprep.subr.mxu0 0.0
  %2315 = vmatpush1.msra.mxu0 0.0
  %2316 = vmatprep.subr.mxu0 0.0
  %2317 = vmatpush1.msra.mxu0 0.0
  %2318 = vmatprep.subr.mxu0 0.0
  %2319 = vmatpush1.msra.mxu0 0.0
  %2320 = vmatprep.subr.mxu0 0.0
  %2321 = vmatpush1.msra.mxu0 0.0
  %2322 = vmatprep.subr.mxu0 0.0
  %2323 = vmatpush1.msra.mxu0 0.0
  %2324 = vmatprep.subr.mxu0 0.0
  %2325 = vmatpush1.msra.mxu0 0.0
  %2326 = vmatprep.subr.mxu0 0.0
  %2327 = vmatpush1.msra.mxu0 0.0
  %2328 = vmatprep.subr.mxu0 0.0
  %2329 = vmatpush1.msra.mxu0 0.0
  %2330 = vmatprep.subr.mxu0 0.0
  %2331 = vmatpush1.msra.mxu0 0.0
  %2332 = vmatprep.subr.mxu0 0.0
  %2333 = vmatpush1.msra.mxu0 0.0
  %2334 = vmatprep.subr.mxu0 0.0
  %2335 = vmatpush1.msra.mxu0 0.0
  %2336 = vmatprep.subr.mxu0 0.0
  %2337 = vmatpush1.msra.mxu0 0.0
  %2338 = vmatprep.subr.mxu0 0.0
  %2339 = vmatpush1.msra.mxu0 0.0
  %2340 = vmatprep.subr.mxu0 0.0
  %2341 = vmatpush1.msra.mxu0 0.0
  %2342 = vmatprep.subr.mxu0 0.0
  %2343 = vmatpush1.msra.mxu0 0.0
  %2344 = vmatprep.subr.mxu0 0.0
  %2345 = vmatpush1.msra.mxu0 0.0
  %2346 = vmatprep.subr.mxu0 0.0
  %2347 = vmatpush1.msra.mxu0 0.0
  %2348 = vmatprep.subr.mxu0 0.0
  %2349 = vmatpush1.msra.mxu0 0.0
  %2350 = vmatprep.subr.mxu0 0.0
  %2351 = vmatpush1.msra.mxu0 0.0
  %2352 = vmatprep.subr.mxu0 0.0
  %2353 = vmatpush1.msra.mxu0 0.0
  %2354 = vmatprep.subr.mxu0 0.0
  %2355 = vmatpush1.msra.mxu0 0.0
  %2356 = vmatprep.subr.mxu0 0.0
  %2357 = vmatpush1.msra.mxu0 0.0
  %2358 = vmatprep.subr.mxu0 0.0
  %2359 = vmatpush1.msra.mxu0 0.0
  %2360 = vmatprep.subr.mxu0 0.0
  %2361 = vmatpush1.msra.mxu0 0.0
  %2362 = vmatprep.subr.mxu0 0.0
  %2363 = vmatpush1.msra.mxu0 0.0
  %2364 = vmatprep.subr.mxu0 0.0
  %2365 = vmatpush1.msra.mxu0 0.0
  %2366 = vmatprep.subr.mxu0 0.0
  %2367 = vmatpush1.msra.mxu0 0.0
  %2368 = vmatprep.subr.mxu0 0.0
  %2369 = vmatpush1.msra.mxu0 0.0
  %2370 = vmatprep.mubr.f32.mxu0 0.0
  %2371 = vmatmul.mubr.f32.gmra.mrb[0].mxu0 %v2208
  %v2372 = vpop.f32.mrb[0].mxu0
  %v2373 = vadd.f32 0.0, %v2372
  %v2374 = vpop.f32.mrb[0].mxu0
  %2375 = vdwg.mxu0
  %v2376 = vadd.f32 %v597, %v2373
  %v2377 = vxor.u32 %v2376, 2147483648
  %v2378 = vmul.f32 %v2377, 1.442695
  %v2379 = vpow.pop %v2378
  %v2380 = vadd.f32 %v2379, 1.0
  %v2381 = vrcp.pop %v2380
  %v2382 = vmul.f32 1.0, %v2381
  %v2383 = vmul.f32 %v2382, 2.0
  %v2384 = vsub.f32 %v2383, 1.0
  %v2385 = vmul.f32 %v2123, %v2382
  %2387 = vrot.lane.b32.xlu0 %v2384, 64
  %v2388 = vpop.permute.xlu0 %2387
  %v2390 = vmul.f32 %v2382, %v2388
  %2392 = vrot.lane.b32.xlu0 %v2390, 32
  %v2393 = vpop.permute.xlu0 %2392
  %v2395 = vadd.f32 %v2385, %v2393
  %v2396 = vtanh.pop %v2395
  %2398 = vrot.lane.b32.xlu0 %v2396, 64
  %v2399 = vpop.permute.xlu0 %2398
  %v2401 = vmul.f32 %v2382, %v2399
  %2403 = vrot.lane.b32.xlu0 %v2305, 32
  %v2404 = vpop.permute.xlu0 %2403
  %v2405 = vsel %vm675, %v2404, 0
  %2407 = vmatprep.subr.mxu0 0.0
  %2408 = vmatpush1.msra.mxu0 %v57
  %2409 = vmatprep.subr.mxu0 0.0
  %2410 = vmatpush1.msra.mxu0 %v58
  %2411 = vmatprep.subr.mxu0 0.0
  %2412 = vmatpush1.msra.mxu0 %v59
  %2413 = vmatprep.subr.mxu0 0.0
  %2414 = vmatpush1.msra.mxu0 %v60
  %2415 = vmatprep.subr.mxu0 0.0
  %2416 = vmatpush1.msra.mxu0 0.0
  %2417 = vmatprep.subr.mxu0 0.0
  %2418 = vmatpush1.msra.mxu0 0.0
  %2419 = vmatprep.subr.mxu0 0.0
  %2420 = vmatpush1.msra.mxu0 0.0
  %2421 = vmatprep.subr.mxu0 0.0
  %2422 = vmatpush1.msra.mxu0 0.0
  %2423 = vmatprep.subr.mxu0 0.0
  %2424 = vmatpush1.msra.mxu0 0.0
  %2425 = vmatprep.subr.mxu0 0.0
  %2426 = vmatpush1.msra.mxu0 0.0
  %2427 = vmatprep.subr.mxu0 0.0
  %2428 = vmatpush1.msra.mxu0 0.0
  %2429 = vmatprep.subr.mxu0 0.0
  %2430 = vmatpush1.msra.mxu0 0.0
  %2431 = vmatprep.subr.mxu0 0.0
  %2432 = vmatpush1.msra.mxu0 0.0
  %2433 = vmatprep.subr.mxu0 0.0
  %2434 = vmatpush1.msra.mxu0 0.0
  %2435 = vmatprep.subr.mxu0 0.0
  %2436 = vmatpush1.msra.mxu0 0.0
  %2437 = vmatprep.subr.mxu0 0.0
  %2438 = vmatpush1.msra.mxu0 0.0
  %2439 = vmatprep.subr.mxu0 0.0
  %2440 = vmatpush1.msra.mxu0 0.0
  %2441 = vmatprep.subr.mxu0 0.0
  %2442 = vmatpush1.msra.mxu0 0.0
  %2443 = vmatprep.subr.mxu0 0.0
  %2444 = vmatpush1.msra.mxu0 0.0
  %2445 = vmatprep.subr.mxu0 0.0
  %2446 = vmatpush1.msra.mxu0 0.0
  %2447 = vmatprep.subr.mxu0 0.0
  %2448 = vmatpush1.msra.mxu0 0.0
  %2449 = vmatprep.subr.mxu0 0.0
  %2450 = vmatpush1.msra.mxu0 0.0
  %2451 = vmatprep.subr.mxu0 0.0
  %2452 = vmatpush1.msra.mxu0 0.0
  %2453 = vmatprep.subr.mxu0 0.0
  %2454 = vmatpush1.msra.mxu0 0.0
  %2455 = vmatprep.subr.mxu0 0.0
  %2456 = vmatpush1.msra.mxu0 0.0
  %2457 = vmatprep.subr.mxu0 0.0
  %2458 = vmatpush1.msra.mxu0 0.0
  %2459 = vmatprep.subr.mxu0 0.0
  %2460 = vmatpush1.msra.mxu0 0.0
  %2461 = vmatprep.subr.mxu0 0.0
  %2462 = vmatpush1.msra.mxu0 0.0
  %2463 = vmatprep.subr.mxu0 0.0
  %2464 = vmatpush1.msra.mxu0 0.0
  %2465 = vmatprep.subr.mxu0 0.0
  %2466 = vmatpush1.msra.mxu0 0.0
  %2467 = vmatprep.subr.mxu0 0.0
  %2468 = vmatpush1.msra.mxu0 0.0
  %2469 = vmatprep.subr.mxu0 0.0
  %2470 = vmatpush1.msra.mxu0 0.0
  %2471 = vmatprep.mubr.f32.mxu0 0.0
  %2472 = vmatmul.mubr.f32.gmra.mrb[0].mxu0 %v2405
  %v2473 = vpop.f32.mrb[0].mxu0
  %v2474 = vadd.f32 0.0, %v2473
  %v2475 = vpop.f32.mrb[0].mxu0
  %2476 = vdwg.mxu0
  %2478 = vrot.lane.b32.xlu0 %v2401, 32
  %v2479 = vpop.permute.xlu0 %2478
  %v2480 = vsel %vm675, %v2479, 0
  %2482 = vmatprep.subr.mxu0 0.0
  %2483 = vmatpush1.msra.mxu0 %v53
  %2484 = vmatprep.subr.mxu0 0.0
  %2485 = vmatpush1.msra.mxu0 %v54
  %2486 = vmatprep.subr.mxu0 0.0
  %2487 = vmatpush1.msra.mxu0 %v55
  %2488 = vmatprep.subr.mxu0 0.0
  %2489 = vmatpush1.msra.mxu0 %v56
  %2490 = vmatprep.subr.mxu0 0.0
  %2491 = vmatpush1.msra.mxu0 0.0
  %2492 = vmatprep.subr.mxu0 0.0
  %2493 = vmatpush1.msra.mxu0 0.0
  %2494 = vmatprep.subr.mxu0 0.0
  %2495 = vmatpush1.msra.mxu0 0.0
  %2496 = vmatprep.subr.mxu0 0.0
  %2497 = vmatpush1.msra.mxu0 0.0
  %2498 = vmatprep.subr.mxu0 0.0
  %2499 = vmatpush1.msra.mxu0 0.0
  %2500 = vmatprep.subr.mxu0 0.0
  %2501 = vmatpush1.msra.mxu0 0.0
  %2502 = vmatprep.subr.mxu0 0.0
  %2503 = vmatpush1.msra.mxu0 0.0
  %2504 = vmatprep.subr.mxu0 0.0
  %2505 = vmatpush1.msra.mxu0 0.0
  %2506 = vmatprep.subr.mxu0 0.0
  %2507 = vmatpush1.msra.mxu0 0.0
  %2508 = vmatprep.subr.mxu0 0.0
  %2509 = vmatpush1.msra.mxu0 0.0
  %2510 = vmatprep.subr.mxu0 0.0
  %2511 = vmatpush1.msra.mxu0 0.0
  %2512 = vmatprep.subr.mxu0 0.0
  %2513 = vmatpush1.msra.mxu0 0.0
  %2514 = vmatprep.subr.mxu0 0.0
  %2515 = vmatpush1.msra.mxu0 0.0
  %2516 = vmatprep.subr.mxu0 0.0
  %2517 = vmatpush1.msra.mxu0 0.0
  %2518 = vmatprep.subr.mxu0 0.0
  %2519 = vmatpush1.msra.mxu0 0.0
  %2520 = vmatprep.subr.mxu0 0.0
  %2521 = vmatpush1.msra.mxu0 0.0
  %2522 = vmatprep.subr.mxu0 0.0
  %2523 = vmatpush1.msra.mxu0 0.0
  %2524 = vmatprep.subr.mxu0 0.0
  %2525 = vmatpush1.msra.mxu0 0.0
  %2526 = vmatprep.subr.mxu0 0.0
  %2527 = vmatpush1.msra.mxu0 0.0
  %2528 = vmatprep.subr.mxu0 0.0
  %2529 = vmatpush1.msra.mxu0 0.0
  %2530 = vmatprep.subr.mxu0 0.0
  %2531 = vmatpush1.msra.mxu0 0.0
  %2532 = vmatprep.subr.mxu0 0.0
  %2533 = vmatpush1.msra.mxu0 0.0
  %2534 = vmatprep.subr.mxu0 0.0
  %2535 = vmatpush1.msra.mxu0 0.0
  %2536 = vmatprep.subr.mxu0 0.0
  %2537 = vmatpush1.msra.mxu0 0.0
  %2538 = vmatprep.subr.mxu0 0.0
  %2539 = vmatpush1.msra.mxu0 0.0
  %2540 = vmatprep.subr.mxu0 0.0
  %2541 = vmatpush1.msra.mxu0 0.0
  %2542 = vmatprep.subr.mxu0 0.0
  %2543 = vmatpush1.msra.mxu0 0.0
  %2544 = vmatprep.subr.mxu0 0.0
  %2545 = vmatpush1.msra.mxu0 0.0
  %2546 = vmatprep.mubr.f32.mxu0 0.0
  %2547 = vmatmul.mubr.f32.gmra.mrb[0].mxu0 %v2480
  %v2548 = vpop.f32.mrb[0].mxu0
  %v2549 = vadd.f32 %v2474, %v2548
  %v2550 = vpop.f32.mrb[0].mxu0
  %2551 = vdwg.mxu0
  %v2552 = vadd.f32 %v2549, %v73
  %v2553 = vxor.u32 %v2552, 2147483648
  %v2554 = vmul.f32 %v2553, 1.442695
  %v2555 = vpow.pop %v2554
  %v2556 = vadd.f32 %v2555, 1.0
  %v2557 = vrcp.pop %v2556
  %v2558 = vmul.f32 1.0, %v2557
  %v2559 = vmul.f32 %v2558, 2.0
  %v2560 = vsub.f32 %v2559, 1.0
  %v2561 = vmul.f32 %v2299, %v2558
  %2563 = vrot.lane.b32.xlu0 %v2560, 64
  %v2564 = vpop.permute.xlu0 %2563
  %v2566 = vmul.f32 %v2558, %v2564
  %2568 = vrot.lane.b32.xlu0 %v2566, 32
  %v2569 = vpop.permute.xlu0 %2568
  %v2571 = vadd.f32 %v2561, %v2569
  %v2572 = vtanh.pop %v2571
  %2574 = vrot.lane.b32.xlu0 %v2572, 64
  %v2575 = vpop.permute.xlu0 %2574
  %v2577 = vmul.f32 %v2558, %v2575
  %2578 = vmatprep.subr.mxu0 0.0
  %2579 = vmatpush1.msra.mxu0 %v49
  %2580 = vmatprep.subr.mxu0 0.0
  %2581 = vmatpush1.msra.mxu0 %v50
  %2582 = vmatprep.subr.mxu0 0.0
  %2583 = vmatpush1.msra.mxu0 %v51
  %2584 = vmatprep.subr.mxu0 0.0
  %2585 = vmatpush1.msra.mxu0 %v52
  %2586 = vmatprep.subr.mxu0 0.0
  %2587 = vmatpush1.msra.mxu0 0.0
  %2588 = vmatprep.subr.mxu0 0.0
  %2589 = vmatpush1.msra.mxu0 0.0
  %2590 = vmatprep.subr.mxu0 0.0
  %2591 = vmatpush1.msra.mxu0 0.0
  %2592 = vmatprep.subr.mxu0 0.0
  %2593 = vmatpush1.msra.mxu0 0.0
  %2594 = vmatprep.subr.mxu0 0.0
  %2595 = vmatpush1.msra.mxu0 0.0
  %2596 = vmatprep.subr.mxu0 0.0
  %2597 = vmatpush1.msra.mxu0 0.0
  %2598 = vmatprep.subr.mxu0 0.0
  %2599 = vmatpush1.msra.mxu0 0.0
  %2600 = vmatprep.subr.mxu0 0.0
  %2601 = vmatpush1.msra.mxu0 0.0
  %2602 = vmatprep.subr.mxu0 0.0
  %2603 = vmatpush1.msra.mxu0 0.0
  %2604 = vmatprep.subr.mxu0 0.0
  %2605 = vmatpush1.msra.mxu0 0.0
  %2606 = vmatprep.subr.mxu0 0.0
  %2607 = vmatpush1.msra.mxu0 0.0
  %2608 = vmatprep.subr.mxu0 0.0
  %2609 = vmatpush1.msra.mxu0 0.0
  %2610 = vmatprep.subr.mxu0 0.0
  %2611 = vmatpush1.msra.mxu0 0.0
  %2612 = vmatprep.subr.mxu0 0.0
  %2613 = vmatpush1.msra.mxu0 0.0
  %2614 = vmatprep.subr.mxu0 0.0
  %2615 = vmatpush1.msra.mxu0 0.0
  %2616 = vmatprep.subr.mxu0 0.0
  %2617 = vmatpush1.msra.mxu0 0.0
  %2618 = vmatprep.subr.mxu0 0.0
  %2619 = vmatpush1.msra.mxu0 0.0
  %2620 = vmatprep.subr.mxu0 0.0
  %2621 = vmatpush1.msra.mxu0 0.0
  %2622 = vmatprep.subr.mxu0 0.0
  %2623 = vmatpush1.msra.mxu0 0.0
  %2624 = vmatprep.subr.mxu0 0.0
  %2625 = vmatpush1.msra.mxu0 0.0
  %2626 = vmatprep.subr.mxu0 0.0
  %2627 = vmatpush1.msra.mxu0 0.0
  %2628 = vmatprep.subr.mxu0 0.0
  %2629 = vmatpush1.msra.mxu0 0.0
  %2630 = vmatprep.subr.mxu0 0.0
  %2631 = vmatpush1.msra.mxu0 0.0
  %2632 = vmatprep.subr.mxu0 0.0
  %2633 = vmatpush1.msra.mxu0 0.0
  %2634 = vmatprep.subr.mxu0 0.0
  %2635 = vmatpush1.msra.mxu0 0.0
  %2636 = vmatprep.subr.mxu0 0.0
  %2637 = vmatpush1.msra.mxu0 0.0
  %2638 = vmatprep.subr.mxu0 0.0
  %2639 = vmatpush1.msra.mxu0 0.0
  %2640 = vmatprep.subr.mxu0 0.0
  %2641 = vmatpush1.msra.mxu0 0.0
  %2642 = vmatprep.mubr.f32.mxu0 0.0
  %2643 = vmatmul.mubr.f32.gmra.mrb[0].mxu0 %v2480
  %v2644 = vpop.f32.mrb[0].mxu0
  %v2645 = vadd.f32 0.0, %v2644
  %v2646 = vpop.f32.mrb[0].mxu0
  %2647 = vdwg.mxu0
  %v2648 = vadd.f32 %v672, %v2645
  %v2649 = vxor.u32 %v2648, 2147483648
  %v2650 = vmul.f32 %v2649, 1.442695
  %v2651 = vpow.pop %v2650
  %v2652 = vadd.f32 %v2651, 1.0
  %v2653 = vrcp.pop %v2652
  %v2654 = vmul.f32 1.0, %v2653
  %v2655 = vmul.f32 %v2654, 2.0
  %v2656 = vsub.f32 %v2655, 1.0
  %v2657 = vmul.f32 %v2395, %v2654
  %2659 = vrot.lane.b32.xlu0 %v2656, 64
  %v2660 = vpop.permute.xlu0 %2659
  %v2662 = vmul.f32 %v2654, %v2660
  %2664 = vrot.lane.b32.xlu0 %v2662, 32
  %v2665 = vpop.permute.xlu0 %2664
  %v2667 = vadd.f32 %v2657, %v2665
  %v2668 = vtanh.pop %v2667
  %2670 = vrot.lane.b32.xlu0 %v2668, 64
  %v2671 = vpop.permute.xlu0 %2670
  %v2673 = vmul.f32 %v2654, %v2671
  %2675 = vrot.lane.b32.xlu0 %v2577, 32
  %v2676 = vpop.permute.xlu0 %2675
  %v2677 = vsel %vm675, %v2676, 0
  %2679 = vmatprep.subr.mxu0 0.0
  %2680 = vmatpush1.msra.mxu0 %v57
  %2681 = vmatprep.subr.mxu0 0.0
  %2682 = vmatpush1.msra.mxu0 %v58
  %2683 = vmatprep.subr.mxu0 0.0
  %2684 = vmatpush1.msra.mxu0 %v59
  %2685 = vmatprep.subr.mxu0 0.0
  %2686 = vmatpush1.msra.mxu0 %v60
  %2687 = vmatprep.subr.mxu0 0.0
  %2688 = vmatpush1.msra.mxu0 0.0
  %2689 = vmatprep.subr.mxu0 0.0
  %2690 = vmatpush1.msra.mxu0 0.0
  %2691 = vmatprep.subr.mxu0 0.0
  %2692 = vmatpush1.msra.mxu0 0.0
  %2693 = vmatprep.subr.mxu0 0.0
  %2694 = vmatpush1.msra.mxu0 0.0
  %2695 = vmatprep.subr.mxu0 0.0
  %2696 = vmatpush1.msra.mxu0 0.0
  %2697 = vmatprep.subr.mxu0 0.0
  %2698 = vmatpush1.msra.mxu0 0.0
  %2699 = vmatprep.subr.mxu0 0.0
  %2700 = vmatpush1.msra.mxu0 0.0
  %2701 = vmatprep.subr.mxu0 0.0
  %2702 = vmatpush1.msra.mxu0 0.0
  %2703 = vmatprep.subr.mxu0 0.0
  %2704 = vmatpush1.msra.mxu0 0.0
  %2705 = vmatprep.subr.mxu0 0.0
  %2706 = vmatpush1.msra.mxu0 0.0
  %2707 = vmatprep.subr.mxu0 0.0
  %2708 = vmatpush1.msra.mxu0 0.0
  %2709 = vmatprep.subr.mxu0 0.0
  %2710 = vmatpush1.msra.mxu0 0.0
  %2711 = vmatprep.subr.mxu0 0.0
  %2712 = vmatpush1.msra.mxu0 0.0
  %2713 = vmatprep.subr.mxu0 0.0
  %2714 = vmatpush1.msra.mxu0 0.0
  %2715 = vmatprep.subr.mxu0 0.0
  %2716 = vmatpush1.msra.mxu0 0.0
  %2717 = vmatprep.subr.mxu0 0.0
  %2718 = vmatpush1.msra.mxu0 0.0
  %2719 = vmatprep.subr.mxu0 0.0
  %2720 = vmatpush1.msra.mxu0 0.0
  %2721 = vmatprep.subr.mxu0 0.0
  %2722 = vmatpush1.msra.mxu0 0.0
  %2723 = vmatprep.subr.mxu0 0.0
  %2724 = vmatpush1.msra.mxu0 0.0
  %2725 = vmatprep.subr.mxu0 0.0
  %2726 = vmatpush1.msra.mxu0 0.0
  %2727 = vmatprep.subr.mxu0 0.0
  %2728 = vmatpush1.msra.mxu0 0.0
  %2729 = vmatprep.subr.mxu0 0.0
  %2730 = vmatpush1.msra.mxu0 0.0
  %2731 = vmatprep.subr.mxu0 0.0
  %2732 = vmatpush1.msra.mxu0 0.0
  %2733 = vmatprep.subr.mxu0 0.0
  %2734 = vmatpush1.msra.mxu0 0.0
  %2735 = vmatprep.subr.mxu0 0.0
  %2736 = vmatpush1.msra.mxu0 0.0
  %2737 = vmatprep.subr.mxu0 0.0
  %2738 = vmatpush1.msra.mxu0 0.0
  %2739 = vmatprep.subr.mxu0 0.0
  %2740 = vmatpush1.msra.mxu0 0.0
  %2741 = vmatprep.subr.mxu0 0.0
  %2742 = vmatpush1.msra.mxu0 0.0
  %2743 = vmatprep.mubr.f32.mxu0 0.0
  %2744 = vmatmul.mubr.f32.gmra.mrb[0].mxu0 %v2677
  %v2745 = vpop.f32.mrb[0].mxu0
  %v2746 = vadd.f32 0.0, %v2745
  %v2747 = vpop.f32.mrb[0].mxu0
  %2748 = vdwg.mxu0
  %2750 = vrot.lane.b32.xlu0 %v2673, 32
  %v2751 = vpop.permute.xlu0 %2750
  %v2752 = vsel %vm675, %v2751, 0
  %2754 = vmatprep.subr.mxu0 0.0
  %2755 = vmatpush1.msra.mxu0 %v53
  %2756 = vmatprep.subr.mxu0 0.0
  %2757 = vmatpush1.msra.mxu0 %v54
  %2758 = vmatprep.subr.mxu0 0.0
  %2759 = vmatpush1.msra.mxu0 %v55
  %2760 = vmatprep.subr.mxu0 0.0
  %2761 = vmatpush1.msra.mxu0 %v56
  %2762 = vmatprep.subr.mxu0 0.0
  %2763 = vmatpush1.msra.mxu0 0.0
  %2764 = vmatprep.subr.mxu0 0.0
  %2765 = vmatpush1.msra.mxu0 0.0
  %2766 = vmatprep.subr.mxu0 0.0
  %2767 = vmatpush1.msra.mxu0 0.0
  %2768 = vmatprep.subr.mxu0 0.0
  %2769 = vmatpush1.msra.mxu0 0.0
  %2770 = vmatprep.subr.mxu0 0.0
  %2771 = vmatpush1.msra.mxu0 0.0
  %2772 = vmatprep.subr.mxu0 0.0
  %2773 = vmatpush1.msra.mxu0 0.0
  %2774 = vmatprep.subr.mxu0 0.0
  %2775 = vmatpush1.msra.mxu0 0.0
  %2776 = vmatprep.subr.mxu0 0.0
  %2777 = vmatpush1.msra.mxu0 0.0
  %2778 = vmatprep.subr.mxu0 0.0
  %2779 = vmatpush1.msra.mxu0 0.0
  %2780 = vmatprep.subr.mxu0 0.0
  %2781 = vmatpush1.msra.mxu0 0.0
  %2782 = vmatprep.subr.mxu0 0.0
  %2783 = vmatpush1.msra.mxu0 0.0
  %2784 = vmatprep.subr.mxu0 0.0
  %2785 = vmatpush1.msra.mxu0 0.0
  %2786 = vmatprep.subr.mxu0 0.0
  %2787 = vmatpush1.msra.mxu0 0.0
  %2788 = vmatprep.subr.mxu0 0.0
  %2789 = vmatpush1.msra.mxu0 0.0
  %2790 = vmatprep.subr.mxu0 0.0
  %2791 = vmatpush1.msra.mxu0 0.0
  %2792 = vmatprep.subr.mxu0 0.0
  %2793 = vmatpush1.msra.mxu0 0.0
  %2794 = vmatprep.subr.mxu0 0.0
  %2795 = vmatpush1.msra.mxu0 0.0
  %2796 = vmatprep.subr.mxu0 0.0
  %2797 = vmatpush1.msra.mxu0 0.0
  %2798 = vmatprep.subr.mxu0 0.0
  %2799 = vmatpush1.msra.mxu0 0.0
  %2800 = vmatprep.subr.mxu0 0.0
  %2801 = vmatpush1.msra.mxu0 0.0
  %2802 = vmatprep.subr.mxu0 0.0
  %2803 = vmatpush1.msra.mxu0 0.0
  %2804 = vmatprep.subr.mxu0 0.0
  %2805 = vmatpush1.msra.mxu0 0.0
  %2806 = vmatprep.subr.mxu0 0.0
  %2807 = vmatpush1.msra.mxu0 0.0
  %2808 = vmatprep.subr.mxu0 0.0
  %2809 = vmatpush1.msra.mxu0 0.0
  %2810 = vmatprep.subr.mxu0 0.0
  %2811 = vmatpush1.msra.mxu0 0.0
  %2812 = vmatprep.subr.mxu0 0.0
  %2813 = vmatpush1.msra.mxu0 0.0
  %2814 = vmatprep.subr.mxu0 0.0
  %2815 = vmatpush1.msra.mxu0 0.0
  %2816 = vmatprep.subr.mxu0 0.0
  %2817 = vmatpush1.msra.mxu0 0.0
  %2818 = vmatprep.mubr.f32.mxu0 0.0
  %2819 = vmatmul.mubr.f32.gmra.mrb[0].mxu0 %v2752
  %v2820 = vpop.f32.mrb[0].mxu0
  %v2821 = vadd.f32 %v2746, %v2820
  %v2822 = vpop.f32.mrb[0].mxu0
  %2823 = vdwg.mxu0
  %v2824 = vadd.f32 %v2821, %v73
  %v2825 = vxor.u32 %v2824, 2147483648
  %v2826 = vmul.f32 %v2825, 1.442695
  %v2827 = vpow.pop %v2826
  %v2828 = vadd.f32 %v2827, 1.0
  %v2829 = vrcp.pop %v2828
  %v2830 = vmul.f32 1.0, %v2829
  %v2831 = vmul.f32 %v2830, 2.0
  %v2832 = vsub.f32 %v2831, 1.0
  %v2833 = vmul.f32 %v2571, %v2830
  %2835 = vrot.lane.b32.xlu0 %v2832, 64
  %v2836 = vpop.permute.xlu0 %2835
  %v2838 = vmul.f32 %v2830, %v2836
  %2840 = vrot.lane.b32.xlu0 %v2838, 32
  %v2841 = vpop.permute.xlu0 %2840
  %v2843 = vadd.f32 %v2833, %v2841
  %v2844 = vtanh.pop %v2843
  %2846 = vrot.lane.b32.xlu0 %v2844, 64
  %v2847 = vpop.permute.xlu0 %2846
  %v2849 = vmul.f32 %v2830, %v2847
  %v2850 = vld [vmem:[%s7] sm:$0xff]
  %v2851 = vld [vmem:[%s7 + $0x8] sm:$0xff]
  %v2852 = vld [vmem:[%s7 + $0x10] sm:$0xff]
  %v2853 = vld [vmem:[%s7 + $0x18] sm:$0xff]
  %v2854 = vld [vmem:[%s8] sm:$0x1]
  %v2856 = vlaneseq
  %v2857 = vshrl.u32 %v2856, 7
  %v2858 = vsub.s32 0, %v2857
  %v2859 = vrot.slane %v2854, %v2858
  %2862 = vrot.lane.b32.xlu0 %v2849, 32
  %v2863 = vpop.permute.xlu0 %2862
  %v2864 = vsel %vm675, %v2863, 0
  %2866 = vmatprep.subr.mxu0 0.0
  %2867 = vmatpush1.msra.mxu0 %v2850
  %2868 = vmatprep.subr.mxu0 0.0
  %2869 = vmatpush1.msra.mxu0 %v2851
  %2870 = vmatprep.subr.mxu0 0.0
  %2871 = vmatpush1.msra.mxu0 %v2852
  %2872 = vmatprep.subr.mxu0 0.0
  %2873 = vmatpush1.msra.mxu0 %v2853
  %2874 = vmatprep.subr.mxu0 0.0
  %2875 = vmatpush1.msra.mxu0 0.0
  %2876 = vmatprep.subr.mxu0 0.0
  %2877 = vmatpush1.msra.mxu0 0.0
  %2878 = vmatprep.subr.mxu0 0.0
  %2879 = vmatpush1.msra.mxu0 0.0
  %2880 = vmatprep.subr.mxu0 0.0
  %2881 = vmatpush1.msra.mxu0 0.0
  %2882 = vmatprep.subr.mxu0 0.0
  %2883 = vmatpush1.msra.mxu0 0.0
  %2884 = vmatprep.subr.mxu0 0.0
  %2885 = vmatpush1.msra.mxu0 0.0
  %2886 = vmatprep.subr.mxu0 0.0
  %2887 = vmatpush1.msra.mxu0 0.0
  %2888 = vmatprep.subr.mxu0 0.0
  %2889 = vmatpush1.msra.mxu0 0.0
  %2890 = vmatprep.subr.mxu0 0.0
  %2891 = vmatpush1.msra.mxu0 0.0
  %2892 = vmatprep.subr.mxu0 0.0
  %2893 = vmatpush1.msra.mxu0 0.0
  %2894 = vmatprep.subr.mxu0 0.0
  %2895 = vmatpush1.msra.mxu0 0.0
  %2896 = vmatprep.subr.mxu0 0.0
  %2897 = vmatpush1.msra.mxu0 0.0
  %2898 = vmatprep.subr.mxu0 0.0
  %2899 = vmatpush1.msra.mxu0 0.0
  %2900 = vmatprep.subr.mxu0 0.0
  %2901 = vmatpush1.msra.mxu0 0.0
  %2902 = vmatprep.subr.mxu0 0.0
  %2903 = vmatpush1.msra.mxu0 0.0
  %2904 = vmatprep.subr.mxu0 0.0
  %2905 = vmatpush1.msra.mxu0 0.0
  %2906 = vmatprep.subr.mxu0 0.0
  %2907 = vmatpush1.msra.mxu0 0.0
  %2908 = vmatprep.subr.mxu0 0.0
  %2909 = vmatpush1.msra.mxu0 0.0
  %2910 = vmatprep.subr.mxu0 0.0
  %2911 = vmatpush1.msra.mxu0 0.0
  %2912 = vmatprep.subr.mxu0 0.0
  %2913 = vmatpush1.msra.mxu0 0.0
  %2914 = vmatprep.subr.mxu0 0.0
  %2915 = vmatpush1.msra.mxu0 0.0
  %2916 = vmatprep.subr.mxu0 0.0
  %2917 = vmatpush1.msra.mxu0 0.0
  %2918 = vmatprep.subr.mxu0 0.0
  %2919 = vmatpush1.msra.mxu0 0.0
  %2920 = vmatprep.subr.mxu0 0.0
  %2921 = vmatpush1.msra.mxu0 0.0
  %2922 = vmatprep.subr.mxu0 0.0
  %2923 = vmatpush1.msra.mxu0 0.0
  %2924 = vmatprep.subr.mxu0 0.0
  %2925 = vmatpush1.msra.mxu0 0.0
  %2926 = vmatprep.subr.mxu0 0.0
  %2927 = vmatpush1.msra.mxu0 0.0
  %2928 = vmatprep.subr.mxu0 0.0
  %2929 = vmatpush1.msra.mxu0 0.0
  %2930 = vmatprep.mubr.f32.mxu0 0.0
  %2931 = vmatmul.mubr.f32.gmra.mrb[0].mxu0 %v2864
  %v2932 = vpop.f32.mrb[0].mxu0
  %v2933 = vadd.f32 %v2859, %v2932
  %v2934 = vpop.f32.mrb[0].mxu0
  %2935 = vdwg.mxu0
  %v2936 = vmax.f32 %v2933, 0.0
  %v2937 = vld [vmem:[%s9] sm:$0xff]
  %v2938 = vld [vmem:[%s9 + $0x8] sm:$0xff]
  %v2939 = vld [vmem:[%s10] sm:$0x1]
  %v2941 = vlaneseq
  %v2942 = vshrl.u32 %v2941, 7
  %v2943 = vsub.s32 0, %v2942
  %v2944 = vrot.slane %v2939, %v2943
  %vm2946 = vcmask 130048
  %v2948 = vsel %vm2946, %v2936, 0
  %2950 = vmatprep.subr.mxu0 0.0
  %2951 = vmatpush1.msra.mxu0 %v2937
  %2952 = vmatprep.subr.mxu0 0.0
  %2953 = vmatpush1.msra.mxu0 %v2938
  %2954 = vmatprep.subr.mxu0 0.0
  %2955 = vmatpush1.msra.mxu0 0.0
  %2956 = vmatprep.subr.mxu0 0.0
  %2957 = vmatpush1.msra.mxu0 0.0
  %2958 = vmatprep.subr.mxu0 0.0
  %2959 = vmatpush1.msra.mxu0 0.0
  %2960 = vmatprep.subr.mxu0 0.0
  %2961 = vmatpush1.msra.mxu0 0.0
  %2962 = vmatprep.subr.mxu0 0.0
  %2963 = vmatpush1.msra.mxu0 0.0
  %2964 = vmatprep.subr.mxu0 0.0
  %2965 = vmatpush1.msra.mxu0 0.0
  %2966 = vmatprep.subr.mxu0 0.0
  %2967 = vmatpush1.msra.mxu0 0.0
  %2968 = vmatprep.subr.mxu0 0.0
  %2969 = vmatpush1.msra.mxu0 0.0
  %2970 = vmatprep.subr.mxu0 0.0
  %2971 = vmatpush1.msra.mxu0 0.0
  %2972 = vmatprep.subr.mxu0 0.0
  %2973 = vmatpush1.msra.mxu0 0.0
  %2974 = vmatprep.subr.mxu0 0.0
  %2975 = vmatpush1.msra.mxu0 0.0
  %2976 = vmatprep.subr.mxu0 0.0
  %2977 = vmatpush1.msra.mxu0 0.0
  %2978 = vmatprep.subr.mxu0 0.0
  %2979 = vmatpush1.msra.mxu0 0.0
  %2980 = vmatprep.subr.mxu0 0.0
  %2981 = vmatpush1.msra.mxu0 0.0
  %2982 = vmatprep.subr.mxu0 0.0
  %2983 = vmatpush1.msra.mxu0 0.0
  %2984 = vmatprep.subr.mxu0 0.0
  %2985 = vmatpush1.msra.mxu0 0.0
  %2986 = vmatprep.subr.mxu0 0.0
  %2987 = vmatpush1.msra.mxu0 0.0
  %2988 = vmatprep.subr.mxu0 0.0
  %2989 = vmatpush1.msra.mxu0 0.0
  %2990 = vmatprep.subr.mxu0 0.0
  %2991 = vmatpush1.msra.mxu0 0.0
  %2992 = vmatprep.subr.mxu0 0.0
  %2993 = vmatpush1.msra.mxu0 0.0
  %2994 = vmatprep.subr.mxu0 0.0
  %2995 = vmatpush1.msra.mxu0 0.0
  %2996 = vmatprep.subr.mxu0 0.0
  %2997 = vmatpush1.msra.mxu0 0.0
  %2998 = vmatprep.subr.mxu0 0.0
  %2999 = vmatpush1.msra.mxu0 0.0
  %3000 = vmatprep.subr.mxu0 0.0
  %3001 = vmatpush1.msra.mxu0 0.0
  %3002 = vmatprep.subr.mxu0 0.0
  %3003 = vmatpush1.msra.mxu0 0.0
  %3004 = vmatprep.subr.mxu0 0.0
  %3005 = vmatpush1.msra.mxu0 0.0
  %3006 = vmatprep.subr.mxu0 0.0
  %3007 = vmatpush1.msra.mxu0 0.0
  %3008 = vmatprep.subr.mxu0 0.0
  %3009 = vmatpush1.msra.mxu0 0.0
  %3010 = vmatprep.subr.mxu0 0.0
  %3011 = vmatpush1.msra.mxu0 0.0
  %3012 = vmatprep.subr.mxu0 0.0
  %3013 = vmatpush1.msra.mxu0 0.0
  %3014 = vmatprep.mubr.f32.mxu0 0.0
  %3015 = vmatmul.mubr.f32.gmra.mrb[0].mxu0 %v2948
  %v3016 = vpop.f32.mrb[0].mxu0
  %v3017 = vadd.f32 %v2944, %v3016
  %v3018 = vpop.f32.mrb[0].mxu0
  %3019 = vdwg.mxu0
  %v3020 = vmax.f32 %v3017, 0.0
  %v3021 = vld [vmem:[%s11] sm:$0xff]
  %v3022 = vld [vmem:[#allocation2] sm:$0x1]
  %v3024 = vlaneseq
  %v3025 = vshrl.u32 %v3024, 7
  %v3026 = vsub.s32 0, %v3025
  %v3027 = vrot.slane %v3022, %v3026
  %vm3029 = vcmask 64512
  %v3031 = vsel %vm3029, %v3020, 0
  %3033 = vmatprep.subr.mxu0 0.0
  %3034 = vmatpush1.msra.mxu0 %v3021
  %3035 = vmatprep.subr.mxu0 0.0
  %3036 = vmatpush1.msra.mxu0 0.0
  %3037 = vmatprep.subr.mxu0 0.0
  %3038 = vmatpush1.msra.mxu0 0.0
  %3039 = vmatprep.subr.mxu0 0.0
  %3040 = vmatpush1.msra.mxu0 0.0
  %3041 = vmatprep.subr.mxu0 0.0
  %3042 = vmatpush1.msra.mxu0 0.0
  %3043 = vmatprep.subr.mxu0 0.0
  %3044 = vmatpush1.msra.mxu0 0.0
  %3045 = vmatprep.subr.mxu0 0.0
  %3046 = vmatpush1.msra.mxu0 0.0
  %3047 = vmatprep.subr.mxu0 0.0
  %3048 = vmatpush1.msra.mxu0 0.0
  %3049 = vmatprep.subr.mxu0 0.0
  %3050 = vmatpush1.msra.mxu0 0.0
  %3051 = vmatprep.subr.mxu0 0.0
  %3052 = vmatpush1.msra.mxu0 0.0
  %3053 = vmatprep.subr.mxu0 0.0
  %3054 = vmatpush1.msra.mxu0 0.0
  %3055 = vmatprep.subr.mxu0 0.0
  %3056 = vmatpush1.msra.mxu0 0.0
  %3057 = vmatprep.subr.mxu0 0.0
  %3058 = vmatpush1.msra.mxu0 0.0
  %3059 = vmatprep.subr.mxu0 0.0
  %3060 = vmatpush1.msra.mxu0 0.0
  %3061 = vmatprep.subr.mxu0 0.0
  %3062 = vmatpush1.msra.mxu0 0.0
  %3063 = vmatprep.subr.mxu0 0.0
  %3064 = vmatpush1.msra.mxu0 0.0
  %3065 = vmatprep.subr.mxu0 0.0
  %3066 = vmatpush1.msra.mxu0 0.0
  %3067 = vmatprep.subr.mxu0 0.0
  %3068 = vmatpush1.msra.mxu0 0.0
  %3069 = vmatprep.subr.mxu0 0.0
  %3070 = vmatpush1.msra.mxu0 0.0
  %3071 = vmatprep.subr.mxu0 0.0
  %3072 = vmatpush1.msra.mxu0 0.0
  %3073 = vmatprep.subr.mxu0 0.0
  %3074 = vmatpush1.msra.mxu0 0.0
  %3075 = vmatprep.subr.mxu0 0.0
  %3076 = vmatpush1.msra.mxu0 0.0
  %3077 = vmatprep.subr.mxu0 0.0
  %3078 = vmatpush1.msra.mxu0 0.0
  %3079 = vmatprep.subr.mxu0 0.0
  %3080 = vmatpush1.msra.mxu0 0.0
  %3081 = vmatprep.subr.mxu0 0.0
  %3082 = vmatpush1.msra.mxu0 0.0
  %3083 = vmatprep.subr.mxu0 0.0
  %3084 = vmatpush1.msra.mxu0 0.0
  %3085 = vmatprep.subr.mxu0 0.0
  %3086 = vmatpush1.msra.mxu0 0.0
  %3087 = vmatprep.subr.mxu0 0.0
  %3088 = vmatpush1.msra.mxu0 0.0
  %3089 = vmatprep.subr.mxu0 0.0
  %3090 = vmatpush1.msra.mxu0 0.0
  %3091 = vmatprep.subr.mxu0 0.0
  %3092 = vmatpush1.msra.mxu0 0.0
  %3093 = vmatprep.subr.mxu0 0.0
  %3094 = vmatpush1.msra.mxu0 0.0
  %3095 = vmatprep.subr.mxu0 0.0
  %3096 = vmatpush1.msra.mxu0 0.0
  %3097 = vmatprep.mubr.f32.mxu0 0.0
  %3098 = vmatmul.mubr.f32.gmra.mrb[0].mxu0 %v3031
  %v3099 = vpop.f32.mrb[0].mxu0
  %v3100 = vadd.f32 %v3027, %v3099
  %v3101 = vpop.f32.mrb[0].mxu0
  %3102 = vdwg.mxu0
  %vm3103 = vcmask 7168
  %3104 = vst.msk [vmem:[%s13] sm:$0xff] %vm3103, %v3100
  // Predicated region
  $region54: #{lstmv2_forward.1} parent=0 // pred_check
    _
  $region55: #{lstmv2_forward.1} parent=0 // pred_check_branch
    %3106 = sbr.rel (0) target = $region57
  $region56: #{lstmv2_forward.1} parent=0 // pred_region
    _
  $region57: #{lstmv2_forward.1} parent=0 // pred_fallthru
    _
  // Predicated region
  $region58: #{lstmv2_forward.1} parent=0 // pred_check
    _
  $region59: #{lstmv2_forward.1} parent=0 // pred_check_branch
    %3108 = sbr.rel (0) target = $region61
  $region60: #{lstmv2_forward.1} parent=0 // pred_region
    _
  $region61: #{lstmv2_forward.1} parent=0 // pred_fallthru
    _

</llo_original>
